<compile_context>
chip_gen: v5e
topology: v5e:2x2
jax: 0.10.0
libtpu: 0.0.40
codegen_flags: <defaults>
</compile_context>

<pallas_src>
import functools

import jax
import jax.numpy as jnp
import numpy as np
from jax.experimental import pallas as pl
from jax.experimental.pallas import tpu as pltpu


def _conv_stats_kernel(x_ref, w_ref, y_ref, sum_ref, ssq_ref, *, H, W, Wp, KH, KW):
    """Conv as KH*KW accumulated MXU matmuls on a flattened padded image + BN partial stats."""
    m_out = H * Wp
    cpad = y_ref.shape[-1]

    acc = jnp.zeros((m_out, cpad), jnp.float32)
    for kh in range(KH):
        for kw in range(KW):
            # Row m = h*Wp + w' of this shifted slice is x_pad[h+kh, w'+kw, :].
            tap = x_ref[0, pl.ds(kh * Wp + kw, m_out), :]              # (m_out, Cin) bf16
            acc = acc + jnp.dot(tap, w_ref[kh * KW + kw],
                                preferred_element_type=jnp.float32)     # MXU, f32 accum

    y_ref[0] = acc

    # Per-image batch-norm partial statistics.  Columns w' >= W are the "wide output"
    # garbage columns -> exclude them from the statistics.
    col = jax.lax.broadcasted_iota(jnp.int32, (m_out, 1), 0) % Wp
    masked = jnp.where(col < W, acc, 0.0)
    sum_ref[0] = jnp.sum(masked, axis=0, keepdims=True)
    ssq_ref[0] = jnp.sum(masked * masked, axis=0, keepdims=True)


def _bn_relu_kernel(y_ref, scale_ref, shift_ref, o_ref):
    o_ref[...] = jnp.maximum(y_ref[...] * scale_ref[...] + shift_ref[...], 0.0)


def same_block_2d(x_nchw, w, b, gamma, beta, eps=1e-5):
    del b  # conv bias is a mathematical no-op before train-mode BatchNorm (mean absorbs it)

    N, Cin, H, W = x_nchw.shape
    Cout, Cin_w, KH, KW = w.shape
    assert Cin == Cin_w, "groups=1 conv only"
    ph, pw = KH // 2, KW // 2                       # 'same' padding (kernel_size=3, padding=1)
    Wp = W + KW - 1                                 # padded / "wide output" width
    R = H + KH - 1 + (1 if KW > 1 else 0)           # padded rows (+1 so every tap slice is in-bounds)
    Cpad = max(128, ((Cout + 127) // 128) * 128)    # lane-dense output channels
    m_out = H * Wp

    # --- glue: NCHW -> NHWC, bf16, zero-pad, flatten each image to a 2-D slab ---
    x = jnp.transpose(x_nchw, (0, 2, 3, 1)).astype(jnp.bfloat16)
    xp = jnp.pad(x, ((0, 0), (ph, R - H - ph), (pw, KW - 1 - pw), (0, 0)))
    x2 = xp.reshape(N, R * Wp, Cin)

    # Weights: (Cout, Cin, KH, KW) -> (KH*KW, Cin, Cpad), Cout zero-padded to lanes, bf16.
    wmat = jnp.transpose(w, (2, 3, 1, 0)).reshape(KH * KW, Cin, Cout)
    wmat = jnp.pad(wmat, ((0, 0), (0, 0), (0, Cpad - Cout))).astype(jnp.bfloat16)

    # --- kernel 1: conv (9 accumulated MXU matmuls) + per-image BN partial stats ---
    # TODO(synk): for very large H*W, H-band tiling with halo DMA would replace the
    # one-image-per-grid-step blocks; not needed at these shapes.
    y_wide, psum, pssq = pl.pallas_call(
        functools.partial(_conv_stats_kernel, H=H, W=W, Wp=Wp, KH=KH, KW=KW),
        out_shape=(
            jax.ShapeDtypeStruct((N, m_out, Cpad), jnp.float32),
            jax.ShapeDtypeStruct((N, 1, Cpad), jnp.float32),
            jax.ShapeDtypeStruct((N, 1, Cpad), jnp.float32),
        ),
        grid_spec=pltpu.PrefetchScalarGridSpec(
            num_scalar_prefetch=0,
            grid=(N,),
            in_specs=[
                pl.BlockSpec((1, R * Wp, Cin), lambda n: (n, 0, 0)),
                pl.BlockSpec((KH * KW, Cin, Cpad), lambda n: (0, 0, 0)),
            ],
            out_specs=[
                pl.BlockSpec((1, m_out, Cpad), lambda n: (n, 0, 0)),
                pl.BlockSpec((1, 1, Cpad), lambda n: (n, 0, 0)),
                pl.BlockSpec((1, 1, Cpad), lambda n: (n, 0, 0)),
            ],
        ),
        compiler_params=pltpu.CompilerParams(
            dimension_semantics=("parallel",),       # batch axis -> megacore split on v7x
            vmem_limit_bytes=32 * 1024 * 1024,       # explicit, safe on v5e/v6e/v7x
        ),
    )(x2, wmat)

    # --- glue: finalize train-mode BN stats (Chan parallel combine of per-image partials) ---
    cnt = jnp.float32(H * W)
    mean_n = psum[:, 0, :] / cnt                                     # (N, Cpad)
    var_n = jnp.maximum(pssq[:, 0, :] / cnt - mean_n * mean_n, 0.0)  # per-image biased var
    mean = jnp.mean(mean_n, axis=0)                                  # (Cpad,)
    var = jnp.mean(var_n + (mean_n - mean) ** 2, axis=0)             # batch biased variance

    gamma_p = jnp.pad(gamma.astype(jnp.float32), (0, Cpad - Cout))
    beta_p = jnp.pad(beta.astype(jnp.float32), (0, Cpad - Cout))
    inv = gamma_p * jax.lax.rsqrt(var + eps)
    scale = inv.reshape(1, 1, Cpad)
    shift = (beta_p - mean * inv).reshape(1, 1, Cpad)

    # --- kernel 2: BN affine + ReLU, in-place on the conv output buffer ---
    out_wide = pl.pallas_call(
        _bn_relu_kernel,
        out_shape=jax.ShapeDtypeStruct((N, m_out, Cpad), jnp.float32),
        grid_spec=pltpu.PrefetchScalarGridSpec(
            num_scalar_prefetch=0,
            grid=(N,),
            in_specs=[
                pl.BlockSpec((1, m_out, Cpad), lambda n: (n, 0, 0)),
                pl.BlockSpec((1, 1, Cpad), lambda n: (0, 0, 0)),
                pl.BlockSpec((1, 1, Cpad), lambda n: (0, 0, 0)),
            ],
            out_specs=pl.BlockSpec((1, m_out, Cpad), lambda n: (n, 0, 0)),
        ),
        input_output_aliases={0: 0},
        compiler_params=pltpu.CompilerParams(dimension_semantics=("parallel",)),
    )(y_wide, scale, shift)

    # --- glue: crop garbage columns / padded channels, back to NCHW ---
    out = out_wide.reshape(N, H, Wp, Cpad)[:, :, :W, :Cout]
    return jnp.transpose(out, (0, 3, 1, 2))


if __name__ == "__main__":
    key = jax.random.PRNGKey(0)
    k1, k2, k3, k4, k5 = jax.random.split(key, 5)

    # SameBlock2d(in_features=4, out_features=8, kernel_size=3, padding=1)
    N, Cin, H, W, Cout = 2, 4, 16, 16, 8
    x = jax.random.normal(k1, (N, Cin, H, W), jnp.float32)
    w = 0.1 * jax.random.normal(k2, (Cout, Cin, 3, 3), jnp.float32)
    b = 0.1 * jax.random.normal(k3, (Cout,), jnp.float32)
    gamma = 1.0 + 0.1 * jax.random.normal(k4, (Cout,), jnp.float32)
    beta = 0.1 * jax.random.normal(k5, (Cout,), jnp.float32)

    out = jax.jit(same_block_2d)(x, w, b, gamma, beta)
    out = jax.block_until_ready(out)

    # Reference: conv (on bf16-quantized inputs, matching the kernel's MXU feed) + bias
    # -> train-mode BN (biased variance) -> ReLU.  The bias cancels under BN, so the
    # kernel (which drops it) must match.
    xq = x.astype(jnp.bfloat16).astype(jnp.float32)
    wq = w.astype(jnp.bfloat16).astype(jnp.float32)
    y_ref = jax.lax.conv_general_dilated(
        xq, wq, window_strides=(1, 1), padding=((1, 1), (1, 1)),
        dimension_numbers=("NCHW", "OIHW", "NCHW"),
        precision=jax.lax.Precision.HIGHEST,
    ) + b.reshape(1, Cout, 1, 1)
    mean = jnp.mean(y_ref, axis=(0, 2, 3), keepdims=True)
    var = jnp.mean((y_ref - mean) ** 2, axis=(0, 2, 3), keepdims=True)
    ref = jnp.maximum(
        (y_ref - mean) / jnp.sqrt(var + 1e-5) * gamma.reshape(1, Cout, 1, 1)
        + beta.reshape(1, Cout, 1, 1),
        0.0,
    )
    np.testing.assert_allclose(np.asarray(out), np.asarray(ref), atol=2e-3, rtol=2e-3)

    print("KERNEL_OK")
</pallas_src>

<mosaic_0001>
module attributes {stable_mosaic.version = 11 : i64} {
  func.func @_conv_stats_kernel(%arg0: i32, %arg1: memref<1x342x4xbf16, #tpu.memory_space<vmem>>, %arg2: memref<9x4x128xbf16, #tpu.memory_space<vmem>>, %arg3: memref<1x288x128xf32, #tpu.memory_space<vmem>>, %arg4: memref<1x1x128xf32, #tpu.memory_space<vmem>>, %arg5: memref<1x1x128xf32, #tpu.memory_space<vmem>>) attributes {dimension_semantics = [#tpu.dimension_semantics<parallel>], iteration_bounds = array<i64: 2>, scalar_prefetch = 0 : i64, scratch_operands = 0 : i64, tpu.core_type = #tpu.core_type<tc>, window_params = [{transform_indices = @transform_0, window_bounds = array<i64: 1, 342, 4>}, {pipeline_mode = #tpu.pipeline_mode<synchronous>, transform_indices = @transform_1, window_bounds = array<i64: 9, 4, 128>}, {transform_indices = @transform_2, window_bounds = array<i64: 1, 288, 128>}, {transform_indices = @transform_3, window_bounds = array<i64: 1, 1, 128>}, {transform_indices = @transform_4, window_bounds = array<i64: 1, 1, 128>}]} {
    %cst = arith.constant 0.000000e+00 : f32
    %0 = vector.broadcast %cst : f32 to vector<288x128xf32>
    %c0 = arith.constant 0 : index
    %c0_0 = arith.constant 0 : index
    %c0_1 = arith.constant 0 : index
    %1 = vector.load %arg1[%c0, %c0_0, %c0_1] : memref<1x342x4xbf16, #tpu.memory_space<vmem>>, vector<1x288x4xbf16>
    %2 = vector.shape_cast %1 : vector<1x288x4xbf16> to vector<288x4xbf16>
    %c0_2 = arith.constant 0 : index
    %c0_3 = arith.constant 0 : index
    %c0_4 = arith.constant 0 : index
    %3 = vector.load %arg2[%c0_2, %c0_3, %c0_4] : memref<9x4x128xbf16, #tpu.memory_space<vmem>>, vector<1x4x128xbf16>
    %4 = vector.shape_cast %3 : vector<1x4x128xbf16> to vector<4x128xbf16>
    %cst_5 = arith.constant dense<0.000000e+00> : vector<288x128xf32>
    %5 = tpu.matmul %2, %4, %cst_5 {dimension_numbers = #tpu.dot_dimension_numbers<[1], [0], [0], [1], [0, 0, 1, 1], [], []>} : vector<288x4xbf16>, vector<4x128xbf16>, vector<288x128xf32> -> vector<288x128xf32>
    %6 = arith.addf %0, %5 : vector<288x128xf32>
    %c0_6 = arith.constant 0 : index
    %c1 = arith.constant 1 : index
    %c0_7 = arith.constant 0 : index
    %7 = vector.load %arg1[%c0_6, %c1, %c0_7] : memref<1x342x4xbf16, #tpu.memory_space<vmem>>, vector<1x288x4xbf16>
    %8 = vector.shape_cast %7 : vector<1x288x4xbf16> to vector<288x4xbf16>
    %c1_8 = arith.constant 1 : index
    %c0_9 = arith.constant 0 : index
    %c0_10 = arith.constant 0 : index
    %9 = vector.load %arg2[%c1_8, %c0_9, %c0_10] : memref<9x4x128xbf16, #tpu.memory_space<vmem>>, vector<1x4x128xbf16>
    %10 = vector.shape_cast %9 : vector<1x4x128xbf16> to vector<4x128xbf16>
    %cst_11 = arith.constant dense<0.000000e+00> : vector<288x128xf32>
    %11 = tpu.matmul %8, %10, %cst_11 {dimension_numbers = #tpu.dot_dimension_numbers<[1], [0], [0], [1], [0, 0, 1, 1], [], []>} : vector<288x4xbf16>, vector<4x128xbf16>, vector<288x128xf32> -> vector<288x128xf32>
    %12 = arith.addf %6, %11 : vector<288x128xf32>
    %c0_12 = arith.constant 0 : index
    %c2 = arith.constant 2 : index
    %c0_13 = arith.constant 0 : index
    %13 = vector.load %arg1[%c0_12, %c2, %c0_13] : memref<1x342x4xbf16, #tpu.memory_space<vmem>>, vector<1x288x4xbf16>
    %14 = vector.shape_cast %13 : vector<1x288x4xbf16> to vector<288x4xbf16>
    %c2_14 = arith.constant 2 : index
    %c0_15 = arith.constant 0 : index
    %c0_16 = arith.constant 0 : index
    %15 = vector.load %arg2[%c2_14, %c0_15, %c0_16] : memref<9x4x128xbf16, #tpu.memory_space<vmem>>, vector<1x4x128xbf16>
    %16 = vector.shape_cast %15 : vector<1x4x128xbf16> to vector<4x128xbf16>
    %cst_17 = arith.constant dense<0.000000e+00> : vector<288x128xf32>
    %17 = tpu.matmul %14, %16, %cst_17 {dimension_numbers = #tpu.dot_dimension_numbers<[1], [0], [0], [1], [0, 0, 1, 1], [], []>} : vector<288x4xbf16>, vector<4x128xbf16>, vector<288x128xf32> -> vector<288x128xf32>
    %18 = arith.addf %12, %17 : vector<288x128xf32>
    %c0_18 = arith.constant 0 : index
    %c18 = arith.constant 18 : index
    %c0_19 = arith.constant 0 : index
    %19 = vector.load %arg1[%c0_18, %c18, %c0_19] : memref<1x342x4xbf16, #tpu.memory_space<vmem>>, vector<1x288x4xbf16>
    %20 = vector.shape_cast %19 : vector<1x288x4xbf16> to vector<288x4xbf16>
    %c3 = arith.constant 3 : index
    %c0_20 = arith.constant 0 : index
    %c0_21 = arith.constant 0 : index
    %21 = vector.load %arg2[%c3, %c0_20, %c0_21] : memref<9x4x128xbf16, #tpu.memory_space<vmem>>, vector<1x4x128xbf16>
    %22 = vector.shape_cast %21 : vector<1x4x128xbf16> to vector<4x128xbf16>
    %cst_22 = arith.constant dense<0.000000e+00> : vector<288x128xf32>
    %23 = tpu.matmul %20, %22, %cst_22 {dimension_numbers = #tpu.dot_dimension_numbers<[1], [0], [0], [1], [0, 0, 1, 1], [], []>} : vector<288x4xbf16>, vector<4x128xbf16>, vector<288x128xf32> -> vector<288x128xf32>
    %24 = arith.addf %18, %23 : vector<288x128xf32>
    %c0_23 = arith.constant 0 : index
    %c19 = arith.constant 19 : index
    %c0_24 = arith.constant 0 : index
    %25 = vector.load %arg1[%c0_23, %c19, %c0_24] : memref<1x342x4xbf16, #tpu.memory_space<vmem>>, vector<1x288x4xbf16>
    %26 = vector.shape_cast %25 : vector<1x288x4xbf16> to vector<288x4xbf16>
    %c4 = arith.constant 4 : index
    %c0_25 = arith.constant 0 : index
    %c0_26 = arith.constant 0 : index
    %27 = vector.load %arg2[%c4, %c0_25, %c0_26] : memref<9x4x128xbf16, #tpu.memory_space<vmem>>, vector<1x4x128xbf16>
    %28 = vector.shape_cast %27 : vector<1x4x128xbf16> to vector<4x128xbf16>
    %cst_27 = arith.constant dense<0.000000e+00> : vector<288x128xf32>
    %29 = tpu.matmul %26, %28, %cst_27 {dimension_numbers = #tpu.dot_dimension_numbers<[1], [0], [0], [1], [0, 0, 1, 1], [], []>} : vector<288x4xbf16>, vector<4x128xbf16>, vector<288x128xf32> -> vector<288x128xf32>
    %30 = arith.addf %24, %29 : vector<288x128xf32>
    %c0_28 = arith.constant 0 : index
    %c20 = arith.constant 20 : index
    %c0_29 = arith.constant 0 : index
    %31 = vector.load %arg1[%c0_28, %c20, %c0_29] : memref<1x342x4xbf16, #tpu.memory_space<vmem>>, vector<1x288x4xbf16>
    %32 = vector.shape_cast %31 : vector<1x288x4xbf16> to vector<288x4xbf16>
    %c5 = arith.constant 5 : index
    %c0_30 = arith.constant 0 : index
    %c0_31 = arith.constant 0 : index
    %33 = vector.load %arg2[%c5, %c0_30, %c0_31] : memref<9x4x128xbf16, #tpu.memory_space<vmem>>, vector<1x4x128xbf16>
    %34 = vector.shape_cast %33 : vector<1x4x128xbf16> to vector<4x128xbf16>
    %cst_32 = arith.constant dense<0.000000e+00> : vector<288x128xf32>
    %35 = tpu.matmul %32, %34, %cst_32 {dimension_numbers = #tpu.dot_dimension_numbers<[1], [0], [0], [1], [0, 0, 1, 1], [], []>} : vector<288x4xbf16>, vector<4x128xbf16>, vector<288x128xf32> -> vector<288x128xf32>
    %36 = arith.addf %30, %35 : vector<288x128xf32>
    %c0_33 = arith.constant 0 : index
    %c36 = arith.constant 36 : index
    %c0_34 = arith.constant 0 : index
    %37 = vector.load %arg1[%c0_33, %c36, %c0_34] : memref<1x342x4xbf16, #tpu.memory_space<vmem>>, vector<1x288x4xbf16>
    %38 = vector.shape_cast %37 : vector<1x288x4xbf16> to vector<288x4xbf16>
    %c6 = arith.constant 6 : index
    %c0_35 = arith.constant 0 : index
    %c0_36 = arith.constant 0 : index
    %39 = vector.load %arg2[%c6, %c0_35, %c0_36] : memref<9x4x128xbf16, #tpu.memory_space<vmem>>, vector<1x4x128xbf16>
    %40 = vector.shape_cast %39 : vector<1x4x128xbf16> to vector<4x128xbf16>
    %cst_37 = arith.constant dense<0.000000e+00> : vector<288x128xf32>
    %41 = tpu.matmul %38, %40, %cst_37 {dimension_numbers = #tpu.dot_dimension_numbers<[1], [0], [0], [1], [0, 0, 1, 1], [], []>} : vector<288x4xbf16>, vector<4x128xbf16>, vector<288x128xf32> -> vector<288x128xf32>
    %42 = arith.addf %36, %41 : vector<288x128xf32>
    %c0_38 = arith.constant 0 : index
    %c37 = arith.constant 37 : index
    %c0_39 = arith.constant 0 : index
    %43 = vector.load %arg1[%c0_38, %c37, %c0_39] : memref<1x342x4xbf16, #tpu.memory_space<vmem>>, vector<1x288x4xbf16>
    %44 = vector.shape_cast %43 : vector<1x288x4xbf16> to vector<288x4xbf16>
    %c7 = arith.constant 7 : index
    %c0_40 = arith.constant 0 : index
    %c0_41 = arith.constant 0 : index
    %45 = vector.load %arg2[%c7, %c0_40, %c0_41] : memref<9x4x128xbf16, #tpu.memory_space<vmem>>, vector<1x4x128xbf16>
    %46 = vector.shape_cast %45 : vector<1x4x128xbf16> to vector<4x128xbf16>
    %cst_42 = arith.constant dense<0.000000e+00> : vector<288x128xf32>
    %47 = tpu.matmul %44, %46, %cst_42 {dimension_numbers = #tpu.dot_dimension_numbers<[1], [0], [0], [1], [0, 0, 1, 1], [], []>} : vector<288x4xbf16>, vector<4x128xbf16>, vector<288x128xf32> -> vector<288x128xf32>
    %48 = arith.addf %42, %47 : vector<288x128xf32>
    %c0_43 = arith.constant 0 : index
    %c38 = arith.constant 38 : index
    %c0_44 = arith.constant 0 : index
    %49 = vector.load %arg1[%c0_43, %c38, %c0_44] : memref<1x342x4xbf16, #tpu.memory_space<vmem>>, vector<1x288x4xbf16>
    %50 = vector.shape_cast %49 : vector<1x288x4xbf16> to vector<288x4xbf16>
    %c8 = arith.constant 8 : index
    %c0_45 = arith.constant 0 : index
    %c0_46 = arith.constant 0 : index
    %51 = vector.load %arg2[%c8, %c0_45, %c0_46] : memref<9x4x128xbf16, #tpu.memory_space<vmem>>, vector<1x4x128xbf16>
    %52 = vector.shape_cast %51 : vector<1x4x128xbf16> to vector<4x128xbf16>
    %cst_47 = arith.constant dense<0.000000e+00> : vector<288x128xf32>
    %53 = tpu.matmul %50, %52, %cst_47 {dimension_numbers = #tpu.dot_dimension_numbers<[1], [0], [0], [1], [0, 0, 1, 1], [], []>} : vector<288x4xbf16>, vector<4x128xbf16>, vector<288x128xf32> -> vector<288x128xf32>
    %54 = arith.addf %48, %53 : vector<288x128xf32>
    %c0_48 = arith.constant 0 : index
    %c0_49 = arith.constant 0 : index
    %c0_50 = arith.constant 0 : index
    %55 = vector.load %arg3[%c0_48, %c0_49, %c0_50] : memref<1x288x128xf32, #tpu.memory_space<vmem>>, vector<1x288x128xf32>
    %56 = vector.shape_cast %55 : vector<1x288x128xf32> to vector<288x128xf32>
    %57 = vector.shape_cast %54 : vector<288x128xf32> to vector<1x288x128xf32>
    tpu.vector_store %arg3[%c0_48, %c0_49, %c0_50], %57 {strides = array<i32>} : memref<1x288x128xf32, #tpu.memory_space<vmem>>, vector<1x288x128xf32>,
    %58 = tpu.iota {dimensions = array<i32: 0>} : vector<288x1xi32>
    %c18_i32 = arith.constant 18 : i32
    %c0_i32 = arith.constant 0 : i32
    %59 = arith.cmpi eq, %c18_i32, %c0_i32 : i32
    %c1_i32 = arith.constant 1 : i32
    %60 = arith.select %59, %c1_i32, %c18_i32 : i32
    %61 = vector.broadcast %60 : i32 to vector<288x1xi32>
    %62 = arith.remsi %58, %61 : vector<288x1xi32>
    %c0_i32_51 = arith.constant 0 : i32
    %63 = vector.broadcast %c0_i32_51 : i32 to vector<288x1xi32>
    %64 = arith.cmpi ne, %62, %63 : vector<288x1xi32>
    %c0_i32_52 = arith.constant 0 : i32
    %65 = vector.broadcast %c0_i32_52 : i32 to vector<288x1xi32>
    %66 = arith.cmpi slt, %62, %65 : vector<288x1xi32>
    %c0_i32_53 = arith.constant 0 : i32
    %67 = arith.cmpi slt, %60, %c0_i32_53 : i32
    %68 = vector.broadcast %67 : i1 to vector<288x1xi1>
    %69 = vector.broadcast %68 : vector<288x1xi1> to vector<288x1xi1>
    %70 = arith.xori %66, %69 : vector<288x1xi1>
    %71 = arith.andi %70, %64 : vector<288x1xi1>
    %72 = vector.broadcast %60 : i32 to vector<288x1xi32>
    %73 = arith.addi %62, %72 : vector<288x1xi32>
    %74 = arith.select %71, %73, %62 : vector<288x1xi1>, vector<288x1xi32>
    %c16_i32 = arith.constant 16 : i32
    %75 = vector.broadcast %c16_i32 : i32 to vector<288x1xi32>
    %76 = arith.cmpi slt, %74, %75 : vector<288x1xi32>
    %cst_54 = arith.constant 0.000000e+00 : f32
    %77 = vector.shape_cast %76 : vector<288x1xi1> to vector<288x1xi1>
    %78 = vector.broadcast %77 : vector<288x1xi1> to vector<288x128xi1>
    %79 = vector.broadcast %cst_54 : f32 to vector<288x128xf32>
    %80 = arith.select %78, %54, %79 : vector<288x128xi1>, vector<288x128xf32>
    %cst_55 = arith.constant dense<0.000000e+00> : vector<128xf32>
    %81 = vector.multi_reduction <add>, %80, %cst_55 [0] : vector<288x128xf32> to vector<128xf32>
    %82 = vector.shape_cast %81 : vector<128xf32> to vector<1x128xf32>
    %c0_56 = arith.constant 0 : index
    %c0_57 = arith.constant 0 : index
    %c0_58 = arith.constant 0 : index
    %83 = vector.load %arg4[%c0_56, %c0_57, %c0_58] : memref<1x1x128xf32, #tpu.memory_space<vmem>>, vector<1x1x128xf32>
    %84 = vector.shape_cast %83 : vector<1x1x128xf32> to vector<1x128xf32>
    %85 = vector.shape_cast %82 : vector<1x128xf32> to vector<1x1x128xf32>
    tpu.vector_store %arg4[%c0_56, %c0_57, %c0_58], %85 {strides = array<i32>} : memref<1x1x128xf32, #tpu.memory_space<vmem>>, vector<1x1x128xf32>,
    %86 = arith.mulf %80, %80 : vector<288x128xf32>
    %cst_59 = arith.constant dense<0.000000e+00> : vector<128xf32>
    %87 = vector.multi_reduction <add>, %86, %cst_59 [0] : vector<288x128xf32> to vector<128xf32>
    %88 = vector.shape_cast %87 : vector<128xf32> to vector<1x128xf32>
    %c0_60 = arith.constant 0 : index
    %c0_61 = arith.constant 0 : index
    %c0_62 = arith.constant 0 : index
    %89 = vector.load %arg5[%c0_60, %c0_61, %c0_62] : memref<1x1x128xf32, #tpu.memory_space<vmem>>, vector<1x1x128xf32>
    %90 = vector.shape_cast %89 : vector<1x1x128xf32> to vector<1x128xf32>
    %91 = vector.shape_cast %88 : vector<1x128xf32> to vector<1x1x128xf32>
    tpu.vector_store %arg5[%c0_60, %c0_61, %c0_62], %91 {strides = array<i32>} : memref<1x1x128xf32, #tpu.memory_space<vmem>>, vector<1x1x128xf32>,
    return
  }
  func.func @transform_0(%arg0: i32) -> (i32, i32, i32) {
    %c0_i32 = arith.constant 0 : i32
    %c0_i32_0 = arith.constant 0 : i32
    %c0_i32_1 = arith.constant 0 : i32
    return %arg0, %c0_i32, %c0_i32_0 : i32, i32, i32
  }
  func.func @transform_1(%arg0: i32) -> (i32, i32, i32) {
    %c0_i32 = arith.constant 0 : i32
    %c0_i32_0 = arith.constant 0 : i32
    %c0_i32_1 = arith.constant 0 : i32
    %c0_i32_2 = arith.constant 0 : i32
    return %c0_i32, %c0_i32_0, %c0_i32_1 : i32, i32, i32
  }
  func.func @transform_2(%arg0: i32) -> (i32, i32, i32) {
    %c0_i32 = arith.constant 0 : i32
    %c0_i32_0 = arith.constant 0 : i32
    %c0_i32_1 = arith.constant 0 : i32
    return %arg0, %c0_i32, %c0_i32_0 : i32, i32, i32
  }
  func.func @transform_3(%arg0: i32) -> (i32, i32, i32) {
    %c0_i32 = arith.constant 0 : i32
    %c0_i32_0 = arith.constant 0 : i32
    %c0_i32_1 = arith.constant 0 : i32
    return %arg0, %c0_i32, %c0_i32_0 : i32, i32, i32
  }
  func.func @transform_4(%arg0: i32) -> (i32, i32, i32) {
    %c0_i32 = arith.constant 0 : i32
    %c0_i32_0 = arith.constant 0 : i32
    %c0_i32_1 = arith.constant 0 : i32
    return %arg0, %c0_i32, %c0_i32_0 : i32, i32, i32
  }
}

module attributes {stable_mosaic.version = 11 : i64} {
  func.func @_bn_relu_kernel(%arg0: i32, %arg1: memref<1x288x128xf32, #tpu.memory_space<vmem>>, %arg2: memref<1x1x128xf32, #tpu.memory_space<vmem>>, %arg3: memref<1x1x128xf32, #tpu.memory_space<vmem>>, %arg4: memref<1x288x128xf32, #tpu.memory_space<vmem>>) attributes {dimension_semantics = [#tpu.dimension_semantics<parallel>], iteration_bounds = array<i64: 2>, scalar_prefetch = 0 : i64, scratch_operands = 0 : i64, tpu.core_type = #tpu.core_type<tc>, window_params = [{transform_indices = @transform_0, window_bounds = array<i64: 1, 288, 128>}, {pipeline_mode = #tpu.pipeline_mode<synchronous>, transform_indices = @transform_1, window_bounds = array<i64: 1, 1, 128>}, {pipeline_mode = #tpu.pipeline_mode<synchronous>, transform_indices = @transform_2, window_bounds = array<i64: 1, 1, 128>}, {transform_indices = @transform_3, window_bounds = array<i64: 1, 288, 128>}]} {
    %c0 = arith.constant 0 : index
    %c0_0 = arith.constant 0 : index
    %c0_1 = arith.constant 0 : index
    %0 = vector.load %arg1[%c0, %c0_0, %c0_1] : memref<1x288x128xf32, #tpu.memory_space<vmem>>, vector<1x288x128xf32>
    %c0_2 = arith.constant 0 : index
    %c0_3 = arith.constant 0 : index
    %c0_4 = arith.constant 0 : index
    %1 = vector.load %arg2[%c0_2, %c0_3, %c0_4] : memref<1x1x128xf32, #tpu.memory_space<vmem>>, vector<1x1x128xf32>
    %2 = vector.broadcast %1 : vector<1x1x128xf32> to vector<1x288x128xf32>
    %3 = arith.mulf %0, %2 : vector<1x288x128xf32>
    %c0_5 = arith.constant 0 : index
    %c0_6 = arith.constant 0 : index
    %c0_7 = arith.constant 0 : index
    %4 = vector.load %arg3[%c0_5, %c0_6, %c0_7] : memref<1x1x128xf32, #tpu.memory_space<vmem>>, vector<1x1x128xf32>
    %5 = vector.broadcast %4 : vector<1x1x128xf32> to vector<1x288x128xf32>
    %6 = arith.addf %3, %5 : vector<1x288x128xf32>
    %cst = arith.constant 0.000000e+00 : f32
    %7 = vector.broadcast %cst : f32 to vector<1x288x128xf32>
    %8 = arith.maximumf %6, %7 : vector<1x288x128xf32>
    %c0_8 = arith.constant 0 : index
    %c0_9 = arith.constant 0 : index
    %c0_10 = arith.constant 0 : index
    %9 = vector.load %arg4[%c0_8, %c0_9, %c0_10] : memref<1x288x128xf32, #tpu.memory_space<vmem>>, vector<1x288x128xf32>
    tpu.vector_store %arg4[%c0_8, %c0_9, %c0_10], %8 {strides = array<i32>} : memref<1x288x128xf32, #tpu.memory_space<vmem>>, vector<1x288x128xf32>,
    return
  }
  func.func @transform_0(%arg0: i32) -> (i32, i32, i32) {
    %c0_i32 = arith.constant 0 : i32
    %c0_i32_0 = arith.constant 0 : i32
    %c0_i32_1 = arith.constant 0 : i32
    return %arg0, %c0_i32, %c0_i32_0 : i32, i32, i32
  }
  func.func @transform_1(%arg0: i32) -> (i32, i32, i32) {
    %c0_i32 = arith.constant 0 : i32
    %c0_i32_0 = arith.constant 0 : i32
    %c0_i32_1 = arith.constant 0 : i32
    %c0_i32_2 = arith.constant 0 : i32
    return %c0_i32, %c0_i32_0, %c0_i32_1 : i32, i32, i32
  }
  func.func @transform_2(%arg0: i32) -> (i32, i32, i32) {
    %c0_i32 = arith.constant 0 : i32
    %c0_i32_0 = arith.constant 0 : i32
    %c0_i32_1 = arith.constant 0 : i32
    %c0_i32_2 = arith.constant 0 : i32
    return %c0_i32, %c0_i32_0, %c0_i32_1 : i32, i32, i32
  }
  func.func @transform_3(%arg0: i32) -> (i32, i32, i32) {
    %c0_i32 = arith.constant 0 : i32
    %c0_i32_0 = arith.constant 0 : i32
    %c0_i32_1 = arith.constant 0 : i32
    return %arg0, %c0_i32, %c0_i32_0 : i32, i32, i32
  }
}

</mosaic_0001>

<llo_original>
// kernel: same_block_2d.3
$region0: #{same_block_2d.3}
  #allocation0 [shape = 'u32[]', space=smem, size = 0x4, offset = 0x4, fixed_abs, tag = 'smem constant byte address 0x4 - core index']
  #allocation1 [shape = 'u32[72,128]{1,0:T(1,128)}', space=vmem, size = 0x9000, scoped, tag = 'internal scratch']
  %s0 = inlined_call_operand.vmem [shape: f32[2,288,128], index: 0, kind: input, shape index: {}, may-alias: {0,3}]
  %s1 = inlined_call_operand.vmem [shape: f32[1,1,128], index: 1, kind: input, shape index: {}]
  %s2 = inlined_call_operand.vmem [shape: f32[1,1,128], index: 2, kind: input, shape index: {}]
  %s3 = inlined_call_operand.vmem [shape: f32[2,288,128], index: 3, kind: output, shape index: {}, may-alias: {0,3}]
  %s4 = sld [smem:[#allocation0]]
  $region45: #{same_block_2d.3} parent=0
    _
  %s6 = ssub.s32 1, %s4
  %s7 = scalar_select 0, %s6, %s4
  loop: start=0, step=1, limit=4
  $region2: #{same_block_2d.3} parent=0 // loop_pre_header
    _
  $region3: #{same_block_2d.3} parent=0 // loop_header
    %s9 = sphi 0, %s13
    %p10 = scmp.ge.s32.totalorder %s9, 4
    %s19 = sphi 0, %s21
    %s22 = sphi 0, %s19
    %s23 = sphi 0, %s22
    %s39 = sphi 0, %s23
    %s43 = sphi 0, %s43
    %s45 = sphi 0, %s43
    %s46 = sphi 0, %s45
    %s60 = sphi 0, %s46
    %s64 = sphi 0, %s64
    %s66 = sphi 0, %s64
    %s67 = sphi 0, %s66
    %s81 = sphi 0, %s67
    %s87 = sphi 0, %s89
    %s90 = sphi 0, %s87
    %s91 = sphi 0, %s90
    %s107 = sphi 0, %s91
  $region4: #{same_block_2d.3} parent=0 // loop_header_branch
    %12 = sbr.rel (%p10) target = $region8
  $region5: #{same_block_2d.3} parent=0 // loop_body
    %s14 = ssub.s32 %s9, 1
    %s15 = ssub.s32 %s9, 2
    %s16 = sadd.s32 %s9, 1
    %s17 = ssub.s32 %s9, %s16
    %p18 = scmp.eq.s32.totalorder %s17, 0
    %s20 = sadd.s32 %s19, 1
    %s21 = scalar_select %p18, %s19, %s20
    %p24 = pneg %p18
    %p25 = scmp.eq.s32.totalorder %s9, 1
    %p26 = por %p24, %p25
    %p27 = scmp.ne.s32.totalorder %s19, %s22
    %p28 = scmp.eq.s32.totalorder %s9, 0
    %p29 = por %p27, %p28
    %p30 = scmp.ne.s32.totalorder %s19, %s22
    %p31 = scmp.eq.s32.totalorder %s14, 1
    %p32 = por %p30, %p31
    %p33 = scmp.ne.s32.totalorder %s22, %s23
    %p34 = scmp.eq.s32.totalorder %s14, 0
    %p35 = por %p33, %p34
    %p36 = scmp.ne.s32.totalorder %s22, %s23
    %p37 = scmp.eq.s32.totalorder %s15, 1
    %p38 = por %p36, %p37
    %p40 = scmp.ne.s32.totalorder %s23, %s39
    %p41 = scmp.eq.s32.totalorder %s15, 0
    %p42 = por %p40, %p41
    %s44 = sadd.s32 %s43, 1
    %p47 = scmp.eq.s32.totalorder %s9, 1
    %p48 = scmp.ne.s32.totalorder %s43, %s45
    %p49 = scmp.eq.s32.totalorder %s9, 0
    %p50 = por %p48, %p49
    %p51 = scmp.ne.s32.totalorder %s43, %s45
    %p52 = scmp.eq.s32.totalorder %s14, 1
    %p53 = por %p51, %p52
    %p54 = scmp.ne.s32.totalorder %s45, %s46
    %p55 = scmp.eq.s32.totalorder %s14, 0
    %p56 = por %p54, %p55
    %p57 = scmp.ne.s32.totalorder %s45, %s46
    %p58 = scmp.eq.s32.totalorder %s15, 1
    %p59 = por %p57, %p58
    %p61 = scmp.ne.s32.totalorder %s46, %s60
    %p62 = scmp.eq.s32.totalorder %s15, 0
    %p63 = por %p61, %p62
    %s65 = sadd.s32 %s64, 1
    %p68 = scmp.eq.s32.totalorder %s9, 1
    %p69 = scmp.ne.s32.totalorder %s64, %s66
    %p70 = scmp.eq.s32.totalorder %s9, 0
    %p71 = por %p69, %p70
    %p72 = scmp.ne.s32.totalorder %s64, %s66
    %p73 = scmp.eq.s32.totalorder %s14, 1
    %p74 = por %p72, %p73
    %p75 = scmp.ne.s32.totalorder %s66, %s67
    %p76 = scmp.eq.s32.totalorder %s14, 0
    %p77 = por %p75, %p76
    %p78 = scmp.ne.s32.totalorder %s66, %s67
    %p79 = scmp.eq.s32.totalorder %s15, 1
    %p80 = por %p78, %p79
    %p82 = scmp.ne.s32.totalorder %s67, %s81
    %p83 = scmp.eq.s32.totalorder %s15, 0
    %p84 = por %p82, %p83
    %s85 = ssub.s32 %s9, %s16
    %p86 = scmp.eq.s32.totalorder %s85, 0
    %s88 = sadd.s32 %s87, 1
    %s89 = scalar_select %p86, %s87, %s88
    %p92 = pneg %p86
    %p93 = scmp.eq.s32.totalorder %s9, 1
    %p94 = por %p92, %p93
    %p95 = scmp.ne.s32.totalorder %s87, %s90
    %p96 = scmp.eq.s32.totalorder %s9, 0
    %p97 = por %p95, %p96
    %p98 = scmp.ne.s32.totalorder %s87, %s90
    %p99 = scmp.eq.s32.totalorder %s14, 1
    %p100 = por %p98, %p99
    %p101 = scmp.ne.s32.totalorder %s90, %s91
    %p102 = scmp.eq.s32.totalorder %s14, 0
    %p103 = por %p101, %p102
    %p104 = scmp.ne.s32.totalorder %s90, %s91
    %p105 = scmp.eq.s32.totalorder %s15, 1
    %p106 = por %p104, %p105
    %p108 = scmp.ne.s32.totalorder %s91, %s107
    %p109 = scmp.eq.s32.totalorder %s15, 0
    %p110 = por %p108, %p109
    %p111 = scmp.le.s32.totalorder 1, %s9
    %p112 = scmp.lt.s32.totalorder %s9, 3
    %p113 = pnand %p111, %p112
    %p114 = pneg %p113
    // Predicated region
    $region9: #{same_block_2d.3} parent=5 // pred_check
      _
    $region10: #{same_block_2d.3} parent=5 // pred_check_branch
      %116 = sbr.rel (%p113) target = $region12
    $region11: #{same_block_2d.3} parent=5 // pred_region
      %s117 = ssub.s32 %s9, 1
      // Predicated region
      $region13: #{same_block_2d.3} parent=11 // pred_check
        %p118 = pneg %p56
      $region14: #{same_block_2d.3} parent=11 // pred_check_branch
        %120 = sbr.rel (%p118) target = $region16
      $region15: #{same_block_2d.3} parent=11 // pred_region
        _
      $region16: #{same_block_2d.3} parent=11 // pred_fallthru
        _
      // Predicated region
      $region17: #{same_block_2d.3} parent=11 // pred_check
        %p121 = pneg %p77
      $region18: #{same_block_2d.3} parent=11 // pred_check_branch
        %123 = sbr.rel (%p121) target = $region20
      $region19: #{same_block_2d.3} parent=11 // pred_region
        _
      $region20: #{same_block_2d.3} parent=11 // pred_fallthru
        _
    $region12: #{same_block_2d.3} parent=5 // pred_fallthru
      _
    %p124 = scmp.lt.s32.totalorder %s9, 2
    // Predicated region
    $region21: #{same_block_2d.3} parent=5 // pred_check
      %p125 = pneg %p124
    $region22: #{same_block_2d.3} parent=5 // pred_check_branch
      %127 = sbr.rel (%p125) target = $region24
    $region23: #{same_block_2d.3} parent=5 // pred_region
      // Predicated region
      $region25: #{same_block_2d.3} parent=23 // pred_check
        %p128 = pneg %p29
      $region26: #{same_block_2d.3} parent=23 // pred_check_branch
        %130 = sbr.rel (%p128) target = $region28
      $region27: #{same_block_2d.3} parent=23 // pred_region
        %p131 = scmp.lt.s32.totalorder %s9, 1
        %s132 = scalar_select %p131, %s9, 1
        %s133 = smul.addr %s132, 36
        %s134 = smul.addr %s133, 8
        %s135 = scalar_lea.vmem %s0, %s134
      $region28: #{same_block_2d.3} parent=23 // pred_fallthru
        _
    $region24: #{same_block_2d.3} parent=5 // pred_fallthru
      _
    %p136 = scmp.le.s32.totalorder 1, %s9
    %p137 = scmp.lt.s32.totalorder %s9, 3
    %p138 = pnand %p136, %p137
    %p139 = pneg %p138
    // Predicated region
    $region29: #{same_block_2d.3} parent=5 // pred_check
      _
    $region30: #{same_block_2d.3} parent=5 // pred_check_branch
      %141 = sbr.rel (%p138) target = $region32
    $region31: #{same_block_2d.3} parent=5 // pred_region
      %s142 = ssub.s32 %s9, 1
      %p143 = scmp.lt.s32.totalorder %s14, 1
      %s144 = scalar_select %p143, %s14, 1
      %s145 = smul.addr %s144, 36
      %s146 = smul.addr %s145, 8
      %s147 = scalar_lea.vmem %s0, %s146
      %p148 = pneg %p35
      %p149 = pneg %p32
      %p150 = pneg %p56
      %p151 = pneg %p53
      %p152 = pneg %p77
      %p153 = pneg %p74
      %p154 = pneg %p103
      %p155 = pneg %p100
      %p156 = scmp.lt.s32.totalorder %s14, 1
      %s157 = scalar_select %p156, %s14, 1
      %s158 = smul.addr %s157, 36
      %s159 = smul.addr %s158, 8
      %s160 = scalar_lea.vmem %s3, %s159
      %p161 = scmp.lt.s32.totalorder %s14, 1
      %s162 = scalar_select %p161, %s14, 1
      %s163 = smul.addr %s162, 36
      %s164 = smul.addr %s163, 8
      %s165 = scalar_lea.vmem %s0, %s164
      %p166 = scmp.lt.s32.totalorder %s14, 1
      %s167 = scalar_select %p166, %s14, 1
      %s168 = smul.addr %s167, 36
      %s169 = smul.addr %s168, 8
      %s170 = scalar_lea.vmem %s3, %s169
      %v171 = vld [vmem:[%s165] sm:$0xff]
      %v172 = vld [vmem:[%s165 + $0x8] sm:$0xff]
      %v173 = vld [vmem:[%s165 + $0x10] sm:$0xff]
      %v174 = vld [vmem:[%s165 + $0x18] sm:$0xff]
      %v175 = vld [vmem:[%s165 + $0x20] sm:$0xff]
      %v176 = vld [vmem:[%s165 + $0x28] sm:$0xff]
      %v177 = vld [vmem:[%s165 + $0x30] sm:$0xff]
      %v178 = vld [vmem:[%s165 + $0x38] sm:$0xff]
      %v179 = vld [vmem:[%s165 + $0x40] sm:$0xff]
      %v180 = vld [vmem:[%s165 + $0x48] sm:$0xff]
      %v181 = vld [vmem:[%s165 + $0x50] sm:$0xff]
      %v182 = vld [vmem:[%s165 + $0x58] sm:$0xff]
      %v183 = vld [vmem:[%s165 + $0x60] sm:$0xff]
      %v184 = vld [vmem:[%s165 + $0x68] sm:$0xff]
      %v185 = vld [vmem:[%s165 + $0x70] sm:$0xff]
      %v186 = vld [vmem:[%s165 + $0x78] sm:$0xff]
      %v187 = vld [vmem:[%s165 + $0x80] sm:$0xff]
      %v188 = vld [vmem:[%s165 + $0x88] sm:$0xff]
      %v189 = vld [vmem:[%s165 + $0x90] sm:$0xff]
      %v190 = vld [vmem:[%s165 + $0x98] sm:$0xff]
      %v191 = vld [vmem:[%s165 + $0xa0] sm:$0xff]
      %v192 = vld [vmem:[%s165 + $0xa8] sm:$0xff]
      %v193 = vld [vmem:[%s165 + $0xb0] sm:$0xff]
      %v194 = vld [vmem:[%s165 + $0xb8] sm:$0xff]
      %v195 = vld [vmem:[%s165 + $0xc0] sm:$0xff]
      %v196 = vld [vmem:[%s165 + $0xc8] sm:$0xff]
      %v197 = vld [vmem:[%s165 + $0xd0] sm:$0xff]
      %v198 = vld [vmem:[%s165 + $0xd8] sm:$0xff]
      %v199 = vld [vmem:[%s165 + $0xe0] sm:$0xff]
      %v200 = vld [vmem:[%s165 + $0xe8] sm:$0xff]
      %v201 = vld [vmem:[%s165 + $0xf0] sm:$0xff]
      %v202 = vld [vmem:[%s165 + $0xf8] sm:$0xff]
      %v203 = vld [vmem:[%s165 + $0x100] sm:$0xff]
      %v204 = vld [vmem:[%s165 + $0x108] sm:$0xff]
      %v205 = vld [vmem:[%s165 + $0x110] sm:$0xff]
      %v206 = vld [vmem:[%s165 + $0x118] sm:$0xff]
      %v207 = vld [vmem:[%s1] sm:$0x1]
      %v209 = vperm.slane %v207, 0
      %v211 = vmul.f32 %v171, %v209
      %v212 = vmul.f32 %v172, %v209
      %v213 = vmul.f32 %v173, %v209
      %v214 = vmul.f32 %v174, %v209
      %v215 = vmul.f32 %v175, %v209
      %v216 = vmul.f32 %v176, %v209
      %v217 = vmul.f32 %v177, %v209
      %v218 = vmul.f32 %v178, %v209
      %v219 = vmul.f32 %v179, %v209
      %v220 = vmul.f32 %v180, %v209
      %v221 = vmul.f32 %v181, %v209
      %v222 = vmul.f32 %v182, %v209
      %v223 = vmul.f32 %v183, %v209
      %v224 = vmul.f32 %v184, %v209
      %v225 = vmul.f32 %v185, %v209
      %v226 = vmul.f32 %v186, %v209
      %v227 = vmul.f32 %v187, %v209
      %v228 = vmul.f32 %v188, %v209
      %v229 = vmul.f32 %v189, %v209
      %v230 = vmul.f32 %v190, %v209
      %v231 = vmul.f32 %v191, %v209
      %v232 = vmul.f32 %v192, %v209
      %v233 = vmul.f32 %v193, %v209
      %v234 = vmul.f32 %v194, %v209
      %v235 = vmul.f32 %v195, %v209
      %v236 = vmul.f32 %v196, %v209
      %v237 = vmul.f32 %v197, %v209
      %v238 = vmul.f32 %v198, %v209
      %v239 = vmul.f32 %v199, %v209
      %v240 = vmul.f32 %v200, %v209
      %v241 = vmul.f32 %v201, %v209
      %v242 = vmul.f32 %v202, %v209
      %v243 = vmul.f32 %v203, %v209
      %v244 = vmul.f32 %v204, %v209
      %v245 = vmul.f32 %v205, %v209
      %v246 = vmul.f32 %v206, %v209
      %v247 = vld [vmem:[%s2] sm:$0x1]
      %v249 = vperm.slane %v247, 0
      %v251 = vadd.f32 %v211, %v249
      %v252 = vadd.f32 %v212, %v249
      %v253 = vadd.f32 %v213, %v249
      %v254 = vadd.f32 %v214, %v249
      %v255 = vadd.f32 %v215, %v249
      %v256 = vadd.f32 %v216, %v249
      %v257 = vadd.f32 %v217, %v249
      %v258 = vadd.f32 %v218, %v249
      %v259 = vadd.f32 %v219, %v249
      %v260 = vadd.f32 %v220, %v249
      %v261 = vadd.f32 %v221, %v249
      %v262 = vadd.f32 %v222, %v249
      %v263 = vadd.f32 %v223, %v249
      %v264 = vadd.f32 %v224, %v249
      %v265 = vadd.f32 %v225, %v249
      %v266 = vadd.f32 %v226, %v249
      %v267 = vadd.f32 %v227, %v249
      %v268 = vadd.f32 %v228, %v249
      %v269 = vadd.f32 %v229, %v249
      %v270 = vadd.f32 %v230, %v249
      %v271 = vadd.f32 %v231, %v249
      %v272 = vadd.f32 %v232, %v249
      %v273 = vadd.f32 %v233, %v249
      %v274 = vadd.f32 %v234, %v249
      %v275 = vadd.f32 %v235, %v249
      %v276 = vadd.f32 %v236, %v249
      %v277 = vadd.f32 %v237, %v249
      %v278 = vadd.f32 %v238, %v249
      %v279 = vadd.f32 %v239, %v249
      %v280 = vadd.f32 %v240, %v249
      %v281 = vadd.f32 %v241, %v249
      %v282 = vadd.f32 %v242, %v249
      %v283 = vadd.f32 %v243, %v249
      %v284 = vadd.f32 %v244, %v249
      %v285 = vadd.f32 %v245, %v249
      %v286 = vadd.f32 %v246, %v249
      %v287 = vmax.f32 %v251, 0.0
      %v288 = vmax.f32 %v252, 0.0
      %v289 = vmax.f32 %v253, 0.0
      %v290 = vmax.f32 %v254, 0.0
      %v291 = vmax.f32 %v255, 0.0
      %v292 = vmax.f32 %v256, 0.0
      %v293 = vmax.f32 %v257, 0.0
      %v294 = vmax.f32 %v258, 0.0
      %v295 = vmax.f32 %v259, 0.0
      %v296 = vmax.f32 %v260, 0.0
      %v297 = vmax.f32 %v261, 0.0
      %v298 = vmax.f32 %v262, 0.0
      %v299 = vmax.f32 %v263, 0.0
      %v300 = vmax.f32 %v264, 0.0
      %v301 = vmax.f32 %v265, 0.0
      %v302 = vmax.f32 %v266, 0.0
      %v303 = vmax.f32 %v267, 0.0
      %v304 = vmax.f32 %v268, 0.0
      %v305 = vmax.f32 %v269, 0.0
      %v306 = vmax.f32 %v270, 0.0
      %v307 = vmax.f32 %v271, 0.0
      %v308 = vmax.f32 %v272, 0.0
      %v309 = vmax.f32 %v273, 0.0
      %v310 = vmax.f32 %v274, 0.0
      %v311 = vmax.f32 %v275, 0.0
      %v312 = vmax.f32 %v276, 0.0
      %v313 = vmax.f32 %v277, 0.0
      %v314 = vmax.f32 %v278, 0.0
      %v315 = vmax.f32 %v279, 0.0
      %v316 = vmax.f32 %v280, 0.0
      %v317 = vmax.f32 %v281, 0.0
      %v318 = vmax.f32 %v282, 0.0
      %v319 = vmax.f32 %v283, 0.0
      %v320 = vmax.f32 %v284, 0.0
      %v321 = vmax.f32 %v285, 0.0
      %v322 = vmax.f32 %v286, 0.0
      %323 = vst [vmem:[%s170] sm:$0xff] %v287
      %324 = vst [vmem:[%s170 + $0x8] sm:$0xff] %v288
      %325 = vst [vmem:[%s170 + $0x10] sm:$0xff] %v289
      %326 = vst [vmem:[%s170 + $0x18] sm:$0xff] %v290
      %327 = vst [vmem:[%s170 + $0x20] sm:$0xff] %v291
      %328 = vst [vmem:[%s170 + $0x28] sm:$0xff] %v292
      %329 = vst [vmem:[%s170 + $0x30] sm:$0xff] %v293
      %330 = vst [vmem:[%s170 + $0x38] sm:$0xff] %v294
      %331 = vst [vmem:[%s170 + $0x40] sm:$0xff] %v295
      %332 = vst [vmem:[%s170 + $0x48] sm:$0xff] %v296
      %333 = vst [vmem:[%s170 + $0x50] sm:$0xff] %v297
      %334 = vst [vmem:[%s170 + $0x58] sm:$0xff] %v298
      %335 = vst [vmem:[%s170 + $0x60] sm:$0xff] %v299
      %336 = vst [vmem:[%s170 + $0x68] sm:$0xff] %v300
      %337 = vst [vmem:[%s170 + $0x70] sm:$0xff] %v301
      %338 = vst [vmem:[%s170 + $0x78] sm:$0xff] %v302
      %339 = vst [vmem:[%s170 + $0x80] sm:$0xff] %v303
      %340 = vst [vmem:[%s170 + $0x88] sm:$0xff] %v304
      %341 = vst [vmem:[%s170 + $0x90] sm:$0xff] %v305
      %342 = vst [vmem:[%s170 + $0x98] sm:$0xff] %v306
      %343 = vst [vmem:[%s170 + $0xa0] sm:$0xff] %v307
      %344 = vst [vmem:[%s170 + $0xa8] sm:$0xff] %v308
      %345 = vst [vmem:[%s170 + $0xb0] sm:$0xff] %v309
      %346 = vst [vmem:[%s170 + $0xb8] sm:$0xff] %v310
      %347 = vst [vmem:[%s170 + $0xc0] sm:$0xff] %v311
      %348 = vst [vmem:[%s170 + $0xc8] sm:$0xff] %v312
      %349 = vst [vmem:[%s170 + $0xd0] sm:$0xff] %v313
      %350 = vst [vmem:[%s170 + $0xd8] sm:$0xff] %v314
      %351 = vst [vmem:[%s170 + $0xe0] sm:$0xff] %v315
      %352 = vst [vmem:[%s170 + $0xe8] sm:$0xff] %v316
      %353 = vst [vmem:[%s170 + $0xf0] sm:$0xff] %v317
      %354 = vst [vmem:[%s170 + $0xf8] sm:$0xff] %v318
      %355 = vst [vmem:[%s170 + $0x100] sm:$0xff] %v319
      %356 = vst [vmem:[%s170 + $0x108] sm:$0xff] %v320
      %357 = vst [vmem:[%s170 + $0x110] sm:$0xff] %v321
      %358 = vst [vmem:[%s170 + $0x118] sm:$0xff] %v322
      %p359 = scmp.lt.s32.totalorder %s14, 1
      %s360 = scalar_select %p359, %s14, 1
      %s361 = smul.addr %s360, 36
      %s362 = smul.addr %s361, 8
      %s363 = scalar_lea.vmem %s3, %s362
      // Predicated region
      $region33: #{same_block_2d.3} parent=31 // pred_check
        %p364 = pneg %p100
      $region34: #{same_block_2d.3} parent=31 // pred_check_branch
        %366 = sbr.rel (%p364) target = $region36
      $region35: #{same_block_2d.3} parent=31 // pred_region
        _
      $region36: #{same_block_2d.3} parent=31 // pred_fallthru
        _
    $region32: #{same_block_2d.3} parent=5 // pred_fallthru
      _
    %p367 = scmp.le.s32.totalorder 2, %s9
    // Predicated region
    $region37: #{same_block_2d.3} parent=5 // pred_check
      %p368 = pneg %p367
    $region38: #{same_block_2d.3} parent=5 // pred_check_branch
      %370 = sbr.rel (%p368) target = $region40
    $region39: #{same_block_2d.3} parent=5 // pred_region
      %s371 = ssub.s32 %s9, 2
      // Predicated region
      $region41: #{same_block_2d.3} parent=39 // pred_check
        %p372 = pneg %p106
      $region42: #{same_block_2d.3} parent=39 // pred_check_branch
        %374 = sbr.rel (%p372) target = $region44
      $region43: #{same_block_2d.3} parent=39 // pred_region
        %p375 = scmp.lt.s32.totalorder %s15, 1
        %s376 = scalar_select %p375, %s15, 1
        %s377 = smul.addr %s376, 36
        %s378 = smul.addr %s377, 8
        %s379 = scalar_lea.vmem %s3, %s378
      $region44: #{same_block_2d.3} parent=39 // pred_fallthru
        _
    $region40: #{same_block_2d.3} parent=5 // pred_fallthru
      _
  $region6: #{same_block_2d.3} parent=0 // loop_footer
    %s13 = sadd.s32 1, %s9
  $region7: #{same_block_2d.3} parent=0 // loop_footer_branch
    %8 = sbr.rel target = $region3
  $region8: #{same_block_2d.3} parent=0 // loop_exit
    _

// kernel: same_block_2d.2
$region0: #{same_block_2d.2}
  #allocation0 [shape = 'u32[]', space=smem, size = 0x4, offset = 0x4, fixed_abs, tag = 'smem constant byte address 0x4 - core index']
  #allocation1 [shape = 'u32[72,128]{1,0:T(1,128)}', space=vmem, size = 0x9000, scoped, tag = 'internal scratch']
  %s0 = inlined_call_operand.vmem [shape: bf16[2,342,4], index: 0, kind: input, shape index: {}]
  %s1 = inlined_call_operand.vmem [shape: bf16[9,4,128], index: 1, kind: input, shape index: {}]
  %s2 = inlined_call_operand.vmem [shape: f32[2,288,128], index: 2, kind: output, shape index: {0}]
  %s3 = inlined_call_operand.vmem [shape: f32[2,1,128], index: 3, kind: output, shape index: {1}]
  %s4 = inlined_call_operand.vmem [shape: f32[2,1,128], index: 4, kind: output, shape index: {2}]
  %5 = xla_tuple %s2, %s3, %s4
  %s6 = sld [smem:[#allocation0]]
  $region57: #{same_block_2d.2} parent=0
    _
  %s8 = ssub.s32 1, %s6
  %s9 = scalar_select 0, %s8, %s6
  loop: start=0, step=1, limit=4
  $region2: #{same_block_2d.2} parent=0 // loop_pre_header
    _
  $region3: #{same_block_2d.2} parent=0 // loop_header
    %s11 = sphi 0, %s15
    %p12 = scmp.ge.s32.totalorder %s11, 4
    %s21 = sphi 0, %s23
    %s24 = sphi 0, %s21
    %s25 = sphi 0, %s24
    %s41 = sphi 0, %s25
    %s45 = sphi 0, %s45
    %s47 = sphi 0, %s45
    %s48 = sphi 0, %s47
    %s62 = sphi 0, %s48
    %s68 = sphi 0, %s70
    %s71 = sphi 0, %s68
    %s72 = sphi 0, %s71
    %s88 = sphi 0, %s72
    %s94 = sphi 0, %s96
    %s97 = sphi 0, %s94
    %s98 = sphi 0, %s97
    %s114 = sphi 0, %s98
    %s120 = sphi 0, %s122
    %s123 = sphi 0, %s120
    %s124 = sphi 0, %s123
    %s140 = sphi 0, %s124
  $region4: #{same_block_2d.2} parent=0 // loop_header_branch
    %14 = sbr.rel (%p12) target = $region8
  $region5: #{same_block_2d.2} parent=0 // loop_body
    %s16 = ssub.s32 %s11, 1
    %s17 = ssub.s32 %s11, 2
    %s18 = sadd.s32 %s11, 1
    %s19 = ssub.s32 %s11, %s18
    %p20 = scmp.eq.s32.totalorder %s19, 0
    %s22 = sadd.s32 %s21, 1
    %s23 = scalar_select %p20, %s21, %s22
    %p26 = pneg %p20
    %p27 = scmp.eq.s32.totalorder %s11, 1
    %p28 = por %p26, %p27
    %p29 = scmp.ne.s32.totalorder %s21, %s24
    %p30 = scmp.eq.s32.totalorder %s11, 0
    %p31 = por %p29, %p30
    %p32 = scmp.ne.s32.totalorder %s21, %s24
    %p33 = scmp.eq.s32.totalorder %s16, 1
    %p34 = por %p32, %p33
    %p35 = scmp.ne.s32.totalorder %s24, %s25
    %p36 = scmp.eq.s32.totalorder %s16, 0
    %p37 = por %p35, %p36
    %p38 = scmp.ne.s32.totalorder %s24, %s25
    %p39 = scmp.eq.s32.totalorder %s17, 1
    %p40 = por %p38, %p39
    %p42 = scmp.ne.s32.totalorder %s25, %s41
    %p43 = scmp.eq.s32.totalorder %s17, 0
    %p44 = por %p42, %p43
    %s46 = sadd.s32 %s45, 1
    %p49 = scmp.eq.s32.totalorder %s11, 1
    %p50 = scmp.ne.s32.totalorder %s45, %s47
    %p51 = scmp.eq.s32.totalorder %s11, 0
    %p52 = por %p50, %p51
    %p53 = scmp.ne.s32.totalorder %s45, %s47
    %p54 = scmp.eq.s32.totalorder %s16, 1
    %p55 = por %p53, %p54
    %p56 = scmp.ne.s32.totalorder %s47, %s48
    %p57 = scmp.eq.s32.totalorder %s16, 0
    %p58 = por %p56, %p57
    %p59 = scmp.ne.s32.totalorder %s47, %s48
    %p60 = scmp.eq.s32.totalorder %s17, 1
    %p61 = por %p59, %p60
    %p63 = scmp.ne.s32.totalorder %s48, %s62
    %p64 = scmp.eq.s32.totalorder %s17, 0
    %p65 = por %p63, %p64
    %s66 = ssub.s32 %s11, %s18
    %p67 = scmp.eq.s32.totalorder %s66, 0
    %s69 = sadd.s32 %s68, 1
    %s70 = scalar_select %p67, %s68, %s69
    %p73 = pneg %p67
    %p74 = scmp.eq.s32.totalorder %s11, 1
    %p75 = por %p73, %p74
    %p76 = scmp.ne.s32.totalorder %s68, %s71
    %p77 = scmp.eq.s32.totalorder %s11, 0
    %p78 = por %p76, %p77
    %p79 = scmp.ne.s32.totalorder %s68, %s71
    %p80 = scmp.eq.s32.totalorder %s16, 1
    %p81 = por %p79, %p80
    %p82 = scmp.ne.s32.totalorder %s71, %s72
    %p83 = scmp.eq.s32.totalorder %s16, 0
    %p84 = por %p82, %p83
    %p85 = scmp.ne.s32.totalorder %s71, %s72
    %p86 = scmp.eq.s32.totalorder %s17, 1
    %p87 = por %p85, %p86
    %p89 = scmp.ne.s32.totalorder %s72, %s88
    %p90 = scmp.eq.s32.totalorder %s17, 0
    %p91 = por %p89, %p90
    %s92 = ssub.s32 %s11, %s18
    %p93 = scmp.eq.s32.totalorder %s92, 0
    %s95 = sadd.s32 %s94, 1
    %s96 = scalar_select %p93, %s94, %s95
    %p99 = pneg %p93
    %p100 = scmp.eq.s32.totalorder %s11, 1
    %p101 = por %p99, %p100
    %p102 = scmp.ne.s32.totalorder %s94, %s97
    %p103 = scmp.eq.s32.totalorder %s11, 0
    %p104 = por %p102, %p103
    %p105 = scmp.ne.s32.totalorder %s94, %s97
    %p106 = scmp.eq.s32.totalorder %s16, 1
    %p107 = por %p105, %p106
    %p108 = scmp.ne.s32.totalorder %s97, %s98
    %p109 = scmp.eq.s32.totalorder %s16, 0
    %p110 = por %p108, %p109
    %p111 = scmp.ne.s32.totalorder %s97, %s98
    %p112 = scmp.eq.s32.totalorder %s17, 1
    %p113 = por %p111, %p112
    %p115 = scmp.ne.s32.totalorder %s98, %s114
    %p116 = scmp.eq.s32.totalorder %s17, 0
    %p117 = por %p115, %p116
    %s118 = ssub.s32 %s11, %s18
    %p119 = scmp.eq.s32.totalorder %s118, 0
    %s121 = sadd.s32 %s120, 1
    %s122 = scalar_select %p119, %s120, %s121
    %p125 = pneg %p119
    %p126 = scmp.eq.s32.totalorder %s11, 1
    %p127 = por %p125, %p126
    %p128 = scmp.ne.s32.totalorder %s120, %s123
    %p129 = scmp.eq.s32.totalorder %s11, 0
    %p130 = por %p128, %p129
    %p131 = scmp.ne.s32.totalorder %s120, %s123
    %p132 = scmp.eq.s32.totalorder %s16, 1
    %p133 = por %p131, %p132
    %p134 = scmp.ne.s32.totalorder %s123, %s124
    %p135 = scmp.eq.s32.totalorder %s16, 0
    %p136 = por %p134, %p135
    %p137 = scmp.ne.s32.totalorder %s123, %s124
    %p138 = scmp.eq.s32.totalorder %s17, 1
    %p139 = por %p137, %p138
    %p141 = scmp.ne.s32.totalorder %s124, %s140
    %p142 = scmp.eq.s32.totalorder %s17, 0
    %p143 = por %p141, %p142
    %p144 = scmp.le.s32.totalorder 1, %s11
    %p145 = scmp.lt.s32.totalorder %s11, 3
    %p146 = pnand %p144, %p145
    %p147 = pneg %p146
    // Predicated region
    $region9: #{same_block_2d.2} parent=5 // pred_check
      _
    $region10: #{same_block_2d.2} parent=5 // pred_check_branch
      %149 = sbr.rel (%p146) target = $region12
    $region11: #{same_block_2d.2} parent=5 // pred_region
      %s150 = ssub.s32 %s11, 1
      // Predicated region
      $region13: #{same_block_2d.2} parent=11 // pred_check
        %p151 = pneg %p58
      $region14: #{same_block_2d.2} parent=11 // pred_check_branch
        %153 = sbr.rel (%p151) target = $region16
      $region15: #{same_block_2d.2} parent=11 // pred_region
        _
      $region16: #{same_block_2d.2} parent=11 // pred_fallthru
        _
    $region12: #{same_block_2d.2} parent=5 // pred_fallthru
      _
    %p154 = scmp.lt.s32.totalorder %s11, 2
    // Predicated region
    $region17: #{same_block_2d.2} parent=5 // pred_check
      %p155 = pneg %p154
    $region18: #{same_block_2d.2} parent=5 // pred_check_branch
      %157 = sbr.rel (%p155) target = $region20
    $region19: #{same_block_2d.2} parent=5 // pred_region
      // Predicated region
      $region21: #{same_block_2d.2} parent=19 // pred_check
        %p158 = pneg %p31
      $region22: #{same_block_2d.2} parent=19 // pred_check_branch
        %160 = sbr.rel (%p158) target = $region24
      $region23: #{same_block_2d.2} parent=19 // pred_region
        %p161 = scmp.lt.s32.totalorder %s11, 1
        %s162 = scalar_select %p161, %s11, 1
        %s163 = smul.addr %s162, 43
        %s164 = smul.addr %s163, 4
        %s165 = scalar_lea.vmem %s0, %s164
      $region24: #{same_block_2d.2} parent=19 // pred_fallthru
        _
    $region20: #{same_block_2d.2} parent=5 // pred_fallthru
      _
    %p166 = scmp.le.s32.totalorder 1, %s11
    %p167 = scmp.lt.s32.totalorder %s11, 3
    %p168 = pnand %p166, %p167
    %p169 = pneg %p168
    // Predicated region
    $region25: #{same_block_2d.2} parent=5 // pred_check
      _
    $region26: #{same_block_2d.2} parent=5 // pred_check_branch
      %171 = sbr.rel (%p168) target = $region28
    $region27: #{same_block_2d.2} parent=5 // pred_region
      %s172 = ssub.s32 %s11, 1
      %p173 = scmp.lt.s32.totalorder %s16, 1
      %s174 = scalar_select %p173, %s16, 1
      %s175 = smul.addr %s174, 43
      %s176 = smul.addr %s175, 4
      %s177 = scalar_lea.vmem %s0, %s176
      %p178 = pneg %p37
      %p179 = pneg %p34
      %p180 = pneg %p58
      %p181 = pneg %p55
      %p182 = pneg %p84
      %p183 = pneg %p81
      %p184 = scmp.lt.s32.totalorder %s16, 1
      %s185 = scalar_select %p184, %s16, 1
      %s186 = smul.addr %s185, 36
      %s187 = smul.addr %s186, 8
      %s188 = scalar_lea.vmem %s2, %s187
      %p189 = pneg %p110
      %p190 = pneg %p107
      %p191 = scmp.lt.s32.totalorder %s16, 1
      %s192 = scalar_select %p191, %s16, 1
      %s193 = scalar_lea.vmem %s3, %s192
      %p194 = pneg %p136
      %p195 = pneg %p133
      %p196 = scmp.lt.s32.totalorder %s16, 1
      %s197 = scalar_select %p196, %s16, 1
      %s198 = scalar_lea.vmem %s4, %s197
      %p199 = scmp.lt.s32.totalorder %s16, 1
      %s200 = scalar_select %p199, %s16, 1
      %s201 = smul.addr %s200, 43
      %s202 = smul.addr %s201, 4
      %s203 = scalar_lea.vmem %s0, %s202
      %p204 = scmp.lt.s32.totalorder %s16, 1
      %s205 = scalar_select %p204, %s16, 1
      %s206 = smul.addr %s205, 36
      %s207 = smul.addr %s206, 8
      %s208 = scalar_lea.vmem %s2, %s207
      %p209 = scmp.lt.s32.totalorder %s16, 1
      %s210 = scalar_select %p209, %s16, 1
      %s211 = scalar_lea.vmem %s3, %s210
      %p212 = scmp.lt.s32.totalorder %s16, 1
      %s213 = scalar_select %p212, %s16, 1
      %s214 = scalar_lea.vmem %s4, %s213
      %v216 = vld [vmem:[%s203] sm:$0xf]
      %v217 = vld [vmem:[%s203 + $0x4] sm:$0xf]
      %v218 = vld [vmem:[%s203 + $0x8] sm:$0xf]
      %v219 = vld [vmem:[%s203 + $0xc] sm:$0xf]
      %v220 = vld [vmem:[%s203 + $0x10] sm:$0xf]
      %v221 = vld [vmem:[%s203 + $0x14] sm:$0xf]
      %v222 = vld [vmem:[%s203 + $0x18] sm:$0xf]
      %v223 = vld [vmem:[%s203 + $0x1c] sm:$0xf]
      %v224 = vld [vmem:[%s203 + $0x20] sm:$0xf]
      %v225 = vld [vmem:[%s203 + $0x24] sm:$0xf]
      %v226 = vld [vmem:[%s203 + $0x28] sm:$0xf]
      %v227 = vld [vmem:[%s203 + $0x2c] sm:$0xf]
      %v228 = vld [vmem:[%s203 + $0x30] sm:$0xf]
      %v229 = vld [vmem:[%s203 + $0x34] sm:$0xf]
      %v230 = vld [vmem:[%s203 + $0x38] sm:$0xf]
      %v231 = vld [vmem:[%s203 + $0x3c] sm:$0xf]
      %v232 = vld [vmem:[%s203 + $0x40] sm:$0xf]
      %v233 = vld [vmem:[%s203 + $0x44] sm:$0xf]
      %v234 = vld [vmem:[%s203 + $0x48] sm:$0xf]
      %v235 = vld [vmem:[%s203 + $0x4c] sm:$0xf]
      %v236 = vld [vmem:[%s203 + $0x50] sm:$0xf]
      %v237 = vld [vmem:[%s203 + $0x54] sm:$0xf]
      %v238 = vld [vmem:[%s203 + $0x58] sm:$0xf]
      %v239 = vld [vmem:[%s203 + $0x5c] sm:$0xf]
      %v240 = vld [vmem:[%s203 + $0x60] sm:$0xf]
      %v241 = vld [vmem:[%s203 + $0x64] sm:$0xf]
      %v242 = vld [vmem:[%s203 + $0x68] sm:$0xf]
      %v243 = vld [vmem:[%s203 + $0x6c] sm:$0xf]
      %v244 = vld [vmem:[%s203 + $0x70] sm:$0xf]
      %v245 = vld [vmem:[%s203 + $0x74] sm:$0xf]
      %v246 = vld [vmem:[%s203 + $0x78] sm:$0xf]
      %v247 = vld [vmem:[%s203 + $0x7c] sm:$0xf]
      %v248 = vld [vmem:[%s203 + $0x80] sm:$0xf]
      %v249 = vld [vmem:[%s203 + $0x84] sm:$0xf]
      %v250 = vld [vmem:[%s203 + $0x88] sm:$0xf]
      %v251 = vld [vmem:[%s203 + $0x8c] sm:$0xf]
      %v252 = vld [vmem:[%s1] sm:$0x3]
      %v253 = vld [vmem:[%s203 + $0x90] sm:$0x1]
      %s254 = scalar_lea.vmem %s1, 2
      %v255 = vld [vmem:[%s254] sm:$0x3]
      %v293 = vunpack.c.l.b16 %v216
      %v294 = vunpack.c.l.b16 %v217
      %v295 = vunpack.c.l.b16 %v218
      %v296 = vunpack.c.l.b16 %v219
      %v297 = vunpack.c.l.b16 %v220
      %v298 = vunpack.c.l.b16 %v221
      %v299 = vunpack.c.l.b16 %v222
      %v300 = vunpack.c.l.b16 %v223
      %v301 = vunpack.c.l.b16 %v224
      %v302 = vunpack.c.l.b16 %v225
      %v303 = vunpack.c.l.b16 %v226
      %v304 = vunpack.c.l.b16 %v227
      %v305 = vunpack.c.l.b16 %v228
      %v306 = vunpack.c.l.b16 %v229
      %v307 = vunpack.c.l.b16 %v230
      %v308 = vunpack.c.l.b16 %v231
      %v309 = vunpack.c.l.b16 %v232
      %v310 = vunpack.c.l.b16 %v233
      %v311 = vunpack.c.l.b16 %v234
      %v312 = vunpack.c.l.b16 %v235
      %v313 = vunpack.c.l.b16 %v236
      %v314 = vunpack.c.l.b16 %v237
      %v315 = vunpack.c.l.b16 %v238
      %v316 = vunpack.c.l.b16 %v239
      %v317 = vunpack.c.l.b16 %v240
      %v318 = vunpack.c.l.b16 %v241
      %v319 = vunpack.c.l.b16 %v242
      %v320 = vunpack.c.l.b16 %v243
      %v321 = vunpack.c.l.b16 %v244
      %v322 = vunpack.c.l.b16 %v245
      %v323 = vunpack.c.l.b16 %v246
      %v324 = vunpack.c.l.b16 %v247
      %v325 = vunpack.c.l.b16 %v248
      %v326 = vunpack.c.l.b16 %v249
      %v327 = vunpack.c.l.b16 %v250
      %v328 = vunpack.c.l.b16 %v251
      %v329 = vunpack.c.l.b16 %v253
      %v330 = vpack.c.b16 %v294, %v293
      %v331 = vpack.c.b16 %v296, %v295
      %v332 = vpack.c.b16 %v298, %v297
      %v333 = vpack.c.b16 %v300, %v299
      %v334 = vpack.c.b16 %v302, %v301
      %v335 = vpack.c.b16 %v304, %v303
      %v336 = vpack.c.b16 %v306, %v305
      %v337 = vpack.c.b16 %v308, %v307
      %v338 = vpack.c.b16 %v310, %v309
      %v339 = vpack.c.b16 %v312, %v311
      %v340 = vpack.c.b16 %v314, %v313
      %v341 = vpack.c.b16 %v316, %v315
      %v342 = vpack.c.b16 %v318, %v317
      %v343 = vpack.c.b16 %v320, %v319
      %v344 = vpack.c.b16 %v322, %v321
      %v345 = vpack.c.b16 %v324, %v323
      %v346 = vpack.c.b16 %v326, %v325
      %v347 = vpack.c.b16 %v328, %v327
      %v348 = vpack.c.b16 %v329, %v329
      %vm349 = vsmask.f32 7424
      %v351 = vshrl.u32 %v330, 16
      %v353 = vshll.u32 %v330, 16
      %v355 = vrot.slane %v353, 1
      %v356 = vor.u32 %v351, %v355
      %v358 = vshll.u32 %v331, 16
      %v360 = vrot.slane %v358, 1
      %v361 = vsel %vm349, %v356, %v360
      %v362 = vshrl.u32 %v331, 16
      %v364 = vor.u32 %v362, %v360
      %v366 = vshll.u32 %v332, 16
      %v368 = vrot.slane %v366, 1
      %v369 = vsel %vm349, %v364, %v368
      %v370 = vshrl.u32 %v332, 16
      %v372 = vor.u32 %v370, %v368
      %v374 = vshll.u32 %v333, 16
      %v376 = vrot.slane %v374, 1
      %v377 = vsel %vm349, %v372, %v376
      %v378 = vshrl.u32 %v333, 16
      %v380 = vor.u32 %v378, %v376
      %v382 = vshll.u32 %v334, 16
      %v384 = vrot.slane %v382, 1
      %v385 = vsel %vm349, %v380, %v384
      %v386 = vshrl.u32 %v334, 16
      %v388 = vor.u32 %v386, %v384
      %v390 = vshll.u32 %v335, 16
      %v392 = vrot.slane %v390, 1
      %v393 = vsel %vm349, %v388, %v392
      %v394 = vshrl.u32 %v335, 16
      %v396 = vor.u32 %v394, %v392
      %v398 = vshll.u32 %v336, 16
      %v400 = vrot.slane %v398, 1
      %v401 = vsel %vm349, %v396, %v400
      %v402 = vshrl.u32 %v336, 16
      %v404 = vor.u32 %v402, %v400
      %v406 = vshll.u32 %v337, 16
      %v408 = vrot.slane %v406, 1
      %v409 = vsel %vm349, %v404, %v408
      %v410 = vshrl.u32 %v337, 16
      %v412 = vor.u32 %v410, %v408
      %v414 = vshll.u32 %v338, 16
      %v416 = vrot.slane %v414, 1
      %v417 = vsel %vm349, %v412, %v416
      %v418 = vshrl.u32 %v338, 16
      %v420 = vor.u32 %v418, %v416
      %v422 = vshll.u32 %v339, 16
      %v424 = vrot.slane %v422, 1
      %v425 = vsel %vm349, %v420, %v424
      %v426 = vshrl.u32 %v339, 16
      %v428 = vor.u32 %v426, %v424
      %v430 = vshll.u32 %v340, 16
      %v432 = vrot.slane %v430, 1
      %v433 = vsel %vm349, %v428, %v432
      %v434 = vshrl.u32 %v340, 16
      %v436 = vor.u32 %v434, %v432
      %v438 = vshll.u32 %v341, 16
      %v440 = vrot.slane %v438, 1
      %v441 = vsel %vm349, %v436, %v440
      %v442 = vshrl.u32 %v341, 16
      %v444 = vor.u32 %v442, %v440
      %v446 = vshll.u32 %v342, 16
      %v448 = vrot.slane %v446, 1
      %v449 = vsel %vm349, %v444, %v448
      %v450 = vshrl.u32 %v342, 16
      %v452 = vor.u32 %v450, %v448
      %v454 = vshll.u32 %v343, 16
      %v456 = vrot.slane %v454, 1
      %v457 = vsel %vm349, %v452, %v456
      %v458 = vshrl.u32 %v343, 16
      %v460 = vor.u32 %v458, %v456
      %v462 = vshll.u32 %v344, 16
      %v464 = vrot.slane %v462, 1
      %v465 = vsel %vm349, %v460, %v464
      %v466 = vshrl.u32 %v344, 16
      %v468 = vor.u32 %v466, %v464
      %v470 = vshll.u32 %v345, 16
      %v472 = vrot.slane %v470, 1
      %v473 = vsel %vm349, %v468, %v472
      %v474 = vshrl.u32 %v345, 16
      %v476 = vor.u32 %v474, %v472
      %v478 = vshll.u32 %v346, 16
      %v480 = vrot.slane %v478, 1
      %v481 = vsel %vm349, %v476, %v480
      %v482 = vshrl.u32 %v346, 16
      %v484 = vor.u32 %v482, %v480
      %v486 = vshll.u32 %v347, 16
      %v488 = vrot.slane %v486, 1
      %v489 = vsel %vm349, %v484, %v488
      %v490 = vshrl.u32 %v347, 16
      %v492 = vor.u32 %v490, %v488
      %v494 = vshll.u32 %v348, 16
      %v496 = vrot.slane %v494, 1
      %v497 = vsel %vm349, %v492, %v496
      %vm498 = vcmask 31744
      %v500 = vsel %vm498, %v361, 0
      %v503 = vsel %vm498, %v369, 0
      %v506 = vsel %vm498, %v377, 0
      %v509 = vsel %vm498, %v385, 0
      %v512 = vsel %vm498, %v393, 0
      %v515 = vsel %vm498, %v401, 0
      %v518 = vsel %vm498, %v409, 0
      %v521 = vsel %vm498, %v417, 0
      %v524 = vsel %vm498, %v425, 0
      %v527 = vsel %vm498, %v433, 0
      %v530 = vsel %vm498, %v441, 0
      %v533 = vsel %vm498, %v449, 0
      %v536 = vsel %vm498, %v457, 0
      %v539 = vsel %vm498, %v465, 0
      %v542 = vsel %vm498, %v473, 0
      %v545 = vsel %vm498, %v481, 0
      %v548 = vsel %vm498, %v489, 0
      %v551 = vsel %vm498, %v497, 0
      %vm553 = vcmask 1041408
      %v555 = vsel %vm553, %v255, 0
      %557 = vmatpush.bf16.msra.mxu0 0
      %558 = vmatpush.bf16.msra.mxu0 0
      %559 = vmatpush.bf16.msra.mxu0 0
      %560 = vmatpush.bf16.msra.mxu0 0
      %561 = vmatpush.bf16.msra.mxu0 0
      %562 = vmatpush.bf16.msra.mxu0 0
      %563 = vmatpush.bf16.msra.mxu0 0
      %564 = vmatpush.bf16.msra.mxu0 %v555
      %565 = vmatmul.bf16.gmra.mxu0 %v500
      %v566 = vpop.f32.mrf.mxu0
      %v567 = vadd.f32 0.0, %v566
      %v568 = vpop.f32.mrf.mxu0
      %v569 = vadd.f32 0.0, %v568
      %570 = vmatmul.bf16.gmra.mxu0 %v503
      %v571 = vpop.f32.mrf.mxu0
      %v572 = vadd.f32 0.0, %v571
      %v573 = vpop.f32.mrf.mxu0
      %v574 = vadd.f32 0.0, %v573
      %575 = vmatmul.bf16.gmra.mxu0 %v506
      %v576 = vpop.f32.mrf.mxu0
      %v577 = vadd.f32 0.0, %v576
      %v578 = vpop.f32.mrf.mxu0
      %v579 = vadd.f32 0.0, %v578
      %580 = vmatmul.bf16.gmra.mxu0 %v509
      %v581 = vpop.f32.mrf.mxu0
      %v582 = vadd.f32 0.0, %v581
      %v583 = vpop.f32.mrf.mxu0
      %v584 = vadd.f32 0.0, %v583
      %585 = vmatmul.bf16.gmra.mxu0 %v512
      %v586 = vpop.f32.mrf.mxu0
      %v587 = vadd.f32 0.0, %v586
      %v588 = vpop.f32.mrf.mxu0
      %v589 = vadd.f32 0.0, %v588
      %590 = vmatmul.bf16.gmra.mxu0 %v515
      %v591 = vpop.f32.mrf.mxu0
      %v592 = vadd.f32 0.0, %v591
      %v593 = vpop.f32.mrf.mxu0
      %v594 = vadd.f32 0.0, %v593
      %595 = vmatmul.bf16.gmra.mxu0 %v518
      %v596 = vpop.f32.mrf.mxu0
      %v597 = vadd.f32 0.0, %v596
      %v598 = vpop.f32.mrf.mxu0
      %v599 = vadd.f32 0.0, %v598
      %600 = vmatmul.bf16.gmra.mxu0 %v521
      %v601 = vpop.f32.mrf.mxu0
      %v602 = vadd.f32 0.0, %v601
      %v603 = vpop.f32.mrf.mxu0
      %v604 = vadd.f32 0.0, %v603
      %605 = vmatmul.bf16.gmra.mxu0 %v524
      %v606 = vpop.f32.mrf.mxu0
      %v607 = vadd.f32 0.0, %v606
      %v608 = vpop.f32.mrf.mxu0
      %v609 = vadd.f32 0.0, %v608
      %610 = vmatmul.bf16.gmra.mxu0 %v527
      %v611 = vpop.f32.mrf.mxu0
      %v612 = vadd.f32 0.0, %v611
      %v613 = vpop.f32.mrf.mxu0
      %v614 = vadd.f32 0.0, %v613
      %615 = vmatmul.bf16.gmra.mxu0 %v530
      %v616 = vpop.f32.mrf.mxu0
      %v617 = vadd.f32 0.0, %v616
      %v618 = vpop.f32.mrf.mxu0
      %v619 = vadd.f32 0.0, %v618
      %620 = vmatmul.bf16.gmra.mxu0 %v533
      %v621 = vpop.f32.mrf.mxu0
      %v622 = vadd.f32 0.0, %v621
      %v623 = vpop.f32.mrf.mxu0
      %v624 = vadd.f32 0.0, %v623
      %625 = vmatmul.bf16.gmra.mxu0 %v536
      %v626 = vpop.f32.mrf.mxu0
      %v627 = vadd.f32 0.0, %v626
      %v628 = vpop.f32.mrf.mxu0
      %v629 = vadd.f32 0.0, %v628
      %630 = vmatmul.bf16.gmra.mxu0 %v539
      %v631 = vpop.f32.mrf.mxu0
      %v632 = vadd.f32 0.0, %v631
      %v633 = vpop.f32.mrf.mxu0
      %v634 = vadd.f32 0.0, %v633
      %635 = vmatmul.bf16.gmra.mxu0 %v542
      %v636 = vpop.f32.mrf.mxu0
      %v637 = vadd.f32 0.0, %v636
      %v638 = vpop.f32.mrf.mxu0
      %v639 = vadd.f32 0.0, %v638
      %640 = vmatmul.bf16.gmra.mxu0 %v545
      %v641 = vpop.f32.mrf.mxu0
      %v642 = vadd.f32 0.0, %v641
      %v643 = vpop.f32.mrf.mxu0
      %v644 = vadd.f32 0.0, %v643
      %645 = vmatmul.bf16.gmra.mxu0 %v548
      %v646 = vpop.f32.mrf.mxu0
      %v647 = vadd.f32 0.0, %v646
      %v648 = vpop.f32.mrf.mxu0
      %v649 = vadd.f32 0.0, %v648
      %650 = vmatmul.bf16.gmra.mxu0 %v551
      %v651 = vpop.f32.mrf.mxu0
      %v652 = vadd.f32 0.0, %v651
      %v653 = vpop.f32.mrf.mxu0
      %v654 = vadd.f32 0.0, %v653
      %655 = vdwg.mxu0
      %v656 = vsel %vm498, %v330, 0
      %v658 = vsel %vm498, %v331, 0
      %v660 = vsel %vm498, %v332, 0
      %v662 = vsel %vm498, %v333, 0
      %v664 = vsel %vm498, %v334, 0
      %v666 = vsel %vm498, %v335, 0
      %v668 = vsel %vm498, %v336, 0
      %v670 = vsel %vm498, %v337, 0
      %v672 = vsel %vm498, %v338, 0
      %v674 = vsel %vm498, %v339, 0
      %v676 = vsel %vm498, %v340, 0
      %v678 = vsel %vm498, %v341, 0
      %v680 = vsel %vm498, %v342, 0
      %v682 = vsel %vm498, %v343, 0
      %v684 = vsel %vm498, %v344, 0
      %v686 = vsel %vm498, %v345, 0
      %v688 = vsel %vm498, %v346, 0
      %v690 = vsel %vm498, %v347, 0
      %v693 = vsel %vm553, %v252, 0
      %695 = vmatpush.bf16.msra.mxu0 0
      %696 = vmatpush.bf16.msra.mxu0 0
      %697 = vmatpush.bf16.msra.mxu0 0
      %698 = vmatpush.bf16.msra.mxu0 0
      %699 = vmatpush.bf16.msra.mxu0 0
      %700 = vmatpush.bf16.msra.mxu0 0
      %701 = vmatpush.bf16.msra.mxu0 0
      %702 = vmatpush.bf16.msra.mxu0 %v693
      %703 = vmatmul.bf16.gmra.mxu0 %v656
      %v704 = vpop.f32.mrf.mxu0
      %v705 = vadd.f32 %v567, %v704
      %v706 = vpop.f32.mrf.mxu0
      %v707 = vadd.f32 %v569, %v706
      %708 = vmatmul.bf16.gmra.mxu0 %v658
      %v709 = vpop.f32.mrf.mxu0
      %v710 = vadd.f32 %v572, %v709
      %v711 = vpop.f32.mrf.mxu0
      %v712 = vadd.f32 %v574, %v711
      %713 = vmatmul.bf16.gmra.mxu0 %v660
      %v714 = vpop.f32.mrf.mxu0
      %v715 = vadd.f32 %v577, %v714
      %v716 = vpop.f32.mrf.mxu0
      %v717 = vadd.f32 %v579, %v716
      %718 = vmatmul.bf16.gmra.mxu0 %v662
      %v719 = vpop.f32.mrf.mxu0
      %v720 = vadd.f32 %v582, %v719
      %v721 = vpop.f32.mrf.mxu0
      %v722 = vadd.f32 %v584, %v721
      %723 = vmatmul.bf16.gmra.mxu0 %v664
      %v724 = vpop.f32.mrf.mxu0
      %v725 = vadd.f32 %v587, %v724
      %v726 = vpop.f32.mrf.mxu0
      %v727 = vadd.f32 %v589, %v726
      %728 = vmatmul.bf16.gmra.mxu0 %v666
      %v729 = vpop.f32.mrf.mxu0
      %v730 = vadd.f32 %v592, %v729
      %v731 = vpop.f32.mrf.mxu0
      %v732 = vadd.f32 %v594, %v731
      %733 = vmatmul.bf16.gmra.mxu0 %v668
      %v734 = vpop.f32.mrf.mxu0
      %v735 = vadd.f32 %v597, %v734
      %v736 = vpop.f32.mrf.mxu0
      %v737 = vadd.f32 %v599, %v736
      %738 = vmatmul.bf16.gmra.mxu0 %v670
      %v739 = vpop.f32.mrf.mxu0
      %v740 = vadd.f32 %v602, %v739
      %v741 = vpop.f32.mrf.mxu0
      %v742 = vadd.f32 %v604, %v741
      %743 = vmatmul.bf16.gmra.mxu0 %v672
      %v744 = vpop.f32.mrf.mxu0
      %v745 = vadd.f32 %v607, %v744
      %v746 = vpop.f32.mrf.mxu0
      %v747 = vadd.f32 %v609, %v746
      %748 = vmatmul.bf16.gmra.mxu0 %v674
      %v749 = vpop.f32.mrf.mxu0
      %v750 = vadd.f32 %v612, %v749
      %v751 = vpop.f32.mrf.mxu0
      %v752 = vadd.f32 %v614, %v751
      %753 = vmatmul.bf16.gmra.mxu0 %v676
      %v754 = vpop.f32.mrf.mxu0
      %v755 = vadd.f32 %v617, %v754
      %v756 = vpop.f32.mrf.mxu0
      %v757 = vadd.f32 %v619, %v756
      %758 = vmatmul.bf16.gmra.mxu0 %v678
      %v759 = vpop.f32.mrf.mxu0
      %v760 = vadd.f32 %v622, %v759
      %v761 = vpop.f32.mrf.mxu0
      %v762 = vadd.f32 %v624, %v761
      %763 = vmatmul.bf16.gmra.mxu0 %v680
      %v764 = vpop.f32.mrf.mxu0
      %v765 = vadd.f32 %v627, %v764
      %v766 = vpop.f32.mrf.mxu0
      %v767 = vadd.f32 %v629, %v766
      %768 = vmatmul.bf16.gmra.mxu0 %v682
      %v769 = vpop.f32.mrf.mxu0
      %v770 = vadd.f32 %v632, %v769
      %v771 = vpop.f32.mrf.mxu0
      %v772 = vadd.f32 %v634, %v771
      %773 = vmatmul.bf16.gmra.mxu0 %v684
      %v774 = vpop.f32.mrf.mxu0
      %v775 = vadd.f32 %v637, %v774
      %v776 = vpop.f32.mrf.mxu0
      %v777 = vadd.f32 %v639, %v776
      %778 = vmatmul.bf16.gmra.mxu0 %v686
      %v779 = vpop.f32.mrf.mxu0
      %v780 = vadd.f32 %v642, %v779
      %v781 = vpop.f32.mrf.mxu0
      %v782 = vadd.f32 %v644, %v781
      %783 = vmatmul.bf16.gmra.mxu0 %v688
      %v784 = vpop.f32.mrf.mxu0
      %v785 = vadd.f32 %v647, %v784
      %v786 = vpop.f32.mrf.mxu0
      %v787 = vadd.f32 %v649, %v786
      %788 = vmatmul.bf16.gmra.mxu0 %v690
      %v789 = vpop.f32.mrf.mxu0
      %v790 = vadd.f32 %v652, %v789
      %v791 = vpop.f32.mrf.mxu0
      %v792 = vadd.f32 %v654, %v791
      %793 = vdwg.mxu0
      %v794 = vld [vmem:[%s203] sm:$0xe]
      %s795 = scalar_lea.vmem %s1, 4
      %v796 = vld [vmem:[%s795] sm:$0x3]
      %v798 = vunpack.c.l.b16 %v794
      %v799 = vpack.c.b16 %v294, %v798
      %vm800 = vcmask 1046528
      %v801 = vrot.slane %v799, 1
      %v802 = vrot.slane %v331, 1
      %v803 = vsel %vm800, %v801, %v802
      %v804 = vrot.slane %v332, 1
      %v805 = vsel %vm800, %v802, %v804
      %v806 = vrot.slane %v333, 1
      %v807 = vsel %vm800, %v804, %v806
      %v808 = vrot.slane %v334, 1
      %v809 = vsel %vm800, %v806, %v808
      %v810 = vrot.slane %v335, 1
      %v811 = vsel %vm800, %v808, %v810
      %v812 = vrot.slane %v336, 1
      %v813 = vsel %vm800, %v810, %v812
      %v814 = vrot.slane %v337, 1
      %v815 = vsel %vm800, %v812, %v814
      %v816 = vrot.slane %v338, 1
      %v817 = vsel %vm800, %v814, %v816
      %v818 = vrot.slane %v339, 1
      %v819 = vsel %vm800, %v816, %v818
      %v820 = vrot.slane %v340, 1
      %v821 = vsel %vm800, %v818, %v820
      %v822 = vrot.slane %v341, 1
      %v823 = vsel %vm800, %v820, %v822
      %v824 = vrot.slane %v342, 1
      %v825 = vsel %vm800, %v822, %v824
      %v826 = vrot.slane %v343, 1
      %v827 = vsel %vm800, %v824, %v826
      %v828 = vrot.slane %v344, 1
      %v829 = vsel %vm800, %v826, %v828
      %v830 = vrot.slane %v345, 1
      %v831 = vsel %vm800, %v828, %v830
      %v832 = vrot.slane %v346, 1
      %v833 = vsel %vm800, %v830, %v832
      %v834 = vrot.slane %v347, 1
      %v835 = vsel %vm800, %v832, %v834
      %v836 = vrot.slane %v348, 1
      %v837 = vsel %vm800, %v834, %v836
      %v839 = vsel %vm498, %v803, 0
      %v842 = vsel %vm498, %v805, 0
      %v845 = vsel %vm498, %v807, 0
      %v848 = vsel %vm498, %v809, 0
      %v851 = vsel %vm498, %v811, 0
      %v854 = vsel %vm498, %v813, 0
      %v857 = vsel %vm498, %v815, 0
      %v860 = vsel %vm498, %v817, 0
      %v863 = vsel %vm498, %v819, 0
      %v866 = vsel %vm498, %v821, 0
      %v869 = vsel %vm498, %v823, 0
      %v872 = vsel %vm498, %v825, 0
      %v875 = vsel %vm498, %v827, 0
      %v878 = vsel %vm498, %v829, 0
      %v881 = vsel %vm498, %v831, 0
      %v884 = vsel %vm498, %v833, 0
      %v887 = vsel %vm498, %v835, 0
      %v890 = vsel %vm498, %v837, 0
      %v893 = vsel %vm553, %v796, 0
      %895 = vmatpush.bf16.msra.mxu0 0
      %896 = vmatpush.bf16.msra.mxu0 0
      %897 = vmatpush.bf16.msra.mxu0 0
      %898 = vmatpush.bf16.msra.mxu0 0
      %899 = vmatpush.bf16.msra.mxu0 0
      %900 = vmatpush.bf16.msra.mxu0 0
      %901 = vmatpush.bf16.msra.mxu0 0
      %902 = vmatpush.bf16.msra.mxu0 %v893
      %903 = vmatmul.bf16.gmra.mxu0 %v839
      %v904 = vpop.f32.mrf.mxu0
      %v905 = vadd.f32 0.0, %v904
      %v906 = vpop.f32.mrf.mxu0
      %v907 = vadd.f32 0.0, %v906
      %908 = vmatmul.bf16.gmra.mxu0 %v842
      %v909 = vpop.f32.mrf.mxu0
      %v910 = vadd.f32 0.0, %v909
      %v911 = vpop.f32.mrf.mxu0
      %v912 = vadd.f32 0.0, %v911
      %913 = vmatmul.bf16.gmra.mxu0 %v845
      %v914 = vpop.f32.mrf.mxu0
      %v915 = vadd.f32 0.0, %v914
      %v916 = vpop.f32.mrf.mxu0
      %v917 = vadd.f32 0.0, %v916
      %918 = vmatmul.bf16.gmra.mxu0 %v848
      %v919 = vpop.f32.mrf.mxu0
      %v920 = vadd.f32 0.0, %v919
      %v921 = vpop.f32.mrf.mxu0
      %v922 = vadd.f32 0.0, %v921
      %923 = vmatmul.bf16.gmra.mxu0 %v851
      %v924 = vpop.f32.mrf.mxu0
      %v925 = vadd.f32 0.0, %v924
      %v926 = vpop.f32.mrf.mxu0
      %v927 = vadd.f32 0.0, %v926
      %928 = vmatmul.bf16.gmra.mxu0 %v854
      %v929 = vpop.f32.mrf.mxu0
      %v930 = vadd.f32 0.0, %v929
      %v931 = vpop.f32.mrf.mxu0
      %v932 = vadd.f32 0.0, %v931
      %933 = vmatmul.bf16.gmra.mxu0 %v857
      %v934 = vpop.f32.mrf.mxu0
      %v935 = vadd.f32 0.0, %v934
      %v936 = vpop.f32.mrf.mxu0
      %v937 = vadd.f32 0.0, %v936
      %938 = vmatmul.bf16.gmra.mxu0 %v860
      %v939 = vpop.f32.mrf.mxu0
      %v940 = vadd.f32 0.0, %v939
      %v941 = vpop.f32.mrf.mxu0
      %v942 = vadd.f32 0.0, %v941
      %943 = vmatmul.bf16.gmra.mxu0 %v863
      %v944 = vpop.f32.mrf.mxu0
      %v945 = vadd.f32 0.0, %v944
      %v946 = vpop.f32.mrf.mxu0
      %v947 = vadd.f32 0.0, %v946
      %948 = vmatmul.bf16.gmra.mxu0 %v866
      %v949 = vpop.f32.mrf.mxu0
      %v950 = vadd.f32 0.0, %v949
      %v951 = vpop.f32.mrf.mxu0
      %v952 = vadd.f32 0.0, %v951
      %953 = vmatmul.bf16.gmra.mxu0 %v869
      %v954 = vpop.f32.mrf.mxu0
      %v955 = vadd.f32 0.0, %v954
      %v956 = vpop.f32.mrf.mxu0
      %v957 = vadd.f32 0.0, %v956
      %958 = vmatmul.bf16.gmra.mxu0 %v872
      %v959 = vpop.f32.mrf.mxu0
      %v960 = vadd.f32 0.0, %v959
      %v961 = vpop.f32.mrf.mxu0
      %v962 = vadd.f32 0.0, %v961
      %963 = vmatmul.bf16.gmra.mxu0 %v875
      %v964 = vpop.f32.mrf.mxu0
      %v965 = vadd.f32 0.0, %v964
      %v966 = vpop.f32.mrf.mxu0
      %v967 = vadd.f32 0.0, %v966
      %968 = vmatmul.bf16.gmra.mxu0 %v878
      %v969 = vpop.f32.mrf.mxu0
      %v970 = vadd.f32 0.0, %v969
      %v971 = vpop.f32.mrf.mxu0
      %v972 = vadd.f32 0.0, %v971
      %973 = vmatmul.bf16.gmra.mxu0 %v881
      %v974 = vpop.f32.mrf.mxu0
      %v975 = vadd.f32 0.0, %v974
      %v976 = vpop.f32.mrf.mxu0
      %v977 = vadd.f32 0.0, %v976
      %978 = vmatmul.bf16.gmra.mxu0 %v884
      %v979 = vpop.f32.mrf.mxu0
      %v980 = vadd.f32 0.0, %v979
      %v981 = vpop.f32.mrf.mxu0
      %v982 = vadd.f32 0.0, %v981
      %983 = vmatmul.bf16.gmra.mxu0 %v887
      %v984 = vpop.f32.mrf.mxu0
      %v985 = vadd.f32 0.0, %v984
      %v986 = vpop.f32.mrf.mxu0
      %v987 = vadd.f32 0.0, %v986
      %988 = vmatmul.bf16.gmra.mxu0 %v890
      %v989 = vpop.f32.mrf.mxu0
      %v990 = vadd.f32 0.0, %v989
      %v991 = vpop.f32.mrf.mxu0
      %v992 = vadd.f32 0.0, %v991
      %993 = vdwg.mxu0
      %v994 = vadd.f32 %v705, %v905
      %v995 = vadd.f32 %v707, %v907
      %v996 = vadd.f32 %v710, %v910
      %v997 = vadd.f32 %v712, %v912
      %v998 = vadd.f32 %v715, %v915
      %v999 = vadd.f32 %v717, %v917
      %v1000 = vadd.f32 %v720, %v920
      %v1001 = vadd.f32 %v722, %v922
      %v1002 = vadd.f32 %v725, %v925
      %v1003 = vadd.f32 %v727, %v927
      %v1004 = vadd.f32 %v730, %v930
      %v1005 = vadd.f32 %v732, %v932
      %v1006 = vadd.f32 %v735, %v935
      %v1007 = vadd.f32 %v737, %v937
      %v1008 = vadd.f32 %v740, %v940
      %v1009 = vadd.f32 %v742, %v942
      %v1010 = vadd.f32 %v745, %v945
      %v1011 = vadd.f32 %v747, %v947
      %v1012 = vadd.f32 %v750, %v950
      %v1013 = vadd.f32 %v752, %v952
      %v1014 = vadd.f32 %v755, %v955
      %v1015 = vadd.f32 %v757, %v957
      %v1016 = vadd.f32 %v760, %v960
      %v1017 = vadd.f32 %v762, %v962
      %v1018 = vadd.f32 %v765, %v965
      %v1019 = vadd.f32 %v767, %v967
      %v1020 = vadd.f32 %v770, %v970
      %v1021 = vadd.f32 %v772, %v972
      %v1022 = vadd.f32 %v775, %v975
      %v1023 = vadd.f32 %v777, %v977
      %v1024 = vadd.f32 %v780, %v980
      %v1025 = vadd.f32 %v782, %v982
      %v1026 = vadd.f32 %v785, %v985
      %v1027 = vadd.f32 %v787, %v987
      %v1028 = vadd.f32 %v790, %v990
      %v1029 = vadd.f32 %v792, %v992
      %v1030 = vld [vmem:[%s203 + $0x8] sm:$0xe]
      %v1031 = vld [vmem:[%s203 + $0xc] sm:$0xf]
      %v1032 = vld [vmem:[%s203 + $0x10] sm:$0xf]
      %v1033 = vld [vmem:[%s203 + $0x14] sm:$0xf]
      %v1034 = vld [vmem:[%s203 + $0x18] sm:$0xf]
      %v1035 = vld [vmem:[%s203 + $0x1c] sm:$0xf]
      %v1036 = vld [vmem:[%s203 + $0x20] sm:$0xf]
      %v1037 = vld [vmem:[%s203 + $0x24] sm:$0xf]
      %v1038 = vld [vmem:[%s203 + $0x28] sm:$0xf]
      %v1039 = vld [vmem:[%s203 + $0x2c] sm:$0xf]
      %v1040 = vld [vmem:[%s203 + $0x30] sm:$0xf]
      %v1041 = vld [vmem:[%s203 + $0x34] sm:$0xf]
      %v1042 = vld [vmem:[%s203 + $0x38] sm:$0xf]
      %v1043 = vld [vmem:[%s203 + $0x3c] sm:$0xf]
      %v1044 = vld [vmem:[%s203 + $0x40] sm:$0xf]
      %v1045 = vld [vmem:[%s203 + $0x44] sm:$0xf]
      %v1046 = vld [vmem:[%s203 + $0x48] sm:$0xf]
      %v1047 = vld [vmem:[%s203 + $0x4c] sm:$0xf]
      %v1048 = vld [vmem:[%s203 + $0x50] sm:$0xf]
      %v1049 = vld [vmem:[%s203 + $0x54] sm:$0xf]
      %v1050 = vld [vmem:[%s203 + $0x58] sm:$0xf]
      %v1051 = vld [vmem:[%s203 + $0x5c] sm:$0xf]
      %v1052 = vld [vmem:[%s203 + $0x60] sm:$0xf]
      %v1053 = vld [vmem:[%s203 + $0x64] sm:$0xf]
      %v1054 = vld [vmem:[%s203 + $0x68] sm:$0xf]
      %v1055 = vld [vmem:[%s203 + $0x6c] sm:$0xf]
      %v1056 = vld [vmem:[%s203 + $0x70] sm:$0xf]
      %v1057 = vld [vmem:[%s203 + $0x74] sm:$0xf]
      %v1058 = vld [vmem:[%s203 + $0x78] sm:$0xf]
      %v1059 = vld [vmem:[%s203 + $0x7c] sm:$0xf]
      %v1060 = vld [vmem:[%s203 + $0x80] sm:$0xf]
      %v1061 = vld [vmem:[%s203 + $0x84] sm:$0xf]
      %v1062 = vld [vmem:[%s203 + $0x88] sm:$0xf]
      %v1063 = vld [vmem:[%s203 + $0x8c] sm:$0xf]
      %v1064 = vld [vmem:[%s203 + $0x90] sm:$0xf]
      %v1065 = vld [vmem:[%s203 + $0x94] sm:$0xf]
      %v1066 = vld [vmem:[%s203 + $0x98] sm:$0x1]
      %s1067 = scalar_lea.vmem %s1, 6
      %v1068 = vld [vmem:[%s1067] sm:$0x3]
      %v1106 = vunpack.c.l.b16 %v1030
      %v1107 = vunpack.c.l.b16 %v1031
      %v1108 = vunpack.c.l.b16 %v1032
      %v1109 = vunpack.c.l.b16 %v1033
      %v1110 = vunpack.c.l.b16 %v1034
      %v1111 = vunpack.c.l.b16 %v1035
      %v1112 = vunpack.c.l.b16 %v1036
      %v1113 = vunpack.c.l.b16 %v1037
      %v1114 = vunpack.c.l.b16 %v1038
      %v1115 = vunpack.c.l.b16 %v1039
      %v1116 = vunpack.c.l.b16 %v1040
      %v1117 = vunpack.c.l.b16 %v1041
      %v1118 = vunpack.c.l.b16 %v1042
      %v1119 = vunpack.c.l.b16 %v1043
      %v1120 = vunpack.c.l.b16 %v1044
      %v1121 = vunpack.c.l.b16 %v1045
      %v1122 = vunpack.c.l.b16 %v1046
      %v1123 = vunpack.c.l.b16 %v1047
      %v1124 = vunpack.c.l.b16 %v1048
      %v1125 = vunpack.c.l.b16 %v1049
      %v1126 = vunpack.c.l.b16 %v1050
      %v1127 = vunpack.c.l.b16 %v1051
      %v1128 = vunpack.c.l.b16 %v1052
      %v1129 = vunpack.c.l.b16 %v1053
      %v1130 = vunpack.c.l.b16 %v1054
      %v1131 = vunpack.c.l.b16 %v1055
      %v1132 = vunpack.c.l.b16 %v1056
      %v1133 = vunpack.c.l.b16 %v1057
      %v1134 = vunpack.c.l.b16 %v1058
      %v1135 = vunpack.c.l.b16 %v1059
      %v1136 = vunpack.c.l.b16 %v1060
      %v1137 = vunpack.c.l.b16 %v1061
      %v1138 = vunpack.c.l.b16 %v1062
      %v1139 = vunpack.c.l.b16 %v1063
      %v1140 = vunpack.c.l.b16 %v1064
      %v1141 = vunpack.c.l.b16 %v1065
      %v1142 = vunpack.c.l.b16 %v1066
      %v1143 = vpack.c.b16 %v1107, %v1106
      %v1144 = vpack.c.b16 %v1109, %v1108
      %v1145 = vpack.c.b16 %v1111, %v1110
      %v1146 = vpack.c.b16 %v1113, %v1112
      %v1147 = vpack.c.b16 %v1115, %v1114
      %v1148 = vpack.c.b16 %v1117, %v1116
      %v1149 = vpack.c.b16 %v1119, %v1118
      %v1150 = vpack.c.b16 %v1121, %v1120
      %v1151 = vpack.c.b16 %v1123, %v1122
      %v1152 = vpack.c.b16 %v1125, %v1124
      %v1153 = vpack.c.b16 %v1127, %v1126
      %v1154 = vpack.c.b16 %v1129, %v1128
      %v1155 = vpack.c.b16 %v1131, %v1130
      %v1156 = vpack.c.b16 %v1133, %v1132
      %v1157 = vpack.c.b16 %v1135, %v1134
      %v1158 = vpack.c.b16 %v1137, %v1136
      %v1159 = vpack.c.b16 %v1139, %v1138
      %v1160 = vpack.c.b16 %v1141, %v1140
      %v1161 = vpack.c.b16 %v1142, %v1142
      %v1162 = vrot.slane %v1143, 1
      %v1163 = vrot.slane %v1144, 1
      %v1164 = vsel %vm800, %v1162, %v1163
      %v1165 = vrot.slane %v1145, 1
      %v1166 = vsel %vm800, %v1163, %v1165
      %v1167 = vrot.slane %v1146, 1
      %v1168 = vsel %vm800, %v1165, %v1167
      %v1169 = vrot.slane %v1147, 1
      %v1170 = vsel %vm800, %v1167, %v1169
      %v1171 = vrot.slane %v1148, 1
      %v1172 = vsel %vm800, %v1169, %v1171
      %v1173 = vrot.slane %v1149, 1
      %v1174 = vsel %vm800, %v1171, %v1173
      %v1175 = vrot.slane %v1150, 1
      %v1176 = vsel %vm800, %v1173, %v1175
      %v1177 = vrot.slane %v1151, 1
      %v1178 = vsel %vm800, %v1175, %v1177
      %v1179 = vrot.slane %v1152, 1
      %v1180 = vsel %vm800, %v1177, %v1179
      %v1181 = vrot.slane %v1153, 1
      %v1182 = vsel %vm800, %v1179, %v1181
      %v1183 = vrot.slane %v1154, 1
      %v1184 = vsel %vm800, %v1181, %v1183
      %v1185 = vrot.slane %v1155, 1
      %v1186 = vsel %vm800, %v1183, %v1185
      %v1187 = vrot.slane %v1156, 1
      %v1188 = vsel %vm800, %v1185, %v1187
      %v1189 = vrot.slane %v1157, 1
      %v1190 = vsel %vm800, %v1187, %v1189
      %v1191 = vrot.slane %v1158, 1
      %v1192 = vsel %vm800, %v1189, %v1191
      %v1193 = vrot.slane %v1159, 1
      %v1194 = vsel %vm800, %v1191, %v1193
      %v1195 = vrot.slane %v1160, 1
      %v1196 = vsel %vm800, %v1193, %v1195
      %v1197 = vrot.slane %v1161, 1
      %v1198 = vsel %vm800, %v1195, %v1197
      %v1200 = vsel %vm498, %v1164, 0
      %v1203 = vsel %vm498, %v1166, 0
      %v1206 = vsel %vm498, %v1168, 0
      %v1209 = vsel %vm498, %v1170, 0
      %v1212 = vsel %vm498, %v1172, 0
      %v1215 = vsel %vm498, %v1174, 0
      %v1218 = vsel %vm498, %v1176, 0
      %v1221 = vsel %vm498, %v1178, 0
      %v1224 = vsel %vm498, %v1180, 0
      %v1227 = vsel %vm498, %v1182, 0
      %v1230 = vsel %vm498, %v1184, 0
      %v1233 = vsel %vm498, %v1186, 0
      %v1236 = vsel %vm498, %v1188, 0
      %v1239 = vsel %vm498, %v1190, 0
      %v1242 = vsel %vm498, %v1192, 0
      %v1245 = vsel %vm498, %v1194, 0
      %v1248 = vsel %vm498, %v1196, 0
      %v1251 = vsel %vm498, %v1198, 0
      %v1254 = vsel %vm553, %v1068, 0
      %1256 = vmatpush.bf16.msra.mxu0 0
      %1257 = vmatpush.bf16.msra.mxu0 0
      %1258 = vmatpush.bf16.msra.mxu0 0
      %1259 = vmatpush.bf16.msra.mxu0 0
      %1260 = vmatpush.bf16.msra.mxu0 0
      %1261 = vmatpush.bf16.msra.mxu0 0
      %1262 = vmatpush.bf16.msra.mxu0 0
      %1263 = vmatpush.bf16.msra.mxu0 %v1254
      %1264 = vmatmul.bf16.gmra.mxu0 %v1200
      %v1265 = vpop.f32.mrf.mxu0
      %v1266 = vadd.f32 0.0, %v1265
      %v1267 = vpop.f32.mrf.mxu0
      %v1268 = vadd.f32 0.0, %v1267
      %1269 = vmatmul.bf16.gmra.mxu0 %v1203
      %v1270 = vpop.f32.mrf.mxu0
      %v1271 = vadd.f32 0.0, %v1270
      %v1272 = vpop.f32.mrf.mxu0
      %v1273 = vadd.f32 0.0, %v1272
      %1274 = vmatmul.bf16.gmra.mxu0 %v1206
      %v1275 = vpop.f32.mrf.mxu0
      %v1276 = vadd.f32 0.0, %v1275
      %v1277 = vpop.f32.mrf.mxu0
      %v1278 = vadd.f32 0.0, %v1277
      %1279 = vmatmul.bf16.gmra.mxu0 %v1209
      %v1280 = vpop.f32.mrf.mxu0
      %v1281 = vadd.f32 0.0, %v1280
      %v1282 = vpop.f32.mrf.mxu0
      %v1283 = vadd.f32 0.0, %v1282
      %1284 = vmatmul.bf16.gmra.mxu0 %v1212
      %v1285 = vpop.f32.mrf.mxu0
      %v1286 = vadd.f32 0.0, %v1285
      %v1287 = vpop.f32.mrf.mxu0
      %v1288 = vadd.f32 0.0, %v1287
      %1289 = vmatmul.bf16.gmra.mxu0 %v1215
      %v1290 = vpop.f32.mrf.mxu0
      %v1291 = vadd.f32 0.0, %v1290
      %v1292 = vpop.f32.mrf.mxu0
      %v1293 = vadd.f32 0.0, %v1292
      %1294 = vmatmul.bf16.gmra.mxu0 %v1218
      %v1295 = vpop.f32.mrf.mxu0
      %v1296 = vadd.f32 0.0, %v1295
      %v1297 = vpop.f32.mrf.mxu0
      %v1298 = vadd.f32 0.0, %v1297
      %1299 = vmatmul.bf16.gmra.mxu0 %v1221
      %v1300 = vpop.f32.mrf.mxu0
      %v1301 = vadd.f32 0.0, %v1300
      %v1302 = vpop.f32.mrf.mxu0
      %v1303 = vadd.f32 0.0, %v1302
      %1304 = vmatmul.bf16.gmra.mxu0 %v1224
      %v1305 = vpop.f32.mrf.mxu0
      %v1306 = vadd.f32 0.0, %v1305
      %v1307 = vpop.f32.mrf.mxu0
      %v1308 = vadd.f32 0.0, %v1307
      %1309 = vmatmul.bf16.gmra.mxu0 %v1227
      %v1310 = vpop.f32.mrf.mxu0
      %v1311 = vadd.f32 0.0, %v1310
      %v1312 = vpop.f32.mrf.mxu0
      %v1313 = vadd.f32 0.0, %v1312
      %1314 = vmatmul.bf16.gmra.mxu0 %v1230
      %v1315 = vpop.f32.mrf.mxu0
      %v1316 = vadd.f32 0.0, %v1315
      %v1317 = vpop.f32.mrf.mxu0
      %v1318 = vadd.f32 0.0, %v1317
      %1319 = vmatmul.bf16.gmra.mxu0 %v1233
      %v1320 = vpop.f32.mrf.mxu0
      %v1321 = vadd.f32 0.0, %v1320
      %v1322 = vpop.f32.mrf.mxu0
      %v1323 = vadd.f32 0.0, %v1322
      %1324 = vmatmul.bf16.gmra.mxu0 %v1236
      %v1325 = vpop.f32.mrf.mxu0
      %v1326 = vadd.f32 0.0, %v1325
      %v1327 = vpop.f32.mrf.mxu0
      %v1328 = vadd.f32 0.0, %v1327
      %1329 = vmatmul.bf16.gmra.mxu0 %v1239
      %v1330 = vpop.f32.mrf.mxu0
      %v1331 = vadd.f32 0.0, %v1330
      %v1332 = vpop.f32.mrf.mxu0
      %v1333 = vadd.f32 0.0, %v1332
      %1334 = vmatmul.bf16.gmra.mxu0 %v1242
      %v1335 = vpop.f32.mrf.mxu0
      %v1336 = vadd.f32 0.0, %v1335
      %v1337 = vpop.f32.mrf.mxu0
      %v1338 = vadd.f32 0.0, %v1337
      %1339 = vmatmul.bf16.gmra.mxu0 %v1245
      %v1340 = vpop.f32.mrf.mxu0
      %v1341 = vadd.f32 0.0, %v1340
      %v1342 = vpop.f32.mrf.mxu0
      %v1343 = vadd.f32 0.0, %v1342
      %1344 = vmatmul.bf16.gmra.mxu0 %v1248
      %v1345 = vpop.f32.mrf.mxu0
      %v1346 = vadd.f32 0.0, %v1345
      %v1347 = vpop.f32.mrf.mxu0
      %v1348 = vadd.f32 0.0, %v1347
      %1349 = vmatmul.bf16.gmra.mxu0 %v1251
      %v1350 = vpop.f32.mrf.mxu0
      %v1351 = vadd.f32 0.0, %v1350
      %v1352 = vpop.f32.mrf.mxu0
      %v1353 = vadd.f32 0.0, %v1352
      %1354 = vdwg.mxu0
      %v1355 = vadd.f32 %v994, %v1266
      %v1356 = vadd.f32 %v995, %v1268
      %v1357 = vadd.f32 %v996, %v1271
      %v1358 = vadd.f32 %v997, %v1273
      %v1359 = vadd.f32 %v998, %v1276
      %v1360 = vadd.f32 %v999, %v1278
      %v1361 = vadd.f32 %v1000, %v1281
      %v1362 = vadd.f32 %v1001, %v1283
      %v1363 = vadd.f32 %v1002, %v1286
      %v1364 = vadd.f32 %v1003, %v1288
      %v1365 = vadd.f32 %v1004, %v1291
      %v1366 = vadd.f32 %v1005, %v1293
      %v1367 = vadd.f32 %v1006, %v1296
      %v1368 = vadd.f32 %v1007, %v1298
      %v1369 = vadd.f32 %v1008, %v1301
      %v1370 = vadd.f32 %v1009, %v1303
      %v1371 = vadd.f32 %v1010, %v1306
      %v1372 = vadd.f32 %v1011, %v1308
      %v1373 = vadd.f32 %v1012, %v1311
      %v1374 = vadd.f32 %v1013, %v1313
      %v1375 = vadd.f32 %v1014, %v1316
      %v1376 = vadd.f32 %v1015, %v1318
      %v1377 = vadd.f32 %v1016, %v1321
      %v1378 = vadd.f32 %v1017, %v1323
      %v1379 = vadd.f32 %v1018, %v1326
      %v1380 = vadd.f32 %v1019, %v1328
      %v1381 = vadd.f32 %v1020, %v1331
      %v1382 = vadd.f32 %v1021, %v1333
      %v1383 = vadd.f32 %v1022, %v1336
      %v1384 = vadd.f32 %v1023, %v1338
      %v1385 = vadd.f32 %v1024, %v1341
      %v1386 = vadd.f32 %v1025, %v1343
      %v1387 = vadd.f32 %v1026, %v1346
      %v1388 = vadd.f32 %v1027, %v1348
      %v1389 = vadd.f32 %v1028, %v1351
      %v1390 = vadd.f32 %v1029, %v1353
      %v1391 = vld [vmem:[%s203 + $0x98] sm:$0x3]
      %s1392 = scalar_lea.vmem %s1, 8
      %v1393 = vld [vmem:[%s1392] sm:$0x3]
      %v1395 = vunpack.c.l.b16 %v1391
      %v1396 = vpack.c.b16 %v1395, %v1395
      %vm1397 = vsmask.f32 6400
      %v1399 = vshrl.u32 %v1143, 16
      %v1401 = vrot.slane %v1399, 1
      %v1402 = vshll.u32 %v1143, 16
      %v1404 = vrot.slane %v1402, 2
      %v1405 = vor.u32 %v1401, %v1404
      %v1407 = vshrl.u32 %v1144, 16
      %v1409 = vrot.slane %v1407, 1
      %v1410 = vshll.u32 %v1144, 16
      %v1412 = vrot.slane %v1410, 2
      %v1413 = vor.u32 %v1409, %v1412
      %v1414 = vsel %vm1397, %v1405, %v1413
      %v1416 = vshrl.u32 %v1145, 16
      %v1418 = vrot.slane %v1416, 1
      %v1419 = vshll.u32 %v1145, 16
      %v1421 = vrot.slane %v1419, 2
      %v1422 = vor.u32 %v1418, %v1421
      %v1423 = vsel %vm1397, %v1413, %v1422
      %v1425 = vshrl.u32 %v1146, 16
      %v1427 = vrot.slane %v1425, 1
      %v1428 = vshll.u32 %v1146, 16
      %v1430 = vrot.slane %v1428, 2
      %v1431 = vor.u32 %v1427, %v1430
      %v1432 = vsel %vm1397, %v1422, %v1431
      %v1434 = vshrl.u32 %v1147, 16
      %v1436 = vrot.slane %v1434, 1
      %v1437 = vshll.u32 %v1147, 16
      %v1439 = vrot.slane %v1437, 2
      %v1440 = vor.u32 %v1436, %v1439
      %v1441 = vsel %vm1397, %v1431, %v1440
      %v1443 = vshrl.u32 %v1148, 16
      %v1445 = vrot.slane %v1443, 1
      %v1446 = vshll.u32 %v1148, 16
      %v1448 = vrot.slane %v1446, 2
      %v1449 = vor.u32 %v1445, %v1448
      %v1450 = vsel %vm1397, %v1440, %v1449
      %v1452 = vshrl.u32 %v1149, 16
      %v1454 = vrot.slane %v1452, 1
      %v1455 = vshll.u32 %v1149, 16
      %v1457 = vrot.slane %v1455, 2
      %v1458 = vor.u32 %v1454, %v1457
      %v1459 = vsel %vm1397, %v1449, %v1458
      %v1461 = vshrl.u32 %v1150, 16
      %v1463 = vrot.slane %v1461, 1
      %v1464 = vshll.u32 %v1150, 16
      %v1466 = vrot.slane %v1464, 2
      %v1467 = vor.u32 %v1463, %v1466
      %v1468 = vsel %vm1397, %v1458, %v1467
      %v1470 = vshrl.u32 %v1151, 16
      %v1472 = vrot.slane %v1470, 1
      %v1473 = vshll.u32 %v1151, 16
      %v1475 = vrot.slane %v1473, 2
      %v1476 = vor.u32 %v1472, %v1475
      %v1477 = vsel %vm1397, %v1467, %v1476
      %v1479 = vshrl.u32 %v1152, 16
      %v1481 = vrot.slane %v1479, 1
      %v1482 = vshll.u32 %v1152, 16
      %v1484 = vrot.slane %v1482, 2
      %v1485 = vor.u32 %v1481, %v1484
      %v1486 = vsel %vm1397, %v1476, %v1485
      %v1488 = vshrl.u32 %v1153, 16
      %v1490 = vrot.slane %v1488, 1
      %v1491 = vshll.u32 %v1153, 16
      %v1493 = vrot.slane %v1491, 2
      %v1494 = vor.u32 %v1490, %v1493
      %v1495 = vsel %vm1397, %v1485, %v1494
      %v1497 = vshrl.u32 %v1154, 16
      %v1499 = vrot.slane %v1497, 1
      %v1500 = vshll.u32 %v1154, 16
      %v1502 = vrot.slane %v1500, 2
      %v1503 = vor.u32 %v1499, %v1502
      %v1504 = vsel %vm1397, %v1494, %v1503
      %v1506 = vshrl.u32 %v1155, 16
      %v1508 = vrot.slane %v1506, 1
      %v1509 = vshll.u32 %v1155, 16
      %v1511 = vrot.slane %v1509, 2
      %v1512 = vor.u32 %v1508, %v1511
      %v1513 = vsel %vm1397, %v1503, %v1512
      %v1515 = vshrl.u32 %v1156, 16
      %v1517 = vrot.slane %v1515, 1
      %v1518 = vshll.u32 %v1156, 16
      %v1520 = vrot.slane %v1518, 2
      %v1521 = vor.u32 %v1517, %v1520
      %v1522 = vsel %vm1397, %v1512, %v1521
      %v1524 = vshrl.u32 %v1157, 16
      %v1526 = vrot.slane %v1524, 1
      %v1527 = vshll.u32 %v1157, 16
      %v1529 = vrot.slane %v1527, 2
      %v1530 = vor.u32 %v1526, %v1529
      %v1531 = vsel %vm1397, %v1521, %v1530
      %v1533 = vshrl.u32 %v1158, 16
      %v1535 = vrot.slane %v1533, 1
      %v1536 = vshll.u32 %v1158, 16
      %v1538 = vrot.slane %v1536, 2
      %v1539 = vor.u32 %v1535, %v1538
      %v1540 = vsel %vm1397, %v1530, %v1539
      %v1542 = vshrl.u32 %v1159, 16
      %v1544 = vrot.slane %v1542, 1
      %v1545 = vshll.u32 %v1159, 16
      %v1547 = vrot.slane %v1545, 2
      %v1548 = vor.u32 %v1544, %v1547
      %v1549 = vsel %vm1397, %v1539, %v1548
      %v1551 = vshrl.u32 %v1160, 16
      %v1553 = vrot.slane %v1551, 1
      %v1554 = vshll.u32 %v1160, 16
      %v1556 = vrot.slane %v1554, 2
      %v1557 = vor.u32 %v1553, %v1556
      %v1558 = vsel %vm1397, %v1548, %v1557
      %v1560 = vshrl.u32 %v1396, 16
      %v1562 = vrot.slane %v1560, 1
      %v1563 = vshll.u32 %v1396, 16
      %v1565 = vrot.slane %v1563, 2
      %v1566 = vor.u32 %v1562, %v1565
      %v1567 = vsel %vm1397, %v1557, %v1566
      %v1569 = vsel %vm498, %v1414, 0
      %v1572 = vsel %vm498, %v1423, 0
      %v1575 = vsel %vm498, %v1432, 0
      %v1578 = vsel %vm498, %v1441, 0
      %v1581 = vsel %vm498, %v1450, 0
      %v1584 = vsel %vm498, %v1459, 0
      %v1587 = vsel %vm498, %v1468, 0
      %v1590 = vsel %vm498, %v1477, 0
      %v1593 = vsel %vm498, %v1486, 0
      %v1596 = vsel %vm498, %v1495, 0
      %v1599 = vsel %vm498, %v1504, 0
      %v1602 = vsel %vm498, %v1513, 0
      %v1605 = vsel %vm498, %v1522, 0
      %v1608 = vsel %vm498, %v1531, 0
      %v1611 = vsel %vm498, %v1540, 0
      %v1614 = vsel %vm498, %v1549, 0
      %v1617 = vsel %vm498, %v1558, 0
      %v1620 = vsel %vm498, %v1567, 0
      %v1623 = vsel %vm553, %v1393, 0
      %1625 = vmatpush.bf16.msra.mxu0 0
      %1626 = vmatpush.bf16.msra.mxu0 0
      %1627 = vmatpush.bf16.msra.mxu0 0
      %1628 = vmatpush.bf16.msra.mxu0 0
      %1629 = vmatpush.bf16.msra.mxu0 0
      %1630 = vmatpush.bf16.msra.mxu0 0
      %1631 = vmatpush.bf16.msra.mxu0 0
      %1632 = vmatpush.bf16.msra.mxu0 %v1623
      %1633 = vmatmul.bf16.gmra.mxu0 %v1569
      %v1634 = vpop.f32.mrf.mxu0
      %v1635 = vadd.f32 0.0, %v1634
      %v1636 = vpop.f32.mrf.mxu0
      %v1637 = vadd.f32 0.0, %v1636
      %1638 = vmatmul.bf16.gmra.mxu0 %v1572
      %v1639 = vpop.f32.mrf.mxu0
      %v1640 = vadd.f32 0.0, %v1639
      %v1641 = vpop.f32.mrf.mxu0
      %v1642 = vadd.f32 0.0, %v1641
      %1643 = vmatmul.bf16.gmra.mxu0 %v1575
      %v1644 = vpop.f32.mrf.mxu0
      %v1645 = vadd.f32 0.0, %v1644
      %v1646 = vpop.f32.mrf.mxu0
      %v1647 = vadd.f32 0.0, %v1646
      %1648 = vmatmul.bf16.gmra.mxu0 %v1578
      %v1649 = vpop.f32.mrf.mxu0
      %v1650 = vadd.f32 0.0, %v1649
      %v1651 = vpop.f32.mrf.mxu0
      %v1652 = vadd.f32 0.0, %v1651
      %1653 = vmatmul.bf16.gmra.mxu0 %v1581
      %v1654 = vpop.f32.mrf.mxu0
      %v1655 = vadd.f32 0.0, %v1654
      %v1656 = vpop.f32.mrf.mxu0
      %v1657 = vadd.f32 0.0, %v1656
      %1658 = vmatmul.bf16.gmra.mxu0 %v1584
      %v1659 = vpop.f32.mrf.mxu0
      %v1660 = vadd.f32 0.0, %v1659
      %v1661 = vpop.f32.mrf.mxu0
      %v1662 = vadd.f32 0.0, %v1661
      %1663 = vmatmul.bf16.gmra.mxu0 %v1587
      %v1664 = vpop.f32.mrf.mxu0
      %v1665 = vadd.f32 0.0, %v1664
      %v1666 = vpop.f32.mrf.mxu0
      %v1667 = vadd.f32 0.0, %v1666
      %1668 = vmatmul.bf16.gmra.mxu0 %v1590
      %v1669 = vpop.f32.mrf.mxu0
      %v1670 = vadd.f32 0.0, %v1669
      %v1671 = vpop.f32.mrf.mxu0
      %v1672 = vadd.f32 0.0, %v1671
      %1673 = vmatmul.bf16.gmra.mxu0 %v1593
      %v1674 = vpop.f32.mrf.mxu0
      %v1675 = vadd.f32 0.0, %v1674
      %v1676 = vpop.f32.mrf.mxu0
      %v1677 = vadd.f32 0.0, %v1676
      %1678 = vmatmul.bf16.gmra.mxu0 %v1596
      %v1679 = vpop.f32.mrf.mxu0
      %v1680 = vadd.f32 0.0, %v1679
      %v1681 = vpop.f32.mrf.mxu0
      %v1682 = vadd.f32 0.0, %v1681
      %1683 = vmatmul.bf16.gmra.mxu0 %v1599
      %v1684 = vpop.f32.mrf.mxu0
      %v1685 = vadd.f32 0.0, %v1684
      %v1686 = vpop.f32.mrf.mxu0
      %v1687 = vadd.f32 0.0, %v1686
      %1688 = vmatmul.bf16.gmra.mxu0 %v1602
      %v1689 = vpop.f32.mrf.mxu0
      %v1690 = vadd.f32 0.0, %v1689
      %v1691 = vpop.f32.mrf.mxu0
      %v1692 = vadd.f32 0.0, %v1691
      %1693 = vmatmul.bf16.gmra.mxu0 %v1605
      %v1694 = vpop.f32.mrf.mxu0
      %v1695 = vadd.f32 0.0, %v1694
      %v1696 = vpop.f32.mrf.mxu0
      %v1697 = vadd.f32 0.0, %v1696
      %1698 = vmatmul.bf16.gmra.mxu0 %v1608
      %v1699 = vpop.f32.mrf.mxu0
      %v1700 = vadd.f32 0.0, %v1699
      %v1701 = vpop.f32.mrf.mxu0
      %v1702 = vadd.f32 0.0, %v1701
      %1703 = vmatmul.bf16.gmra.mxu0 %v1611
      %v1704 = vpop.f32.mrf.mxu0
      %v1705 = vadd.f32 0.0, %v1704
      %v1706 = vpop.f32.mrf.mxu0
      %v1707 = vadd.f32 0.0, %v1706
      %1708 = vmatmul.bf16.gmra.mxu0 %v1614
      %v1709 = vpop.f32.mrf.mxu0
      %v1710 = vadd.f32 0.0, %v1709
      %v1711 = vpop.f32.mrf.mxu0
      %v1712 = vadd.f32 0.0, %v1711
      %1713 = vmatmul.bf16.gmra.mxu0 %v1617
      %v1714 = vpop.f32.mrf.mxu0
      %v1715 = vadd.f32 0.0, %v1714
      %v1716 = vpop.f32.mrf.mxu0
      %v1717 = vadd.f32 0.0, %v1716
      %1718 = vmatmul.bf16.gmra.mxu0 %v1620
      %v1719 = vpop.f32.mrf.mxu0
      %v1720 = vadd.f32 0.0, %v1719
      %v1721 = vpop.f32.mrf.mxu0
      %v1722 = vadd.f32 0.0, %v1721
      %1723 = vdwg.mxu0
      %v1724 = vadd.f32 %v1355, %v1635
      %v1725 = vadd.f32 %v1356, %v1637
      %v1726 = vadd.f32 %v1357, %v1640
      %v1727 = vadd.f32 %v1358, %v1642
      %v1728 = vadd.f32 %v1359, %v1645
      %v1729 = vadd.f32 %v1360, %v1647
      %v1730 = vadd.f32 %v1361, %v1650
      %v1731 = vadd.f32 %v1362, %v1652
      %v1732 = vadd.f32 %v1363, %v1655
      %v1733 = vadd.f32 %v1364, %v1657
      %v1734 = vadd.f32 %v1365, %v1660
      %v1735 = vadd.f32 %v1366, %v1662
      %v1736 = vadd.f32 %v1367, %v1665
      %v1737 = vadd.f32 %v1368, %v1667
      %v1738 = vadd.f32 %v1369, %v1670
      %v1739 = vadd.f32 %v1370, %v1672
      %v1740 = vadd.f32 %v1371, %v1675
      %v1741 = vadd.f32 %v1372, %v1677
      %v1742 = vadd.f32 %v1373, %v1680
      %v1743 = vadd.f32 %v1374, %v1682
      %v1744 = vadd.f32 %v1375, %v1685
      %v1745 = vadd.f32 %v1376, %v1687
      %v1746 = vadd.f32 %v1377, %v1690
      %v1747 = vadd.f32 %v1378, %v1692
      %v1748 = vadd.f32 %v1379, %v1695
      %v1749 = vadd.f32 %v1380, %v1697
      %v1750 = vadd.f32 %v1381, %v1700
      %v1751 = vadd.f32 %v1382, %v1702
      %v1752 = vadd.f32 %v1383, %v1705
      %v1753 = vadd.f32 %v1384, %v1707
      %v1754 = vadd.f32 %v1385, %v1710
      %v1755 = vadd.f32 %v1386, %v1712
      %v1756 = vadd.f32 %v1387, %v1715
      %v1757 = vadd.f32 %v1388, %v1717
      %v1758 = vadd.f32 %v1389, %v1720
      %v1759 = vadd.f32 %v1390, %v1722
      %v1760 = vld [vmem:[%s203 + $0x8] sm:$0xc]
      %s1761 = scalar_lea.vmem %s1, 10
      %v1762 = vld [vmem:[%s1761] sm:$0x3]
      %v1764 = vunpack.c.l.b16 %v1760
      %v1765 = vpack.c.b16 %v1107, %v1764
      %vm1766 = vcmask 1045504
      %v1767 = vrot.slane %v1765, 2
      %v1768 = vrot.slane %v1144, 2
      %v1769 = vsel %vm1766, %v1767, %v1768
      %v1770 = vrot.slane %v1145, 2
      %v1771 = vsel %vm1766, %v1768, %v1770
      %v1772 = vrot.slane %v1146, 2
      %v1773 = vsel %vm1766, %v1770, %v1772
      %v1774 = vrot.slane %v1147, 2
      %v1775 = vsel %vm1766, %v1772, %v1774
      %v1776 = vrot.slane %v1148, 2
      %v1777 = vsel %vm1766, %v1774, %v1776
      %v1778 = vrot.slane %v1149, 2
      %v1779 = vsel %vm1766, %v1776, %v1778
      %v1780 = vrot.slane %v1150, 2
      %v1781 = vsel %vm1766, %v1778, %v1780
      %v1782 = vrot.slane %v1151, 2
      %v1783 = vsel %vm1766, %v1780, %v1782
      %v1784 = vrot.slane %v1152, 2
      %v1785 = vsel %vm1766, %v1782, %v1784
      %v1786 = vrot.slane %v1153, 2
      %v1787 = vsel %vm1766, %v1784, %v1786
      %v1788 = vrot.slane %v1154, 2
      %v1789 = vsel %vm1766, %v1786, %v1788
      %v1790 = vrot.slane %v1155, 2
      %v1791 = vsel %vm1766, %v1788, %v1790
      %v1792 = vrot.slane %v1156, 2
      %v1793 = vsel %vm1766, %v1790, %v1792
      %v1794 = vrot.slane %v1157, 2
      %v1795 = vsel %vm1766, %v1792, %v1794
      %v1796 = vrot.slane %v1158, 2
      %v1797 = vsel %vm1766, %v1794, %v1796
      %v1798 = vrot.slane %v1159, 2
      %v1799 = vsel %vm1766, %v1796, %v1798
      %v1800 = vrot.slane %v1160, 2
      %v1801 = vsel %vm1766, %v1798, %v1800
      %v1802 = vrot.slane %v1396, 2
      %v1803 = vsel %vm1766, %v1800, %v1802
      %v1805 = vsel %vm498, %v1769, 0
      %v1808 = vsel %vm498, %v1771, 0
      %v1811 = vsel %vm498, %v1773, 0
      %v1814 = vsel %vm498, %v1775, 0
      %v1817 = vsel %vm498, %v1777, 0
      %v1820 = vsel %vm498, %v1779, 0
      %v1823 = vsel %vm498, %v1781, 0
      %v1826 = vsel %vm498, %v1783, 0
      %v1829 = vsel %vm498, %v1785, 0
      %v1832 = vsel %vm498, %v1787, 0
      %v1835 = vsel %vm498, %v1789, 0
      %v1838 = vsel %vm498, %v1791, 0
      %v1841 = vsel %vm498, %v1793, 0
      %v1844 = vsel %vm498, %v1795, 0
      %v1847 = vsel %vm498, %v1797, 0
      %v1850 = vsel %vm498, %v1799, 0
      %v1853 = vsel %vm498, %v1801, 0
      %v1856 = vsel %vm498, %v1803, 0
      %v1859 = vsel %vm553, %v1762, 0
      %1861 = vmatpush.bf16.msra.mxu0 0
      %1862 = vmatpush.bf16.msra.mxu0 0
      %1863 = vmatpush.bf16.msra.mxu0 0
      %1864 = vmatpush.bf16.msra.mxu0 0
      %1865 = vmatpush.bf16.msra.mxu0 0
      %1866 = vmatpush.bf16.msra.mxu0 0
      %1867 = vmatpush.bf16.msra.mxu0 0
      %1868 = vmatpush.bf16.msra.mxu0 %v1859
      %1869 = vmatmul.bf16.gmra.mxu0 %v1805
      %v1870 = vpop.f32.mrf.mxu0
      %v1871 = vadd.f32 0.0, %v1870
      %v1872 = vpop.f32.mrf.mxu0
      %v1873 = vadd.f32 0.0, %v1872
      %1874 = vmatmul.bf16.gmra.mxu0 %v1808
      %v1875 = vpop.f32.mrf.mxu0
      %v1876 = vadd.f32 0.0, %v1875
      %v1877 = vpop.f32.mrf.mxu0
      %v1878 = vadd.f32 0.0, %v1877
      %1879 = vmatmul.bf16.gmra.mxu0 %v1811
      %v1880 = vpop.f32.mrf.mxu0
      %v1881 = vadd.f32 0.0, %v1880
      %v1882 = vpop.f32.mrf.mxu0
      %v1883 = vadd.f32 0.0, %v1882
      %1884 = vmatmul.bf16.gmra.mxu0 %v1814
      %v1885 = vpop.f32.mrf.mxu0
      %v1886 = vadd.f32 0.0, %v1885
      %v1887 = vpop.f32.mrf.mxu0
      %v1888 = vadd.f32 0.0, %v1887
      %1889 = vmatmul.bf16.gmra.mxu0 %v1817
      %v1890 = vpop.f32.mrf.mxu0
      %v1891 = vadd.f32 0.0, %v1890
      %v1892 = vpop.f32.mrf.mxu0
      %v1893 = vadd.f32 0.0, %v1892
      %1894 = vmatmul.bf16.gmra.mxu0 %v1820
      %v1895 = vpop.f32.mrf.mxu0
      %v1896 = vadd.f32 0.0, %v1895
      %v1897 = vpop.f32.mrf.mxu0
      %v1898 = vadd.f32 0.0, %v1897
      %1899 = vmatmul.bf16.gmra.mxu0 %v1823
      %v1900 = vpop.f32.mrf.mxu0
      %v1901 = vadd.f32 0.0, %v1900
      %v1902 = vpop.f32.mrf.mxu0
      %v1903 = vadd.f32 0.0, %v1902
      %1904 = vmatmul.bf16.gmra.mxu0 %v1826
      %v1905 = vpop.f32.mrf.mxu0
      %v1906 = vadd.f32 0.0, %v1905
      %v1907 = vpop.f32.mrf.mxu0
      %v1908 = vadd.f32 0.0, %v1907
      %1909 = vmatmul.bf16.gmra.mxu0 %v1829
      %v1910 = vpop.f32.mrf.mxu0
      %v1911 = vadd.f32 0.0, %v1910
      %v1912 = vpop.f32.mrf.mxu0
      %v1913 = vadd.f32 0.0, %v1912
      %1914 = vmatmul.bf16.gmra.mxu0 %v1832
      %v1915 = vpop.f32.mrf.mxu0
      %v1916 = vadd.f32 0.0, %v1915
      %v1917 = vpop.f32.mrf.mxu0
      %v1918 = vadd.f32 0.0, %v1917
      %1919 = vmatmul.bf16.gmra.mxu0 %v1835
      %v1920 = vpop.f32.mrf.mxu0
      %v1921 = vadd.f32 0.0, %v1920
      %v1922 = vpop.f32.mrf.mxu0
      %v1923 = vadd.f32 0.0, %v1922
      %1924 = vmatmul.bf16.gmra.mxu0 %v1838
      %v1925 = vpop.f32.mrf.mxu0
      %v1926 = vadd.f32 0.0, %v1925
      %v1927 = vpop.f32.mrf.mxu0
      %v1928 = vadd.f32 0.0, %v1927
      %1929 = vmatmul.bf16.gmra.mxu0 %v1841
      %v1930 = vpop.f32.mrf.mxu0
      %v1931 = vadd.f32 0.0, %v1930
      %v1932 = vpop.f32.mrf.mxu0
      %v1933 = vadd.f32 0.0, %v1932
      %1934 = vmatmul.bf16.gmra.mxu0 %v1844
      %v1935 = vpop.f32.mrf.mxu0
      %v1936 = vadd.f32 0.0, %v1935
      %v1937 = vpop.f32.mrf.mxu0
      %v1938 = vadd.f32 0.0, %v1937
      %1939 = vmatmul.bf16.gmra.mxu0 %v1847
      %v1940 = vpop.f32.mrf.mxu0
      %v1941 = vadd.f32 0.0, %v1940
      %v1942 = vpop.f32.mrf.mxu0
      %v1943 = vadd.f32 0.0, %v1942
      %1944 = vmatmul.bf16.gmra.mxu0 %v1850
      %v1945 = vpop.f32.mrf.mxu0
      %v1946 = vadd.f32 0.0, %v1945
      %v1947 = vpop.f32.mrf.mxu0
      %v1948 = vadd.f32 0.0, %v1947
      %1949 = vmatmul.bf16.gmra.mxu0 %v1853
      %v1950 = vpop.f32.mrf.mxu0
      %v1951 = vadd.f32 0.0, %v1950
      %v1952 = vpop.f32.mrf.mxu0
      %v1953 = vadd.f32 0.0, %v1952
      %1954 = vmatmul.bf16.gmra.mxu0 %v1856
      %v1955 = vpop.f32.mrf.mxu0
      %v1956 = vadd.f32 0.0, %v1955
      %v1957 = vpop.f32.mrf.mxu0
      %v1958 = vadd.f32 0.0, %v1957
      %1959 = vdwg.mxu0
      %v1960 = vadd.f32 %v1724, %v1871
      %v1961 = vadd.f32 %v1725, %v1873
      %v1962 = vadd.f32 %v1726, %v1876
      %v1963 = vadd.f32 %v1727, %v1878
      %v1964 = vadd.f32 %v1728, %v1881
      %v1965 = vadd.f32 %v1729, %v1883
      %v1966 = vadd.f32 %v1730, %v1886
      %v1967 = vadd.f32 %v1731, %v1888
      %v1968 = vadd.f32 %v1732, %v1891
      %v1969 = vadd.f32 %v1733, %v1893
      %v1970 = vadd.f32 %v1734, %v1896
      %v1971 = vadd.f32 %v1735, %v1898
      %v1972 = vadd.f32 %v1736, %v1901
      %v1973 = vadd.f32 %v1737, %v1903
      %v1974 = vadd.f32 %v1738, %v1906
      %v1975 = vadd.f32 %v1739, %v1908
      %v1976 = vadd.f32 %v1740, %v1911
      %v1977 = vadd.f32 %v1741, %v1913
      %v1978 = vadd.f32 %v1742, %v1916
      %v1979 = vadd.f32 %v1743, %v1918
      %v1980 = vadd.f32 %v1744, %v1921
      %v1981 = vadd.f32 %v1745, %v1923
      %v1982 = vadd.f32 %v1746, %v1926
      %v1983 = vadd.f32 %v1747, %v1928
      %v1984 = vadd.f32 %v1748, %v1931
      %v1985 = vadd.f32 %v1749, %v1933
      %v1986 = vadd.f32 %v1750, %v1936
      %v1987 = vadd.f32 %v1751, %v1938
      %v1988 = vadd.f32 %v1752, %v1941
      %v1989 = vadd.f32 %v1753, %v1943
      %v1990 = vadd.f32 %v1754, %v1946
      %v1991 = vadd.f32 %v1755, %v1948
      %v1992 = vadd.f32 %v1756, %v1951
      %v1993 = vadd.f32 %v1757, %v1953
      %v1994 = vadd.f32 %v1758, %v1956
      %v1995 = vadd.f32 %v1759, %v1958
      %v1996 = vld [vmem:[%s203 + $0x10] sm:$0xc]
      %v1997 = vld [vmem:[%s203 + $0x14] sm:$0xf]
      %v1998 = vld [vmem:[%s203 + $0x18] sm:$0xf]
      %v1999 = vld [vmem:[%s203 + $0x1c] sm:$0xf]
      %v2000 = vld [vmem:[%s203 + $0x20] sm:$0xf]
      %v2001 = vld [vmem:[%s203 + $0x24] sm:$0xf]
      %v2002 = vld [vmem:[%s203 + $0x28] sm:$0xf]
      %v2003 = vld [vmem:[%s203 + $0x2c] sm:$0xf]
      %v2004 = vld [vmem:[%s203 + $0x30] sm:$0xf]
      %v2005 = vld [vmem:[%s203 + $0x34] sm:$0xf]
      %v2006 = vld [vmem:[%s203 + $0x38] sm:$0xf]
      %v2007 = vld [vmem:[%s203 + $0x3c] sm:$0xf]
      %v2008 = vld [vmem:[%s203 + $0x40] sm:$0xf]
      %v2009 = vld [vmem:[%s203 + $0x44] sm:$0xf]
      %v2010 = vld [vmem:[%s203 + $0x48] sm:$0xf]
      %v2011 = vld [vmem:[%s203 + $0x4c] sm:$0xf]
      %v2012 = vld [vmem:[%s203 + $0x50] sm:$0xf]
      %v2013 = vld [vmem:[%s203 + $0x54] sm:$0xf]
      %v2014 = vld [vmem:[%s203 + $0x58] sm:$0xf]
      %v2015 = vld [vmem:[%s203 + $0x5c] sm:$0xf]
      %v2016 = vld [vmem:[%s203 + $0x60] sm:$0xf]
      %v2017 = vld [vmem:[%s203 + $0x64] sm:$0xf]
      %v2018 = vld [vmem:[%s203 + $0x68] sm:$0xf]
      %v2019 = vld [vmem:[%s203 + $0x6c] sm:$0xf]
      %v2020 = vld [vmem:[%s203 + $0x70] sm:$0xf]
      %v2021 = vld [vmem:[%s203 + $0x74] sm:$0xf]
      %v2022 = vld [vmem:[%s203 + $0x78] sm:$0xf]
      %v2023 = vld [vmem:[%s203 + $0x7c] sm:$0xf]
      %v2024 = vld [vmem:[%s203 + $0x80] sm:$0xf]
      %v2025 = vld [vmem:[%s203 + $0x84] sm:$0xf]
      %v2026 = vld [vmem:[%s203 + $0x88] sm:$0xf]
      %v2027 = vld [vmem:[%s203 + $0x8c] sm:$0xf]
      %v2028 = vld [vmem:[%s203 + $0x90] sm:$0xf]
      %v2029 = vld [vmem:[%s203 + $0x94] sm:$0xf]
      %v2030 = vld [vmem:[%s203 + $0x98] sm:$0xf]
      %v2031 = vld [vmem:[%s203 + $0x9c] sm:$0xf]
      %v2032 = vld [vmem:[%s203 + $0xa0] sm:$0x3]
      %s2033 = scalar_lea.vmem %s1, 12
      %v2034 = vld [vmem:[%s2033] sm:$0x3]
      %v2072 = vunpack.c.l.b16 %v1996
      %v2073 = vunpack.c.l.b16 %v1997
      %v2074 = vunpack.c.l.b16 %v1998
      %v2075 = vunpack.c.l.b16 %v1999
      %v2076 = vunpack.c.l.b16 %v2000
      %v2077 = vunpack.c.l.b16 %v2001
      %v2078 = vunpack.c.l.b16 %v2002
      %v2079 = vunpack.c.l.b16 %v2003
      %v2080 = vunpack.c.l.b16 %v2004
      %v2081 = vunpack.c.l.b16 %v2005
      %v2082 = vunpack.c.l.b16 %v2006
      %v2083 = vunpack.c.l.b16 %v2007
      %v2084 = vunpack.c.l.b16 %v2008
      %v2085 = vunpack.c.l.b16 %v2009
      %v2086 = vunpack.c.l.b16 %v2010
      %v2087 = vunpack.c.l.b16 %v2011
      %v2088 = vunpack.c.l.b16 %v2012
      %v2089 = vunpack.c.l.b16 %v2013
      %v2090 = vunpack.c.l.b16 %v2014
      %v2091 = vunpack.c.l.b16 %v2015
      %v2092 = vunpack.c.l.b16 %v2016
      %v2093 = vunpack.c.l.b16 %v2017
      %v2094 = vunpack.c.l.b16 %v2018
      %v2095 = vunpack.c.l.b16 %v2019
      %v2096 = vunpack.c.l.b16 %v2020
      %v2097 = vunpack.c.l.b16 %v2021
      %v2098 = vunpack.c.l.b16 %v2022
      %v2099 = vunpack.c.l.b16 %v2023
      %v2100 = vunpack.c.l.b16 %v2024
      %v2101 = vunpack.c.l.b16 %v2025
      %v2102 = vunpack.c.l.b16 %v2026
      %v2103 = vunpack.c.l.b16 %v2027
      %v2104 = vunpack.c.l.b16 %v2028
      %v2105 = vunpack.c.l.b16 %v2029
      %v2106 = vunpack.c.l.b16 %v2030
      %v2107 = vunpack.c.l.b16 %v2031
      %v2108 = vunpack.c.l.b16 %v2032
      %v2109 = vpack.c.b16 %v2073, %v2072
      %v2110 = vpack.c.b16 %v2075, %v2074
      %v2111 = vpack.c.b16 %v2077, %v2076
      %v2112 = vpack.c.b16 %v2079, %v2078
      %v2113 = vpack.c.b16 %v2081, %v2080
      %v2114 = vpack.c.b16 %v2083, %v2082
      %v2115 = vpack.c.b16 %v2085, %v2084
      %v2116 = vpack.c.b16 %v2087, %v2086
      %v2117 = vpack.c.b16 %v2089, %v2088
      %v2118 = vpack.c.b16 %v2091, %v2090
      %v2119 = vpack.c.b16 %v2093, %v2092
      %v2120 = vpack.c.b16 %v2095, %v2094
      %v2121 = vpack.c.b16 %v2097, %v2096
      %v2122 = vpack.c.b16 %v2099, %v2098
      %v2123 = vpack.c.b16 %v2101, %v2100
      %v2124 = vpack.c.b16 %v2103, %v2102
      %v2125 = vpack.c.b16 %v2105, %v2104
      %v2126 = vpack.c.b16 %v2107, %v2106
      %v2127 = vpack.c.b16 %v2108, %v2108
      %v2128 = vrot.slane %v2109, 2
      %v2129 = vrot.slane %v2110, 2
      %v2130 = vsel %vm1766, %v2128, %v2129
      %v2131 = vrot.slane %v2111, 2
      %v2132 = vsel %vm1766, %v2129, %v2131
      %v2133 = vrot.slane %v2112, 2
      %v2134 = vsel %vm1766, %v2131, %v2133
      %v2135 = vrot.slane %v2113, 2
      %v2136 = vsel %vm1766, %v2133, %v2135
      %v2137 = vrot.slane %v2114, 2
      %v2138 = vsel %vm1766, %v2135, %v2137
      %v2139 = vrot.slane %v2115, 2
      %v2140 = vsel %vm1766, %v2137, %v2139
      %v2141 = vrot.slane %v2116, 2
      %v2142 = vsel %vm1766, %v2139, %v2141
      %v2143 = vrot.slane %v2117, 2
      %v2144 = vsel %vm1766, %v2141, %v2143
      %v2145 = vrot.slane %v2118, 2
      %v2146 = vsel %vm1766, %v2143, %v2145
      %v2147 = vrot.slane %v2119, 2
      %v2148 = vsel %vm1766, %v2145, %v2147
      %v2149 = vrot.slane %v2120, 2
      %v2150 = vsel %vm1766, %v2147, %v2149
      %v2151 = vrot.slane %v2121, 2
      %v2152 = vsel %vm1766, %v2149, %v2151
      %v2153 = vrot.slane %v2122, 2
      %v2154 = vsel %vm1766, %v2151, %v2153
      %v2155 = vrot.slane %v2123, 2
      %v2156 = vsel %vm1766, %v2153, %v2155
      %v2157 = vrot.slane %v2124, 2
      %v2158 = vsel %vm1766, %v2155, %v2157
      %v2159 = vrot.slane %v2125, 2
      %v2160 = vsel %vm1766, %v2157, %v2159
      %v2161 = vrot.slane %v2126, 2
      %v2162 = vsel %vm1766, %v2159, %v2161
      %v2163 = vrot.slane %v2127, 2
      %v2164 = vsel %vm1766, %v2161, %v2163
      %v2166 = vsel %vm498, %v2130, 0
      %v2169 = vsel %vm498, %v2132, 0
      %v2172 = vsel %vm498, %v2134, 0
      %v2175 = vsel %vm498, %v2136, 0
      %v2178 = vsel %vm498, %v2138, 0
      %v2181 = vsel %vm498, %v2140, 0
      %v2184 = vsel %vm498, %v2142, 0
      %v2187 = vsel %vm498, %v2144, 0
      %v2190 = vsel %vm498, %v2146, 0
      %v2193 = vsel %vm498, %v2148, 0
      %v2196 = vsel %vm498, %v2150, 0
      %v2199 = vsel %vm498, %v2152, 0
      %v2202 = vsel %vm498, %v2154, 0
      %v2205 = vsel %vm498, %v2156, 0
      %v2208 = vsel %vm498, %v2158, 0
      %v2211 = vsel %vm498, %v2160, 0
      %v2214 = vsel %vm498, %v2162, 0
      %v2217 = vsel %vm498, %v2164, 0
      %v2220 = vsel %vm553, %v2034, 0
      %2222 = vmatpush.bf16.msra.mxu0 0
      %2223 = vmatpush.bf16.msra.mxu0 0
      %2224 = vmatpush.bf16.msra.mxu0 0
      %2225 = vmatpush.bf16.msra.mxu0 0
      %2226 = vmatpush.bf16.msra.mxu0 0
      %2227 = vmatpush.bf16.msra.mxu0 0
      %2228 = vmatpush.bf16.msra.mxu0 0
      %2229 = vmatpush.bf16.msra.mxu0 %v2220
      %2230 = vmatmul.bf16.gmra.mxu0 %v2166
      %v2231 = vpop.f32.mrf.mxu0
      %v2232 = vadd.f32 0.0, %v2231
      %v2233 = vpop.f32.mrf.mxu0
      %v2234 = vadd.f32 0.0, %v2233
      %2235 = vmatmul.bf16.gmra.mxu0 %v2169
      %v2236 = vpop.f32.mrf.mxu0
      %v2237 = vadd.f32 0.0, %v2236
      %v2238 = vpop.f32.mrf.mxu0
      %v2239 = vadd.f32 0.0, %v2238
      %2240 = vmatmul.bf16.gmra.mxu0 %v2172
      %v2241 = vpop.f32.mrf.mxu0
      %v2242 = vadd.f32 0.0, %v2241
      %v2243 = vpop.f32.mrf.mxu0
      %v2244 = vadd.f32 0.0, %v2243
      %2245 = vmatmul.bf16.gmra.mxu0 %v2175
      %v2246 = vpop.f32.mrf.mxu0
      %v2247 = vadd.f32 0.0, %v2246
      %v2248 = vpop.f32.mrf.mxu0
      %v2249 = vadd.f32 0.0, %v2248
      %2250 = vmatmul.bf16.gmra.mxu0 %v2178
      %v2251 = vpop.f32.mrf.mxu0
      %v2252 = vadd.f32 0.0, %v2251
      %v2253 = vpop.f32.mrf.mxu0
      %v2254 = vadd.f32 0.0, %v2253
      %2255 = vmatmul.bf16.gmra.mxu0 %v2181
      %v2256 = vpop.f32.mrf.mxu0
      %v2257 = vadd.f32 0.0, %v2256
      %v2258 = vpop.f32.mrf.mxu0
      %v2259 = vadd.f32 0.0, %v2258
      %2260 = vmatmul.bf16.gmra.mxu0 %v2184
      %v2261 = vpop.f32.mrf.mxu0
      %v2262 = vadd.f32 0.0, %v2261
      %v2263 = vpop.f32.mrf.mxu0
      %v2264 = vadd.f32 0.0, %v2263
      %2265 = vmatmul.bf16.gmra.mxu0 %v2187
      %v2266 = vpop.f32.mrf.mxu0
      %v2267 = vadd.f32 0.0, %v2266
      %v2268 = vpop.f32.mrf.mxu0
      %v2269 = vadd.f32 0.0, %v2268
      %2270 = vmatmul.bf16.gmra.mxu0 %v2190
      %v2271 = vpop.f32.mrf.mxu0
      %v2272 = vadd.f32 0.0, %v2271
      %v2273 = vpop.f32.mrf.mxu0
      %v2274 = vadd.f32 0.0, %v2273
      %2275 = vmatmul.bf16.gmra.mxu0 %v2193
      %v2276 = vpop.f32.mrf.mxu0
      %v2277 = vadd.f32 0.0, %v2276
      %v2278 = vpop.f32.mrf.mxu0
      %v2279 = vadd.f32 0.0, %v2278
      %2280 = vmatmul.bf16.gmra.mxu0 %v2196
      %v2281 = vpop.f32.mrf.mxu0
      %v2282 = vadd.f32 0.0, %v2281
      %v2283 = vpop.f32.mrf.mxu0
      %v2284 = vadd.f32 0.0, %v2283
      %2285 = vmatmul.bf16.gmra.mxu0 %v2199
      %v2286 = vpop.f32.mrf.mxu0
      %v2287 = vadd.f32 0.0, %v2286
      %v2288 = vpop.f32.mrf.mxu0
      %v2289 = vadd.f32 0.0, %v2288
      %2290 = vmatmul.bf16.gmra.mxu0 %v2202
      %v2291 = vpop.f32.mrf.mxu0
      %v2292 = vadd.f32 0.0, %v2291
      %v2293 = vpop.f32.mrf.mxu0
      %v2294 = vadd.f32 0.0, %v2293
      %2295 = vmatmul.bf16.gmra.mxu0 %v2205
      %v2296 = vpop.f32.mrf.mxu0
      %v2297 = vadd.f32 0.0, %v2296
      %v2298 = vpop.f32.mrf.mxu0
      %v2299 = vadd.f32 0.0, %v2298
      %2300 = vmatmul.bf16.gmra.mxu0 %v2208
      %v2301 = vpop.f32.mrf.mxu0
      %v2302 = vadd.f32 0.0, %v2301
      %v2303 = vpop.f32.mrf.mxu0
      %v2304 = vadd.f32 0.0, %v2303
      %2305 = vmatmul.bf16.gmra.mxu0 %v2211
      %v2306 = vpop.f32.mrf.mxu0
      %v2307 = vadd.f32 0.0, %v2306
      %v2308 = vpop.f32.mrf.mxu0
      %v2309 = vadd.f32 0.0, %v2308
      %2310 = vmatmul.bf16.gmra.mxu0 %v2214
      %v2311 = vpop.f32.mrf.mxu0
      %v2312 = vadd.f32 0.0, %v2311
      %v2313 = vpop.f32.mrf.mxu0
      %v2314 = vadd.f32 0.0, %v2313
      %2315 = vmatmul.bf16.gmra.mxu0 %v2217
      %v2316 = vpop.f32.mrf.mxu0
      %v2317 = vadd.f32 0.0, %v2316
      %v2318 = vpop.f32.mrf.mxu0
      %v2319 = vadd.f32 0.0, %v2318
      %2320 = vdwg.mxu0
      %v2321 = vadd.f32 %v1960, %v2232
      %v2322 = vadd.f32 %v1961, %v2234
      %v2323 = vadd.f32 %v1962, %v2237
      %v2324 = vadd.f32 %v1963, %v2239
      %v2325 = vadd.f32 %v1964, %v2242
      %v2326 = vadd.f32 %v1965, %v2244
      %v2327 = vadd.f32 %v1966, %v2247
      %v2328 = vadd.f32 %v1967, %v2249
      %v2329 = vadd.f32 %v1968, %v2252
      %v2330 = vadd.f32 %v1969, %v2254
      %v2331 = vadd.f32 %v1970, %v2257
      %v2332 = vadd.f32 %v1971, %v2259
      %v2333 = vadd.f32 %v1972, %v2262
      %v2334 = vadd.f32 %v1973, %v2264
      %v2335 = vadd.f32 %v1974, %v2267
      %v2336 = vadd.f32 %v1975, %v2269
      %v2337 = vadd.f32 %v1976, %v2272
      %v2338 = vadd.f32 %v1977, %v2274
      %v2339 = vadd.f32 %v1978, %v2277
      %v2340 = vadd.f32 %v1979, %v2279
      %v2341 = vadd.f32 %v1980, %v2282
      %v2342 = vadd.f32 %v1981, %v2284
      %v2343 = vadd.f32 %v1982, %v2287
      %v2344 = vadd.f32 %v1983, %v2289
      %v2345 = vadd.f32 %v1984, %v2292
      %v2346 = vadd.f32 %v1985, %v2294
      %v2347 = vadd.f32 %v1986, %v2297
      %v2348 = vadd.f32 %v1987, %v2299
      %v2349 = vadd.f32 %v1988, %v2302
      %v2350 = vadd.f32 %v1989, %v2304
      %v2351 = vadd.f32 %v1990, %v2307
      %v2352 = vadd.f32 %v1991, %v2309
      %v2353 = vadd.f32 %v1992, %v2312
      %v2354 = vadd.f32 %v1993, %v2314
      %v2355 = vadd.f32 %v1994, %v2317
      %v2356 = vadd.f32 %v1995, %v2319
      %v2357 = vld [vmem:[%s203 + $0xa0] sm:$0x7]
      %s2358 = scalar_lea.vmem %s1, 14
      %v2359 = vld [vmem:[%s2358] sm:$0x3]
      %v2361 = vunpack.c.l.b16 %v2357
      %v2362 = vpack.c.b16 %v2361, %v2361
      %vm2363 = vsmask.f32 5376
      %v2365 = vshrl.u32 %v2109, 16
      %v2367 = vrot.slane %v2365, 2
      %v2368 = vshll.u32 %v2109, 16
      %v2370 = vrot.slane %v2368, 3
      %v2371 = vor.u32 %v2367, %v2370
      %v2373 = vshrl.u32 %v2110, 16
      %v2375 = vrot.slane %v2373, 2
      %v2376 = vshll.u32 %v2110, 16
      %v2378 = vrot.slane %v2376, 3
      %v2379 = vor.u32 %v2375, %v2378
      %v2380 = vsel %vm2363, %v2371, %v2379
      %v2382 = vshrl.u32 %v2111, 16
      %v2384 = vrot.slane %v2382, 2
      %v2385 = vshll.u32 %v2111, 16
      %v2387 = vrot.slane %v2385, 3
      %v2388 = vor.u32 %v2384, %v2387
      %v2389 = vsel %vm2363, %v2379, %v2388
      %v2391 = vshrl.u32 %v2112, 16
      %v2393 = vrot.slane %v2391, 2
      %v2394 = vshll.u32 %v2112, 16
      %v2396 = vrot.slane %v2394, 3
      %v2397 = vor.u32 %v2393, %v2396
      %v2398 = vsel %vm2363, %v2388, %v2397
      %v2400 = vshrl.u32 %v2113, 16
      %v2402 = vrot.slane %v2400, 2
      %v2403 = vshll.u32 %v2113, 16
      %v2405 = vrot.slane %v2403, 3
      %v2406 = vor.u32 %v2402, %v2405
      %v2407 = vsel %vm2363, %v2397, %v2406
      %v2409 = vshrl.u32 %v2114, 16
      %v2411 = vrot.slane %v2409, 2
      %v2412 = vshll.u32 %v2114, 16
      %v2414 = vrot.slane %v2412, 3
      %v2415 = vor.u32 %v2411, %v2414
      %v2416 = vsel %vm2363, %v2406, %v2415
      %v2418 = vshrl.u32 %v2115, 16
      %v2420 = vrot.slane %v2418, 2
      %v2421 = vshll.u32 %v2115, 16
      %v2423 = vrot.slane %v2421, 3
      %v2424 = vor.u32 %v2420, %v2423
      %v2425 = vsel %vm2363, %v2415, %v2424
      %v2427 = vshrl.u32 %v2116, 16
      %v2429 = vrot.slane %v2427, 2
      %v2430 = vshll.u32 %v2116, 16
      %v2432 = vrot.slane %v2430, 3
      %v2433 = vor.u32 %v2429, %v2432
      %v2434 = vsel %vm2363, %v2424, %v2433
      %v2436 = vshrl.u32 %v2117, 16
      %v2438 = vrot.slane %v2436, 2
      %v2439 = vshll.u32 %v2117, 16
      %v2441 = vrot.slane %v2439, 3
      %v2442 = vor.u32 %v2438, %v2441
      %v2443 = vsel %vm2363, %v2433, %v2442
      %v2445 = vshrl.u32 %v2118, 16
      %v2447 = vrot.slane %v2445, 2
      %v2448 = vshll.u32 %v2118, 16
      %v2450 = vrot.slane %v2448, 3
      %v2451 = vor.u32 %v2447, %v2450
      %v2452 = vsel %vm2363, %v2442, %v2451
      %v2454 = vshrl.u32 %v2119, 16
      %v2456 = vrot.slane %v2454, 2
      %v2457 = vshll.u32 %v2119, 16
      %v2459 = vrot.slane %v2457, 3
      %v2460 = vor.u32 %v2456, %v2459
      %v2461 = vsel %vm2363, %v2451, %v2460
      %v2463 = vshrl.u32 %v2120, 16
      %v2465 = vrot.slane %v2463, 2
      %v2466 = vshll.u32 %v2120, 16
      %v2468 = vrot.slane %v2466, 3
      %v2469 = vor.u32 %v2465, %v2468
      %v2470 = vsel %vm2363, %v2460, %v2469
      %v2472 = vshrl.u32 %v2121, 16
      %v2474 = vrot.slane %v2472, 2
      %v2475 = vshll.u32 %v2121, 16
      %v2477 = vrot.slane %v2475, 3
      %v2478 = vor.u32 %v2474, %v2477
      %v2479 = vsel %vm2363, %v2469, %v2478
      %v2481 = vshrl.u32 %v2122, 16
      %v2483 = vrot.slane %v2481, 2
      %v2484 = vshll.u32 %v2122, 16
      %v2486 = vrot.slane %v2484, 3
      %v2487 = vor.u32 %v2483, %v2486
      %v2488 = vsel %vm2363, %v2478, %v2487
      %v2490 = vshrl.u32 %v2123, 16
      %v2492 = vrot.slane %v2490, 2
      %v2493 = vshll.u32 %v2123, 16
      %v2495 = vrot.slane %v2493, 3
      %v2496 = vor.u32 %v2492, %v2495
      %v2497 = vsel %vm2363, %v2487, %v2496
      %v2499 = vshrl.u32 %v2124, 16
      %v2501 = vrot.slane %v2499, 2
      %v2502 = vshll.u32 %v2124, 16
      %v2504 = vrot.slane %v2502, 3
      %v2505 = vor.u32 %v2501, %v2504
      %v2506 = vsel %vm2363, %v2496, %v2505
      %v2508 = vshrl.u32 %v2125, 16
      %v2510 = vrot.slane %v2508, 2
      %v2511 = vshll.u32 %v2125, 16
      %v2513 = vrot.slane %v2511, 3
      %v2514 = vor.u32 %v2510, %v2513
      %v2515 = vsel %vm2363, %v2505, %v2514
      %v2517 = vshrl.u32 %v2126, 16
      %v2519 = vrot.slane %v2517, 2
      %v2520 = vshll.u32 %v2126, 16
      %v2522 = vrot.slane %v2520, 3
      %v2523 = vor.u32 %v2519, %v2522
      %v2524 = vsel %vm2363, %v2514, %v2523
      %v2526 = vshrl.u32 %v2362, 16
      %v2528 = vrot.slane %v2526, 2
      %v2529 = vshll.u32 %v2362, 16
      %v2531 = vrot.slane %v2529, 3
      %v2532 = vor.u32 %v2528, %v2531
      %v2533 = vsel %vm2363, %v2523, %v2532
      %v2535 = vsel %vm498, %v2380, 0
      %v2538 = vsel %vm498, %v2389, 0
      %v2541 = vsel %vm498, %v2398, 0
      %v2544 = vsel %vm498, %v2407, 0
      %v2547 = vsel %vm498, %v2416, 0
      %v2550 = vsel %vm498, %v2425, 0
      %v2553 = vsel %vm498, %v2434, 0
      %v2556 = vsel %vm498, %v2443, 0
      %v2559 = vsel %vm498, %v2452, 0
      %v2562 = vsel %vm498, %v2461, 0
      %v2565 = vsel %vm498, %v2470, 0
      %v2568 = vsel %vm498, %v2479, 0
      %v2571 = vsel %vm498, %v2488, 0
      %v2574 = vsel %vm498, %v2497, 0
      %v2577 = vsel %vm498, %v2506, 0
      %v2580 = vsel %vm498, %v2515, 0
      %v2583 = vsel %vm498, %v2524, 0
      %v2586 = vsel %vm498, %v2533, 0
      %v2589 = vsel %vm553, %v2359, 0
      %2591 = vmatpush.bf16.msra.mxu0 0
      %2592 = vmatpush.bf16.msra.mxu0 0
      %2593 = vmatpush.bf16.msra.mxu0 0
      %2594 = vmatpush.bf16.msra.mxu0 0
      %2595 = vmatpush.bf16.msra.mxu0 0
      %2596 = vmatpush.bf16.msra.mxu0 0
      %2597 = vmatpush.bf16.msra.mxu0 0
      %2598 = vmatpush.bf16.msra.mxu0 %v2589
      %2599 = vmatmul.bf16.gmra.mxu0 %v2535
      %v2600 = vpop.f32.mrf.mxu0
      %v2601 = vadd.f32 0.0, %v2600
      %v2602 = vpop.f32.mrf.mxu0
      %v2603 = vadd.f32 0.0, %v2602
      %2604 = vmatmul.bf16.gmra.mxu0 %v2538
      %v2605 = vpop.f32.mrf.mxu0
      %v2606 = vadd.f32 0.0, %v2605
      %v2607 = vpop.f32.mrf.mxu0
      %v2608 = vadd.f32 0.0, %v2607
      %2609 = vmatmul.bf16.gmra.mxu0 %v2541
      %v2610 = vpop.f32.mrf.mxu0
      %v2611 = vadd.f32 0.0, %v2610
      %v2612 = vpop.f32.mrf.mxu0
      %v2613 = vadd.f32 0.0, %v2612
      %2614 = vmatmul.bf16.gmra.mxu0 %v2544
      %v2615 = vpop.f32.mrf.mxu0
      %v2616 = vadd.f32 0.0, %v2615
      %v2617 = vpop.f32.mrf.mxu0
      %v2618 = vadd.f32 0.0, %v2617
      %2619 = vmatmul.bf16.gmra.mxu0 %v2547
      %v2620 = vpop.f32.mrf.mxu0
      %v2621 = vadd.f32 0.0, %v2620
      %v2622 = vpop.f32.mrf.mxu0
      %v2623 = vadd.f32 0.0, %v2622
      %2624 = vmatmul.bf16.gmra.mxu0 %v2550
      %v2625 = vpop.f32.mrf.mxu0
      %v2626 = vadd.f32 0.0, %v2625
      %v2627 = vpop.f32.mrf.mxu0
      %v2628 = vadd.f32 0.0, %v2627
      %2629 = vmatmul.bf16.gmra.mxu0 %v2553
      %v2630 = vpop.f32.mrf.mxu0
      %v2631 = vadd.f32 0.0, %v2630
      %v2632 = vpop.f32.mrf.mxu0
      %v2633 = vadd.f32 0.0, %v2632
      %2634 = vmatmul.bf16.gmra.mxu0 %v2556
      %v2635 = vpop.f32.mrf.mxu0
      %v2636 = vadd.f32 0.0, %v2635
      %v2637 = vpop.f32.mrf.mxu0
      %v2638 = vadd.f32 0.0, %v2637
      %2639 = vmatmul.bf16.gmra.mxu0 %v2559
      %v2640 = vpop.f32.mrf.mxu0
      %v2641 = vadd.f32 0.0, %v2640
      %v2642 = vpop.f32.mrf.mxu0
      %v2643 = vadd.f32 0.0, %v2642
      %2644 = vmatmul.bf16.gmra.mxu0 %v2562
      %v2645 = vpop.f32.mrf.mxu0
      %v2646 = vadd.f32 0.0, %v2645
      %v2647 = vpop.f32.mrf.mxu0
      %v2648 = vadd.f32 0.0, %v2647
      %2649 = vmatmul.bf16.gmra.mxu0 %v2565
      %v2650 = vpop.f32.mrf.mxu0
      %v2651 = vadd.f32 0.0, %v2650
      %v2652 = vpop.f32.mrf.mxu0
      %v2653 = vadd.f32 0.0, %v2652
      %2654 = vmatmul.bf16.gmra.mxu0 %v2568
      %v2655 = vpop.f32.mrf.mxu0
      %v2656 = vadd.f32 0.0, %v2655
      %v2657 = vpop.f32.mrf.mxu0
      %v2658 = vadd.f32 0.0, %v2657
      %2659 = vmatmul.bf16.gmra.mxu0 %v2571
      %v2660 = vpop.f32.mrf.mxu0
      %v2661 = vadd.f32 0.0, %v2660
      %v2662 = vpop.f32.mrf.mxu0
      %v2663 = vadd.f32 0.0, %v2662
      %2664 = vmatmul.bf16.gmra.mxu0 %v2574
      %v2665 = vpop.f32.mrf.mxu0
      %v2666 = vadd.f32 0.0, %v2665
      %v2667 = vpop.f32.mrf.mxu0
      %v2668 = vadd.f32 0.0, %v2667
      %2669 = vmatmul.bf16.gmra.mxu0 %v2577
      %v2670 = vpop.f32.mrf.mxu0
      %v2671 = vadd.f32 0.0, %v2670
      %v2672 = vpop.f32.mrf.mxu0
      %v2673 = vadd.f32 0.0, %v2672
      %2674 = vmatmul.bf16.gmra.mxu0 %v2580
      %v2675 = vpop.f32.mrf.mxu0
      %v2676 = vadd.f32 0.0, %v2675
      %v2677 = vpop.f32.mrf.mxu0
      %v2678 = vadd.f32 0.0, %v2677
      %2679 = vmatmul.bf16.gmra.mxu0 %v2583
      %v2680 = vpop.f32.mrf.mxu0
      %v2681 = vadd.f32 0.0, %v2680
      %v2682 = vpop.f32.mrf.mxu0
      %v2683 = vadd.f32 0.0, %v2682
      %2684 = vmatmul.bf16.gmra.mxu0 %v2586
      %v2685 = vpop.f32.mrf.mxu0
      %v2686 = vadd.f32 0.0, %v2685
      %v2687 = vpop.f32.mrf.mxu0
      %v2688 = vadd.f32 0.0, %v2687
      %2689 = vdwg.mxu0
      %v2690 = vadd.f32 %v2321, %v2601
      %v2691 = vadd.f32 %v2322, %v2603
      %v2692 = vadd.f32 %v2323, %v2606
      %v2693 = vadd.f32 %v2324, %v2608
      %v2694 = vadd.f32 %v2325, %v2611
      %v2695 = vadd.f32 %v2326, %v2613
      %v2696 = vadd.f32 %v2327, %v2616
      %v2697 = vadd.f32 %v2328, %v2618
      %v2698 = vadd.f32 %v2329, %v2621
      %v2699 = vadd.f32 %v2330, %v2623
      %v2700 = vadd.f32 %v2331, %v2626
      %v2701 = vadd.f32 %v2332, %v2628
      %v2702 = vadd.f32 %v2333, %v2631
      %v2703 = vadd.f32 %v2334, %v2633
      %v2704 = vadd.f32 %v2335, %v2636
      %v2705 = vadd.f32 %v2336, %v2638
      %v2706 = vadd.f32 %v2337, %v2641
      %v2707 = vadd.f32 %v2338, %v2643
      %v2708 = vadd.f32 %v2339, %v2646
      %v2709 = vadd.f32 %v2340, %v2648
      %v2710 = vadd.f32 %v2341, %v2651
      %v2711 = vadd.f32 %v2342, %v2653
      %v2712 = vadd.f32 %v2343, %v2656
      %v2713 = vadd.f32 %v2344, %v2658
      %v2714 = vadd.f32 %v2345, %v2661
      %v2715 = vadd.f32 %v2346, %v2663
      %v2716 = vadd.f32 %v2347, %v2666
      %v2717 = vadd.f32 %v2348, %v2668
      %v2718 = vadd.f32 %v2349, %v2671
      %v2719 = vadd.f32 %v2350, %v2673
      %v2720 = vadd.f32 %v2351, %v2676
      %v2721 = vadd.f32 %v2352, %v2678
      %v2722 = vadd.f32 %v2353, %v2681
      %v2723 = vadd.f32 %v2354, %v2683
      %v2724 = vadd.f32 %v2355, %v2686
      %v2725 = vadd.f32 %v2356, %v2688
      %v2726 = vld [vmem:[%s203 + $0x10] sm:$0x8]
      %s2727 = scalar_lea.vmem %s1, 16
      %v2728 = vld [vmem:[%s2727] sm:$0x3]
      %v2730 = vunpack.c.l.b16 %v2726
      %v2731 = vpack.c.b16 %v2073, %v2730
      %vm2732 = vcmask 1044480
      %v2733 = vrot.slane %v2731, 3
      %v2734 = vrot.slane %v2110, 3
      %v2735 = vsel %vm2732, %v2733, %v2734
      %v2736 = vrot.slane %v2111, 3
      %v2737 = vsel %vm2732, %v2734, %v2736
      %v2738 = vrot.slane %v2112, 3
      %v2739 = vsel %vm2732, %v2736, %v2738
      %v2740 = vrot.slane %v2113, 3
      %v2741 = vsel %vm2732, %v2738, %v2740
      %v2742 = vrot.slane %v2114, 3
      %v2743 = vsel %vm2732, %v2740, %v2742
      %v2744 = vrot.slane %v2115, 3
      %v2745 = vsel %vm2732, %v2742, %v2744
      %v2746 = vrot.slane %v2116, 3
      %v2747 = vsel %vm2732, %v2744, %v2746
      %v2748 = vrot.slane %v2117, 3
      %v2749 = vsel %vm2732, %v2746, %v2748
      %v2750 = vrot.slane %v2118, 3
      %v2751 = vsel %vm2732, %v2748, %v2750
      %v2752 = vrot.slane %v2119, 3
      %v2753 = vsel %vm2732, %v2750, %v2752
      %v2754 = vrot.slane %v2120, 3
      %v2755 = vsel %vm2732, %v2752, %v2754
      %v2756 = vrot.slane %v2121, 3
      %v2757 = vsel %vm2732, %v2754, %v2756
      %v2758 = vrot.slane %v2122, 3
      %v2759 = vsel %vm2732, %v2756, %v2758
      %v2760 = vrot.slane %v2123, 3
      %v2761 = vsel %vm2732, %v2758, %v2760
      %v2762 = vrot.slane %v2124, 3
      %v2763 = vsel %vm2732, %v2760, %v2762
      %v2764 = vrot.slane %v2125, 3
      %v2765 = vsel %vm2732, %v2762, %v2764
      %v2766 = vrot.slane %v2126, 3
      %v2767 = vsel %vm2732, %v2764, %v2766
      %v2768 = vrot.slane %v2362, 3
      %v2769 = vsel %vm2732, %v2766, %v2768
      %v2771 = vsel %vm498, %v2735, 0
      %v2774 = vsel %vm498, %v2737, 0
      %v2777 = vsel %vm498, %v2739, 0
      %v2780 = vsel %vm498, %v2741, 0
      %v2783 = vsel %vm498, %v2743, 0
      %v2786 = vsel %vm498, %v2745, 0
      %v2789 = vsel %vm498, %v2747, 0
      %v2792 = vsel %vm498, %v2749, 0
      %v2795 = vsel %vm498, %v2751, 0
      %v2798 = vsel %vm498, %v2753, 0
      %v2801 = vsel %vm498, %v2755, 0
      %v2804 = vsel %vm498, %v2757, 0
      %v2807 = vsel %vm498, %v2759, 0
      %v2810 = vsel %vm498, %v2761, 0
      %v2813 = vsel %vm498, %v2763, 0
      %v2816 = vsel %vm498, %v2765, 0
      %v2819 = vsel %vm498, %v2767, 0
      %v2822 = vsel %vm498, %v2769, 0
      %v2825 = vsel %vm553, %v2728, 0
      %2827 = vmatpush.bf16.msra.mxu0 0
      %2828 = vmatpush.bf16.msra.mxu0 0
      %2829 = vmatpush.bf16.msra.mxu0 0
      %2830 = vmatpush.bf16.msra.mxu0 0
      %2831 = vmatpush.bf16.msra.mxu0 0
      %2832 = vmatpush.bf16.msra.mxu0 0
      %2833 = vmatpush.bf16.msra.mxu0 0
      %2834 = vmatpush.bf16.msra.mxu0 %v2825
      %2835 = vmatmul.bf16.gmra.mxu0 %v2771
      %v2836 = vpop.f32.mrf.mxu0
      %v2837 = vadd.f32 0.0, %v2836
      %v2838 = vpop.f32.mrf.mxu0
      %v2839 = vadd.f32 0.0, %v2838
      %2840 = vmatmul.bf16.gmra.mxu0 %v2774
      %v2841 = vpop.f32.mrf.mxu0
      %v2842 = vadd.f32 0.0, %v2841
      %v2843 = vpop.f32.mrf.mxu0
      %v2844 = vadd.f32 0.0, %v2843
      %2845 = vmatmul.bf16.gmra.mxu0 %v2777
      %v2846 = vpop.f32.mrf.mxu0
      %v2847 = vadd.f32 0.0, %v2846
      %v2848 = vpop.f32.mrf.mxu0
      %v2849 = vadd.f32 0.0, %v2848
      %2850 = vmatmul.bf16.gmra.mxu0 %v2780
      %v2851 = vpop.f32.mrf.mxu0
      %v2852 = vadd.f32 0.0, %v2851
      %v2853 = vpop.f32.mrf.mxu0
      %v2854 = vadd.f32 0.0, %v2853
      %2855 = vmatmul.bf16.gmra.mxu0 %v2783
      %v2856 = vpop.f32.mrf.mxu0
      %v2857 = vadd.f32 0.0, %v2856
      %v2858 = vpop.f32.mrf.mxu0
      %v2859 = vadd.f32 0.0, %v2858
      %2860 = vmatmul.bf16.gmra.mxu0 %v2786
      %v2861 = vpop.f32.mrf.mxu0
      %v2862 = vadd.f32 0.0, %v2861
      %v2863 = vpop.f32.mrf.mxu0
      %v2864 = vadd.f32 0.0, %v2863
      %2865 = vmatmul.bf16.gmra.mxu0 %v2789
      %v2866 = vpop.f32.mrf.mxu0
      %v2867 = vadd.f32 0.0, %v2866
      %v2868 = vpop.f32.mrf.mxu0
      %v2869 = vadd.f32 0.0, %v2868
      %2870 = vmatmul.bf16.gmra.mxu0 %v2792
      %v2871 = vpop.f32.mrf.mxu0
      %v2872 = vadd.f32 0.0, %v2871
      %v2873 = vpop.f32.mrf.mxu0
      %v2874 = vadd.f32 0.0, %v2873
      %2875 = vmatmul.bf16.gmra.mxu0 %v2795
      %v2876 = vpop.f32.mrf.mxu0
      %v2877 = vadd.f32 0.0, %v2876
      %v2878 = vpop.f32.mrf.mxu0
      %v2879 = vadd.f32 0.0, %v2878
      %2880 = vmatmul.bf16.gmra.mxu0 %v2798
      %v2881 = vpop.f32.mrf.mxu0
      %v2882 = vadd.f32 0.0, %v2881
      %v2883 = vpop.f32.mrf.mxu0
      %v2884 = vadd.f32 0.0, %v2883
      %2885 = vmatmul.bf16.gmra.mxu0 %v2801
      %v2886 = vpop.f32.mrf.mxu0
      %v2887 = vadd.f32 0.0, %v2886
      %v2888 = vpop.f32.mrf.mxu0
      %v2889 = vadd.f32 0.0, %v2888
      %2890 = vmatmul.bf16.gmra.mxu0 %v2804
      %v2891 = vpop.f32.mrf.mxu0
      %v2892 = vadd.f32 0.0, %v2891
      %v2893 = vpop.f32.mrf.mxu0
      %v2894 = vadd.f32 0.0, %v2893
      %2895 = vmatmul.bf16.gmra.mxu0 %v2807
      %v2896 = vpop.f32.mrf.mxu0
      %v2897 = vadd.f32 0.0, %v2896
      %v2898 = vpop.f32.mrf.mxu0
      %v2899 = vadd.f32 0.0, %v2898
      %2900 = vmatmul.bf16.gmra.mxu0 %v2810
      %v2901 = vpop.f32.mrf.mxu0
      %v2902 = vadd.f32 0.0, %v2901
      %v2903 = vpop.f32.mrf.mxu0
      %v2904 = vadd.f32 0.0, %v2903
      %2905 = vmatmul.bf16.gmra.mxu0 %v2813
      %v2906 = vpop.f32.mrf.mxu0
      %v2907 = vadd.f32 0.0, %v2906
      %v2908 = vpop.f32.mrf.mxu0
      %v2909 = vadd.f32 0.0, %v2908
      %2910 = vmatmul.bf16.gmra.mxu0 %v2816
      %v2911 = vpop.f32.mrf.mxu0
      %v2912 = vadd.f32 0.0, %v2911
      %v2913 = vpop.f32.mrf.mxu0
      %v2914 = vadd.f32 0.0, %v2913
      %2915 = vmatmul.bf16.gmra.mxu0 %v2819
      %v2916 = vpop.f32.mrf.mxu0
      %v2917 = vadd.f32 0.0, %v2916
      %v2918 = vpop.f32.mrf.mxu0
      %v2919 = vadd.f32 0.0, %v2918
      %2920 = vmatmul.bf16.gmra.mxu0 %v2822
      %v2921 = vpop.f32.mrf.mxu0
      %v2922 = vadd.f32 0.0, %v2921
      %v2923 = vpop.f32.mrf.mxu0
      %v2924 = vadd.f32 0.0, %v2923
      %2925 = vdwg.mxu0
      %v2926 = vadd.f32 %v2690, %v2837
      %v2927 = vadd.f32 %v2691, %v2839
      %v2928 = vadd.f32 %v2692, %v2842
      %v2929 = vadd.f32 %v2693, %v2844
      %v2930 = vadd.f32 %v2694, %v2847
      %v2931 = vadd.f32 %v2695, %v2849
      %v2932 = vadd.f32 %v2696, %v2852
      %v2933 = vadd.f32 %v2697, %v2854
      %v2934 = vadd.f32 %v2698, %v2857
      %v2935 = vadd.f32 %v2699, %v2859
      %v2936 = vadd.f32 %v2700, %v2862
      %v2937 = vadd.f32 %v2701, %v2864
      %v2938 = vadd.f32 %v2702, %v2867
      %v2939 = vadd.f32 %v2703, %v2869
      %v2940 = vadd.f32 %v2704, %v2872
      %v2941 = vadd.f32 %v2705, %v2874
      %v2942 = vadd.f32 %v2706, %v2877
      %v2943 = vadd.f32 %v2707, %v2879
      %v2944 = vadd.f32 %v2708, %v2882
      %v2945 = vadd.f32 %v2709, %v2884
      %v2946 = vadd.f32 %v2710, %v2887
      %v2947 = vadd.f32 %v2711, %v2889
      %v2948 = vadd.f32 %v2712, %v2892
      %v2949 = vadd.f32 %v2713, %v2894
      %v2950 = vadd.f32 %v2714, %v2897
      %v2951 = vadd.f32 %v2715, %v2899
      %v2952 = vadd.f32 %v2716, %v2902
      %v2953 = vadd.f32 %v2717, %v2904
      %v2954 = vadd.f32 %v2718, %v2907
      %v2955 = vadd.f32 %v2719, %v2909
      %v2956 = vadd.f32 %v2720, %v2912
      %v2957 = vadd.f32 %v2721, %v2914
      %v2958 = vadd.f32 %v2722, %v2917
      %v2959 = vadd.f32 %v2723, %v2919
      %v2960 = vadd.f32 %v2724, %v2922
      %v2961 = vadd.f32 %v2725, %v2924
      %2962 = vst [vmem:[%s208] sm:$0xff] %v2926
      %2963 = vst [vmem:[%s208 + $0x8] sm:$0xff] %v2927
      %2964 = vst [vmem:[%s208 + $0x10] sm:$0xff] %v2928
      %2965 = vst [vmem:[%s208 + $0x18] sm:$0xff] %v2929
      %2966 = vst [vmem:[%s208 + $0x20] sm:$0xff] %v2930
      %2967 = vst [vmem:[%s208 + $0x28] sm:$0xff] %v2931
      %2968 = vst [vmem:[%s208 + $0x30] sm:$0xff] %v2932
      %2969 = vst [vmem:[%s208 + $0x38] sm:$0xff] %v2933
      %2970 = vst [vmem:[%s208 + $0x40] sm:$0xff] %v2934
      %2971 = vst [vmem:[%s208 + $0x48] sm:$0xff] %v2935
      %2972 = vst [vmem:[%s208 + $0x50] sm:$0xff] %v2936
      %2973 = vst [vmem:[%s208 + $0x58] sm:$0xff] %v2937
      %2974 = vst [vmem:[%s208 + $0x60] sm:$0xff] %v2938
      %2975 = vst [vmem:[%s208 + $0x68] sm:$0xff] %v2939
      %2976 = vst [vmem:[%s208 + $0x70] sm:$0xff] %v2940
      %2977 = vst [vmem:[%s208 + $0x78] sm:$0xff] %v2941
      %2978 = vst [vmem:[%s208 + $0x80] sm:$0xff] %v2942
      %2979 = vst [vmem:[%s208 + $0x88] sm:$0xff] %v2943
      %2980 = vst [vmem:[%s208 + $0x90] sm:$0xff] %v2944
      %2981 = vst [vmem:[%s208 + $0x98] sm:$0xff] %v2945
      %2982 = vst [vmem:[%s208 + $0xa0] sm:$0xff] %v2946
      %2983 = vst [vmem:[%s208 + $0xa8] sm:$0xff] %v2947
      %2984 = vst [vmem:[%s208 + $0xb0] sm:$0xff] %v2948
      %2985 = vst [vmem:[%s208 + $0xb8] sm:$0xff] %v2949
      %2986 = vst [vmem:[%s208 + $0xc0] sm:$0xff] %v2950
      %2987 = vst [vmem:[%s208 + $0xc8] sm:$0xff] %v2951
      %2988 = vst [vmem:[%s208 + $0xd0] sm:$0xff] %v2952
      %2989 = vst [vmem:[%s208 + $0xd8] sm:$0xff] %v2953
      %2990 = vst [vmem:[%s208 + $0xe0] sm:$0xff] %v2954
      %2991 = vst [vmem:[%s208 + $0xe8] sm:$0xff] %v2955
      %2992 = vst [vmem:[%s208 + $0xf0] sm:$0xff] %v2956
      %2993 = vst [vmem:[%s208 + $0xf8] sm:$0xff] %v2957
      %2994 = vst [vmem:[%s208 + $0x100] sm:$0xff] %v2958
      %2995 = vst [vmem:[%s208 + $0x108] sm:$0xff] %v2959
      %2996 = vst [vmem:[%s208 + $0x110] sm:$0xff] %v2960
      %2997 = vst [vmem:[%s208 + $0x118] sm:$0xff] %v2961
      %v2998 = vlaneseq
      %v2999 = vshrl.u32 %v2998, 7
      %v3000 = vadd.s32 %v2999, 8
      %v3001 = vadd.s32 %v2999, 16
      %v3002 = vadd.s32 %v2999, 24
      %v3003 = vadd.s32 %v2999, 32
      %v3004 = vadd.s32 %v2999, 40
      %v3005 = vadd.s32 %v2999, 48
      %v3006 = vadd.s32 %v2999, 56
      %v3007 = vadd.s32 %v2999, 64
      %v3008 = vadd.s32 %v2999, 72
      %v3009 = vadd.s32 %v2999, 80
      %v3010 = vadd.s32 %v2999, 88
      %v3011 = vadd.s32 %v2999, 96
      %v3012 = vadd.s32 %v2999, 104
      %v3013 = vadd.s32 %v2999, 112
      %v3014 = vadd.s32 %v2999, 120
      %v3015 = vadd.s32 %v2999, 128
      %v3016 = vadd.s32 %v2999, 136
      %v3017 = vadd.s32 %v2999, 144
      %v3018 = vadd.s32 %v2999, 152
      %v3019 = vadd.s32 %v2999, 160
      %v3020 = vadd.s32 %v2999, 168
      %v3021 = vadd.s32 %v2999, 176
      %v3022 = vadd.s32 %v2999, 184
      %v3023 = vadd.s32 %v2999, 192
      %v3024 = vadd.s32 %v2999, 200
      %v3025 = vadd.s32 %v2999, 208
      %v3026 = vadd.s32 %v2999, 216
      %v3027 = vadd.s32 %v2999, 224
      %v3028 = vadd.s32 %v2999, 232
      %v3029 = vadd.s32 %v2999, 240
      %v3030 = vadd.s32 %v2999, 248
      %v3031 = vadd.s32 %v2999, 256
      %v3032 = vadd.s32 %v2999, 264
      %v3033 = vadd.s32 %v2999, 272
      %v3034 = vadd.s32 %v2999, 280
      %vm3035 = vcmp.lt.s32.totalorder %v2999, 0
      %v3036 = vsub.s32 0, %v2999
      %v3037 = vsel %vm3035, %v3036, %v2999
      %v3038 = vand.u32 %v3037, 65535
      %v3039 = vshrl.u32 %v3037, 16
      %v3041 = vmul.u32 %v3038, 14564
      %v3042 = vmul.u32 %v3038, 58254
      %v3043 = vmul.u32 %v3039, 14564
      %v3044 = vmul.u32 %v3039, 58254
      %v3045 = vshll.u32 %v3042, 16
      %v3046 = vshrl.u32 %v3042, 16
      %v3047 = vshll.u32 %v3043, 16
      %v3048 = vshrl.u32 %v3043, 16
      %vm3049 = vc.u32 %v3041, %v3045
      %v3050 = vsel %vm3049, 1, 0
      %v3051 = vadd.s32 %v3041, %v3045
      %v3052 = vadd.s32 %v3044, %v3050
      %vm3053 = vc.u32 %v3051, %v3047
      %v3054 = vsel %vm3053, 1, 0
      %v3055 = vadd.s32 %v3051, %v3047
      %v3056 = vadd.s32 %v3052, %v3054
      %v3057 = vadd.s32 %v3056, %v3046
      %v3058 = vadd.s32 %v3057, %v3048
      %v3059 = vshrl.u32 %v3058, 4
      %v3060 = vmul.u32 %v3059, 18
      %v3061 = vsub.s32 %v3037, %v3060
      %v3062 = vsub.s32 0, %v3061
      %v3063 = vsel %vm3035, %v3062, %v3061
      %vm3064 = vcmp.lt.s32.totalorder %v3000, 0
      %v3065 = vsub.s32 0, %v3000
      %v3066 = vsel %vm3064, %v3065, %v3000
      %v3067 = vand.u32 %v3066, 65535
      %v3068 = vshrl.u32 %v3066, 16
      %v3070 = vmul.u32 %v3067, 14564
      %v3071 = vmul.u32 %v3067, 58254
      %v3072 = vmul.u32 %v3068, 14564
      %v3073 = vmul.u32 %v3068, 58254
      %v3074 = vshll.u32 %v3071, 16
      %v3075 = vshrl.u32 %v3071, 16
      %v3076 = vshll.u32 %v3072, 16
      %v3077 = vshrl.u32 %v3072, 16
      %vm3078 = vc.u32 %v3070, %v3074
      %v3079 = vsel %vm3078, 1, 0
      %v3080 = vadd.s32 %v3070, %v3074
      %v3081 = vadd.s32 %v3073, %v3079
      %vm3082 = vc.u32 %v3080, %v3076
      %v3083 = vsel %vm3082, 1, 0
      %v3084 = vadd.s32 %v3080, %v3076
      %v3085 = vadd.s32 %v3081, %v3083
      %v3086 = vadd.s32 %v3085, %v3075
      %v3087 = vadd.s32 %v3086, %v3077
      %v3088 = vshrl.u32 %v3087, 4
      %v3089 = vmul.u32 %v3088, 18
      %v3090 = vsub.s32 %v3066, %v3089
      %v3091 = vsub.s32 0, %v3090
      %v3092 = vsel %vm3064, %v3091, %v3090
      %vm3093 = vcmp.lt.s32.totalorder %v3001, 0
      %v3094 = vsub.s32 0, %v3001
      %v3095 = vsel %vm3093, %v3094, %v3001
      %v3096 = vand.u32 %v3095, 65535
      %v3097 = vshrl.u32 %v3095, 16
      %v3099 = vmul.u32 %v3096, 14564
      %v3100 = vmul.u32 %v3096, 58254
      %v3101 = vmul.u32 %v3097, 14564
      %v3102 = vmul.u32 %v3097, 58254
      %v3103 = vshll.u32 %v3100, 16
      %v3104 = vshrl.u32 %v3100, 16
      %v3105 = vshll.u32 %v3101, 16
      %v3106 = vshrl.u32 %v3101, 16
      %vm3107 = vc.u32 %v3099, %v3103
      %v3108 = vsel %vm3107, 1, 0
      %v3109 = vadd.s32 %v3099, %v3103
      %v3110 = vadd.s32 %v3102, %v3108
      %vm3111 = vc.u32 %v3109, %v3105
      %v3112 = vsel %vm3111, 1, 0
      %v3113 = vadd.s32 %v3109, %v3105
      %v3114 = vadd.s32 %v3110, %v3112
      %v3115 = vadd.s32 %v3114, %v3104
      %v3116 = vadd.s32 %v3115, %v3106
      %v3117 = vshrl.u32 %v3116, 4
      %v3118 = vmul.u32 %v3117, 18
      %v3119 = vsub.s32 %v3095, %v3118
      %v3120 = vsub.s32 0, %v3119
      %v3121 = vsel %vm3093, %v3120, %v3119
      %vm3122 = vcmp.lt.s32.totalorder %v3002, 0
      %v3123 = vsub.s32 0, %v3002
      %v3124 = vsel %vm3122, %v3123, %v3002
      %v3125 = vand.u32 %v3124, 65535
      %v3126 = vshrl.u32 %v3124, 16
      %v3128 = vmul.u32 %v3125, 14564
      %v3129 = vmul.u32 %v3125, 58254
      %v3130 = vmul.u32 %v3126, 14564
      %v3131 = vmul.u32 %v3126, 58254
      %v3132 = vshll.u32 %v3129, 16
      %v3133 = vshrl.u32 %v3129, 16
      %v3134 = vshll.u32 %v3130, 16
      %v3135 = vshrl.u32 %v3130, 16
      %vm3136 = vc.u32 %v3128, %v3132
      %v3137 = vsel %vm3136, 1, 0
      %v3138 = vadd.s32 %v3128, %v3132
      %v3139 = vadd.s32 %v3131, %v3137
      %vm3140 = vc.u32 %v3138, %v3134
      %v3141 = vsel %vm3140, 1, 0
      %v3142 = vadd.s32 %v3138, %v3134
      %v3143 = vadd.s32 %v3139, %v3141
      %v3144 = vadd.s32 %v3143, %v3133
      %v3145 = vadd.s32 %v3144, %v3135
      %v3146 = vshrl.u32 %v3145, 4
      %v3147 = vmul.u32 %v3146, 18
      %v3148 = vsub.s32 %v3124, %v3147
      %v3149 = vsub.s32 0, %v3148
      %v3150 = vsel %vm3122, %v3149, %v3148
      %vm3151 = vcmp.lt.s32.totalorder %v3003, 0
      %v3152 = vsub.s32 0, %v3003
      %v3153 = vsel %vm3151, %v3152, %v3003
      %v3154 = vand.u32 %v3153, 65535
      %v3155 = vshrl.u32 %v3153, 16
      %v3157 = vmul.u32 %v3154, 14564
      %v3158 = vmul.u32 %v3154, 58254
      %v3159 = vmul.u32 %v3155, 14564
      %v3160 = vmul.u32 %v3155, 58254
      %v3161 = vshll.u32 %v3158, 16
      %v3162 = vshrl.u32 %v3158, 16
      %v3163 = vshll.u32 %v3159, 16
      %v3164 = vshrl.u32 %v3159, 16
      %vm3165 = vc.u32 %v3157, %v3161
      %v3166 = vsel %vm3165, 1, 0
      %v3167 = vadd.s32 %v3157, %v3161
      %v3168 = vadd.s32 %v3160, %v3166
      %vm3169 = vc.u32 %v3167, %v3163
      %v3170 = vsel %vm3169, 1, 0
      %v3171 = vadd.s32 %v3167, %v3163
      %v3172 = vadd.s32 %v3168, %v3170
      %v3173 = vadd.s32 %v3172, %v3162
      %v3174 = vadd.s32 %v3173, %v3164
      %v3175 = vshrl.u32 %v3174, 4
      %v3176 = vmul.u32 %v3175, 18
      %v3177 = vsub.s32 %v3153, %v3176
      %v3178 = vsub.s32 0, %v3177
      %v3179 = vsel %vm3151, %v3178, %v3177
      %vm3180 = vcmp.lt.s32.totalorder %v3004, 0
      %v3181 = vsub.s32 0, %v3004
      %v3182 = vsel %vm3180, %v3181, %v3004
      %v3183 = vand.u32 %v3182, 65535
      %v3184 = vshrl.u32 %v3182, 16
      %v3186 = vmul.u32 %v3183, 14564
      %v3187 = vmul.u32 %v3183, 58254
      %v3188 = vmul.u32 %v3184, 14564
      %v3189 = vmul.u32 %v3184, 58254
      %v3190 = vshll.u32 %v3187, 16
      %v3191 = vshrl.u32 %v3187, 16
      %v3192 = vshll.u32 %v3188, 16
      %v3193 = vshrl.u32 %v3188, 16
      %vm3194 = vc.u32 %v3186, %v3190
      %v3195 = vsel %vm3194, 1, 0
      %v3196 = vadd.s32 %v3186, %v3190
      %v3197 = vadd.s32 %v3189, %v3195
      %vm3198 = vc.u32 %v3196, %v3192
      %v3199 = vsel %vm3198, 1, 0
      %v3200 = vadd.s32 %v3196, %v3192
      %v3201 = vadd.s32 %v3197, %v3199
      %v3202 = vadd.s32 %v3201, %v3191
      %v3203 = vadd.s32 %v3202, %v3193
      %v3204 = vshrl.u32 %v3203, 4
      %v3205 = vmul.u32 %v3204, 18
      %v3206 = vsub.s32 %v3182, %v3205
      %v3207 = vsub.s32 0, %v3206
      %v3208 = vsel %vm3180, %v3207, %v3206
      %vm3209 = vcmp.lt.s32.totalorder %v3005, 0
      %v3210 = vsub.s32 0, %v3005
      %v3211 = vsel %vm3209, %v3210, %v3005
      %v3212 = vand.u32 %v3211, 65535
      %v3213 = vshrl.u32 %v3211, 16
      %v3215 = vmul.u32 %v3212, 14564
      %v3216 = vmul.u32 %v3212, 58254
      %v3217 = vmul.u32 %v3213, 14564
      %v3218 = vmul.u32 %v3213, 58254
      %v3219 = vshll.u32 %v3216, 16
      %v3220 = vshrl.u32 %v3216, 16
      %v3221 = vshll.u32 %v3217, 16
      %v3222 = vshrl.u32 %v3217, 16
      %vm3223 = vc.u32 %v3215, %v3219
      %v3224 = vsel %vm3223, 1, 0
      %v3225 = vadd.s32 %v3215, %v3219
      %v3226 = vadd.s32 %v3218, %v3224
      %vm3227 = vc.u32 %v3225, %v3221
      %v3228 = vsel %vm3227, 1, 0
      %v3229 = vadd.s32 %v3225, %v3221
      %v3230 = vadd.s32 %v3226, %v3228
      %v3231 = vadd.s32 %v3230, %v3220
      %v3232 = vadd.s32 %v3231, %v3222
      %v3233 = vshrl.u32 %v3232, 4
      %v3234 = vmul.u32 %v3233, 18
      %v3235 = vsub.s32 %v3211, %v3234
      %v3236 = vsub.s32 0, %v3235
      %v3237 = vsel %vm3209, %v3236, %v3235
      %vm3238 = vcmp.lt.s32.totalorder %v3006, 0
      %v3239 = vsub.s32 0, %v3006
      %v3240 = vsel %vm3238, %v3239, %v3006
      %v3241 = vand.u32 %v3240, 65535
      %v3242 = vshrl.u32 %v3240, 16
      %v3244 = vmul.u32 %v3241, 14564
      %v3245 = vmul.u32 %v3241, 58254
      %v3246 = vmul.u32 %v3242, 14564
      %v3247 = vmul.u32 %v3242, 58254
      %v3248 = vshll.u32 %v3245, 16
      %v3249 = vshrl.u32 %v3245, 16
      %v3250 = vshll.u32 %v3246, 16
      %v3251 = vshrl.u32 %v3246, 16
      %vm3252 = vc.u32 %v3244, %v3248
      %v3253 = vsel %vm3252, 1, 0
      %v3254 = vadd.s32 %v3244, %v3248
      %v3255 = vadd.s32 %v3247, %v3253
      %vm3256 = vc.u32 %v3254, %v3250
      %v3257 = vsel %vm3256, 1, 0
      %v3258 = vadd.s32 %v3254, %v3250
      %v3259 = vadd.s32 %v3255, %v3257
      %v3260 = vadd.s32 %v3259, %v3249
      %v3261 = vadd.s32 %v3260, %v3251
      %v3262 = vshrl.u32 %v3261, 4
      %v3263 = vmul.u32 %v3262, 18
      %v3264 = vsub.s32 %v3240, %v3263
      %v3265 = vsub.s32 0, %v3264
      %v3266 = vsel %vm3238, %v3265, %v3264
      %vm3267 = vcmp.lt.s32.totalorder %v3007, 0
      %v3268 = vsub.s32 0, %v3007
      %v3269 = vsel %vm3267, %v3268, %v3007
      %v3270 = vand.u32 %v3269, 65535
      %v3271 = vshrl.u32 %v3269, 16
      %v3273 = vmul.u32 %v3270, 14564
      %v3274 = vmul.u32 %v3270, 58254
      %v3275 = vmul.u32 %v3271, 14564
      %v3276 = vmul.u32 %v3271, 58254
      %v3277 = vshll.u32 %v3274, 16
      %v3278 = vshrl.u32 %v3274, 16
      %v3279 = vshll.u32 %v3275, 16
      %v3280 = vshrl.u32 %v3275, 16
      %vm3281 = vc.u32 %v3273, %v3277
      %v3282 = vsel %vm3281, 1, 0
      %v3283 = vadd.s32 %v3273, %v3277
      %v3284 = vadd.s32 %v3276, %v3282
      %vm3285 = vc.u32 %v3283, %v3279
      %v3286 = vsel %vm3285, 1, 0
      %v3287 = vadd.s32 %v3283, %v3279
      %v3288 = vadd.s32 %v3284, %v3286
      %v3289 = vadd.s32 %v3288, %v3278
      %v3290 = vadd.s32 %v3289, %v3280
      %v3291 = vshrl.u32 %v3290, 4
      %v3292 = vmul.u32 %v3291, 18
      %v3293 = vsub.s32 %v3269, %v3292
      %v3294 = vsub.s32 0, %v3293
      %v3295 = vsel %vm3267, %v3294, %v3293
      %vm3296 = vcmp.lt.s32.totalorder %v3008, 0
      %v3297 = vsub.s32 0, %v3008
      %v3298 = vsel %vm3296, %v3297, %v3008
      %v3299 = vand.u32 %v3298, 65535
      %v3300 = vshrl.u32 %v3298, 16
      %v3302 = vmul.u32 %v3299, 14564
      %v3303 = vmul.u32 %v3299, 58254
      %v3304 = vmul.u32 %v3300, 14564
      %v3305 = vmul.u32 %v3300, 58254
      %v3306 = vshll.u32 %v3303, 16
      %v3307 = vshrl.u32 %v3303, 16
      %v3308 = vshll.u32 %v3304, 16
      %v3309 = vshrl.u32 %v3304, 16
      %vm3310 = vc.u32 %v3302, %v3306
      %v3311 = vsel %vm3310, 1, 0
      %v3312 = vadd.s32 %v3302, %v3306
      %v3313 = vadd.s32 %v3305, %v3311
      %vm3314 = vc.u32 %v3312, %v3308
      %v3315 = vsel %vm3314, 1, 0
      %v3316 = vadd.s32 %v3312, %v3308
      %v3317 = vadd.s32 %v3313, %v3315
      %v3318 = vadd.s32 %v3317, %v3307
      %v3319 = vadd.s32 %v3318, %v3309
      %v3320 = vshrl.u32 %v3319, 4
      %v3321 = vmul.u32 %v3320, 18
      %v3322 = vsub.s32 %v3298, %v3321
      %v3323 = vsub.s32 0, %v3322
      %v3324 = vsel %vm3296, %v3323, %v3322
      %vm3325 = vcmp.lt.s32.totalorder %v3009, 0
      %v3326 = vsub.s32 0, %v3009
      %v3327 = vsel %vm3325, %v3326, %v3009
      %v3328 = vand.u32 %v3327, 65535
      %v3329 = vshrl.u32 %v3327, 16
      %v3331 = vmul.u32 %v3328, 14564
      %v3332 = vmul.u32 %v3328, 58254
      %v3333 = vmul.u32 %v3329, 14564
      %v3334 = vmul.u32 %v3329, 58254
      %v3335 = vshll.u32 %v3332, 16
      %v3336 = vshrl.u32 %v3332, 16
      %v3337 = vshll.u32 %v3333, 16
      %v3338 = vshrl.u32 %v3333, 16
      %vm3339 = vc.u32 %v3331, %v3335
      %v3340 = vsel %vm3339, 1, 0
      %v3341 = vadd.s32 %v3331, %v3335
      %v3342 = vadd.s32 %v3334, %v3340
      %vm3343 = vc.u32 %v3341, %v3337
      %v3344 = vsel %vm3343, 1, 0
      %v3345 = vadd.s32 %v3341, %v3337
      %v3346 = vadd.s32 %v3342, %v3344
      %v3347 = vadd.s32 %v3346, %v3336
      %v3348 = vadd.s32 %v3347, %v3338
      %v3349 = vshrl.u32 %v3348, 4
      %v3350 = vmul.u32 %v3349, 18
      %v3351 = vsub.s32 %v3327, %v3350
      %v3352 = vsub.s32 0, %v3351
      %v3353 = vsel %vm3325, %v3352, %v3351
      %vm3354 = vcmp.lt.s32.totalorder %v3010, 0
      %v3355 = vsub.s32 0, %v3010
      %v3356 = vsel %vm3354, %v3355, %v3010
      %v3357 = vand.u32 %v3356, 65535
      %v3358 = vshrl.u32 %v3356, 16
      %v3360 = vmul.u32 %v3357, 14564
      %v3361 = vmul.u32 %v3357, 58254
      %v3362 = vmul.u32 %v3358, 14564
      %v3363 = vmul.u32 %v3358, 58254
      %v3364 = vshll.u32 %v3361, 16
      %v3365 = vshrl.u32 %v3361, 16
      %v3366 = vshll.u32 %v3362, 16
      %v3367 = vshrl.u32 %v3362, 16
      %vm3368 = vc.u32 %v3360, %v3364
      %v3369 = vsel %vm3368, 1, 0
      %v3370 = vadd.s32 %v3360, %v3364
      %v3371 = vadd.s32 %v3363, %v3369
      %vm3372 = vc.u32 %v3370, %v3366
      %v3373 = vsel %vm3372, 1, 0
      %v3374 = vadd.s32 %v3370, %v3366
      %v3375 = vadd.s32 %v3371, %v3373
      %v3376 = vadd.s32 %v3375, %v3365
      %v3377 = vadd.s32 %v3376, %v3367
      %v3378 = vshrl.u32 %v3377, 4
      %v3379 = vmul.u32 %v3378, 18
      %v3380 = vsub.s32 %v3356, %v3379
      %v3381 = vsub.s32 0, %v3380
      %v3382 = vsel %vm3354, %v3381, %v3380
      %vm3383 = vcmp.lt.s32.totalorder %v3011, 0
      %v3384 = vsub.s32 0, %v3011
      %v3385 = vsel %vm3383, %v3384, %v3011
      %v3386 = vand.u32 %v3385, 65535
      %v3387 = vshrl.u32 %v3385, 16
      %v3389 = vmul.u32 %v3386, 14564
      %v3390 = vmul.u32 %v3386, 58254
      %v3391 = vmul.u32 %v3387, 14564
      %v3392 = vmul.u32 %v3387, 58254
      %v3393 = vshll.u32 %v3390, 16
      %v3394 = vshrl.u32 %v3390, 16
      %v3395 = vshll.u32 %v3391, 16
      %v3396 = vshrl.u32 %v3391, 16
      %vm3397 = vc.u32 %v3389, %v3393
      %v3398 = vsel %vm3397, 1, 0
      %v3399 = vadd.s32 %v3389, %v3393
      %v3400 = vadd.s32 %v3392, %v3398
      %vm3401 = vc.u32 %v3399, %v3395
      %v3402 = vsel %vm3401, 1, 0
      %v3403 = vadd.s32 %v3399, %v3395
      %v3404 = vadd.s32 %v3400, %v3402
      %v3405 = vadd.s32 %v3404, %v3394
      %v3406 = vadd.s32 %v3405, %v3396
      %v3407 = vshrl.u32 %v3406, 4
      %v3408 = vmul.u32 %v3407, 18
      %v3409 = vsub.s32 %v3385, %v3408
      %v3410 = vsub.s32 0, %v3409
      %v3411 = vsel %vm3383, %v3410, %v3409
      %vm3412 = vcmp.lt.s32.totalorder %v3012, 0
      %v3413 = vsub.s32 0, %v3012
      %v3414 = vsel %vm3412, %v3413, %v3012
      %v3415 = vand.u32 %v3414, 65535
      %v3416 = vshrl.u32 %v3414, 16
      %v3418 = vmul.u32 %v3415, 14564
      %v3419 = vmul.u32 %v3415, 58254
      %v3420 = vmul.u32 %v3416, 14564
      %v3421 = vmul.u32 %v3416, 58254
      %v3422 = vshll.u32 %v3419, 16
      %v3423 = vshrl.u32 %v3419, 16
      %v3424 = vshll.u32 %v3420, 16
      %v3425 = vshrl.u32 %v3420, 16
      %vm3426 = vc.u32 %v3418, %v3422
      %v3427 = vsel %vm3426, 1, 0
      %v3428 = vadd.s32 %v3418, %v3422
      %v3429 = vadd.s32 %v3421, %v3427
      %vm3430 = vc.u32 %v3428, %v3424
      %v3431 = vsel %vm3430, 1, 0
      %v3432 = vadd.s32 %v3428, %v3424
      %v3433 = vadd.s32 %v3429, %v3431
      %v3434 = vadd.s32 %v3433, %v3423
      %v3435 = vadd.s32 %v3434, %v3425
      %v3436 = vshrl.u32 %v3435, 4
      %v3437 = vmul.u32 %v3436, 18
      %v3438 = vsub.s32 %v3414, %v3437
      %v3439 = vsub.s32 0, %v3438
      %v3440 = vsel %vm3412, %v3439, %v3438
      %vm3441 = vcmp.lt.s32.totalorder %v3013, 0
      %v3442 = vsub.s32 0, %v3013
      %v3443 = vsel %vm3441, %v3442, %v3013
      %v3444 = vand.u32 %v3443, 65535
      %v3445 = vshrl.u32 %v3443, 16
      %v3447 = vmul.u32 %v3444, 14564
      %v3448 = vmul.u32 %v3444, 58254
      %v3449 = vmul.u32 %v3445, 14564
      %v3450 = vmul.u32 %v3445, 58254
      %v3451 = vshll.u32 %v3448, 16
      %v3452 = vshrl.u32 %v3448, 16
      %v3453 = vshll.u32 %v3449, 16
      %v3454 = vshrl.u32 %v3449, 16
      %vm3455 = vc.u32 %v3447, %v3451
      %v3456 = vsel %vm3455, 1, 0
      %v3457 = vadd.s32 %v3447, %v3451
      %v3458 = vadd.s32 %v3450, %v3456
      %vm3459 = vc.u32 %v3457, %v3453
      %v3460 = vsel %vm3459, 1, 0
      %v3461 = vadd.s32 %v3457, %v3453
      %v3462 = vadd.s32 %v3458, %v3460
      %v3463 = vadd.s32 %v3462, %v3452
      %v3464 = vadd.s32 %v3463, %v3454
      %v3465 = vshrl.u32 %v3464, 4
      %v3466 = vmul.u32 %v3465, 18
      %v3467 = vsub.s32 %v3443, %v3466
      %v3468 = vsub.s32 0, %v3467
      %v3469 = vsel %vm3441, %v3468, %v3467
      %vm3470 = vcmp.lt.s32.totalorder %v3014, 0
      %v3471 = vsub.s32 0, %v3014
      %v3472 = vsel %vm3470, %v3471, %v3014
      %v3473 = vand.u32 %v3472, 65535
      %v3474 = vshrl.u32 %v3472, 16
      %v3476 = vmul.u32 %v3473, 14564
      %v3477 = vmul.u32 %v3473, 58254
      %v3478 = vmul.u32 %v3474, 14564
      %v3479 = vmul.u32 %v3474, 58254
      %v3480 = vshll.u32 %v3477, 16
      %v3481 = vshrl.u32 %v3477, 16
      %v3482 = vshll.u32 %v3478, 16
      %v3483 = vshrl.u32 %v3478, 16
      %vm3484 = vc.u32 %v3476, %v3480
      %v3485 = vsel %vm3484, 1, 0
      %v3486 = vadd.s32 %v3476, %v3480
      %v3487 = vadd.s32 %v3479, %v3485
      %vm3488 = vc.u32 %v3486, %v3482
      %v3489 = vsel %vm3488, 1, 0
      %v3490 = vadd.s32 %v3486, %v3482
      %v3491 = vadd.s32 %v3487, %v3489
      %v3492 = vadd.s32 %v3491, %v3481
      %v3493 = vadd.s32 %v3492, %v3483
      %v3494 = vshrl.u32 %v3493, 4
      %v3495 = vmul.u32 %v3494, 18
      %v3496 = vsub.s32 %v3472, %v3495
      %v3497 = vsub.s32 0, %v3496
      %v3498 = vsel %vm3470, %v3497, %v3496
      %vm3499 = vcmp.lt.s32.totalorder %v3015, 0
      %v3500 = vsub.s32 0, %v3015
      %v3501 = vsel %vm3499, %v3500, %v3015
      %v3502 = vand.u32 %v3501, 65535
      %v3503 = vshrl.u32 %v3501, 16
      %v3505 = vmul.u32 %v3502, 14564
      %v3506 = vmul.u32 %v3502, 58254
      %v3507 = vmul.u32 %v3503, 14564
      %v3508 = vmul.u32 %v3503, 58254
      %v3509 = vshll.u32 %v3506, 16
      %v3510 = vshrl.u32 %v3506, 16
      %v3511 = vshll.u32 %v3507, 16
      %v3512 = vshrl.u32 %v3507, 16
      %vm3513 = vc.u32 %v3505, %v3509
      %v3514 = vsel %vm3513, 1, 0
      %v3515 = vadd.s32 %v3505, %v3509
      %v3516 = vadd.s32 %v3508, %v3514
      %vm3517 = vc.u32 %v3515, %v3511
      %v3518 = vsel %vm3517, 1, 0
      %v3519 = vadd.s32 %v3515, %v3511
      %v3520 = vadd.s32 %v3516, %v3518
      %v3521 = vadd.s32 %v3520, %v3510
      %v3522 = vadd.s32 %v3521, %v3512
      %v3523 = vshrl.u32 %v3522, 4
      %v3524 = vmul.u32 %v3523, 18
      %v3525 = vsub.s32 %v3501, %v3524
      %v3526 = vsub.s32 0, %v3525
      %v3527 = vsel %vm3499, %v3526, %v3525
      %vm3528 = vcmp.lt.s32.totalorder %v3016, 0
      %v3529 = vsub.s32 0, %v3016
      %v3530 = vsel %vm3528, %v3529, %v3016
      %v3531 = vand.u32 %v3530, 65535
      %v3532 = vshrl.u32 %v3530, 16
      %v3534 = vmul.u32 %v3531, 14564
      %v3535 = vmul.u32 %v3531, 58254
      %v3536 = vmul.u32 %v3532, 14564
      %v3537 = vmul.u32 %v3532, 58254
      %v3538 = vshll.u32 %v3535, 16
      %v3539 = vshrl.u32 %v3535, 16
      %v3540 = vshll.u32 %v3536, 16
      %v3541 = vshrl.u32 %v3536, 16
      %vm3542 = vc.u32 %v3534, %v3538
      %v3543 = vsel %vm3542, 1, 0
      %v3544 = vadd.s32 %v3534, %v3538
      %v3545 = vadd.s32 %v3537, %v3543
      %vm3546 = vc.u32 %v3544, %v3540
      %v3547 = vsel %vm3546, 1, 0
      %v3548 = vadd.s32 %v3544, %v3540
      %v3549 = vadd.s32 %v3545, %v3547
      %v3550 = vadd.s32 %v3549, %v3539
      %v3551 = vadd.s32 %v3550, %v3541
      %v3552 = vshrl.u32 %v3551, 4
      %v3553 = vmul.u32 %v3552, 18
      %v3554 = vsub.s32 %v3530, %v3553
      %v3555 = vsub.s32 0, %v3554
      %v3556 = vsel %vm3528, %v3555, %v3554
      %vm3557 = vcmp.lt.s32.totalorder %v3017, 0
      %v3558 = vsub.s32 0, %v3017
      %v3559 = vsel %vm3557, %v3558, %v3017
      %v3560 = vand.u32 %v3559, 65535
      %v3561 = vshrl.u32 %v3559, 16
      %v3563 = vmul.u32 %v3560, 14564
      %v3564 = vmul.u32 %v3560, 58254
      %v3565 = vmul.u32 %v3561, 14564
      %v3566 = vmul.u32 %v3561, 58254
      %v3567 = vshll.u32 %v3564, 16
      %v3568 = vshrl.u32 %v3564, 16
      %v3569 = vshll.u32 %v3565, 16
      %v3570 = vshrl.u32 %v3565, 16
      %vm3571 = vc.u32 %v3563, %v3567
      %v3572 = vsel %vm3571, 1, 0
      %v3573 = vadd.s32 %v3563, %v3567
      %v3574 = vadd.s32 %v3566, %v3572
      %vm3575 = vc.u32 %v3573, %v3569
      %v3576 = vsel %vm3575, 1, 0
      %v3577 = vadd.s32 %v3573, %v3569
      %v3578 = vadd.s32 %v3574, %v3576
      %v3579 = vadd.s32 %v3578, %v3568
      %v3580 = vadd.s32 %v3579, %v3570
      %v3581 = vshrl.u32 %v3580, 4
      %v3582 = vmul.u32 %v3581, 18
      %v3583 = vsub.s32 %v3559, %v3582
      %v3584 = vsub.s32 0, %v3583
      %v3585 = vsel %vm3557, %v3584, %v3583
      %vm3586 = vcmp.lt.s32.totalorder %v3018, 0
      %v3587 = vsub.s32 0, %v3018
      %v3588 = vsel %vm3586, %v3587, %v3018
      %v3589 = vand.u32 %v3588, 65535
      %v3590 = vshrl.u32 %v3588, 16
      %v3592 = vmul.u32 %v3589, 14564
      %v3593 = vmul.u32 %v3589, 58254
      %v3594 = vmul.u32 %v3590, 14564
      %v3595 = vmul.u32 %v3590, 58254
      %v3596 = vshll.u32 %v3593, 16
      %v3597 = vshrl.u32 %v3593, 16
      %v3598 = vshll.u32 %v3594, 16
      %v3599 = vshrl.u32 %v3594, 16
      %vm3600 = vc.u32 %v3592, %v3596
      %v3601 = vsel %vm3600, 1, 0
      %v3602 = vadd.s32 %v3592, %v3596
      %v3603 = vadd.s32 %v3595, %v3601
      %vm3604 = vc.u32 %v3602, %v3598
      %v3605 = vsel %vm3604, 1, 0
      %v3606 = vadd.s32 %v3602, %v3598
      %v3607 = vadd.s32 %v3603, %v3605
      %v3608 = vadd.s32 %v3607, %v3597
      %v3609 = vadd.s32 %v3608, %v3599
      %v3610 = vshrl.u32 %v3609, 4
      %v3611 = vmul.u32 %v3610, 18
      %v3612 = vsub.s32 %v3588, %v3611
      %v3613 = vsub.s32 0, %v3612
      %v3614 = vsel %vm3586, %v3613, %v3612
      %vm3615 = vcmp.lt.s32.totalorder %v3019, 0
      %v3616 = vsub.s32 0, %v3019
      %v3617 = vsel %vm3615, %v3616, %v3019
      %v3618 = vand.u32 %v3617, 65535
      %v3619 = vshrl.u32 %v3617, 16
      %v3621 = vmul.u32 %v3618, 14564
      %v3622 = vmul.u32 %v3618, 58254
      %v3623 = vmul.u32 %v3619, 14564
      %v3624 = vmul.u32 %v3619, 58254
      %v3625 = vshll.u32 %v3622, 16
      %v3626 = vshrl.u32 %v3622, 16
      %v3627 = vshll.u32 %v3623, 16
      %v3628 = vshrl.u32 %v3623, 16
      %vm3629 = vc.u32 %v3621, %v3625
      %v3630 = vsel %vm3629, 1, 0
      %v3631 = vadd.s32 %v3621, %v3625
      %v3632 = vadd.s32 %v3624, %v3630
      %vm3633 = vc.u32 %v3631, %v3627
      %v3634 = vsel %vm3633, 1, 0
      %v3635 = vadd.s32 %v3631, %v3627
      %v3636 = vadd.s32 %v3632, %v3634
      %v3637 = vadd.s32 %v3636, %v3626
      %v3638 = vadd.s32 %v3637, %v3628
      %v3639 = vshrl.u32 %v3638, 4
      %v3640 = vmul.u32 %v3639, 18
      %v3641 = vsub.s32 %v3617, %v3640
      %v3642 = vsub.s32 0, %v3641
      %v3643 = vsel %vm3615, %v3642, %v3641
      %vm3644 = vcmp.lt.s32.totalorder %v3020, 0
      %v3645 = vsub.s32 0, %v3020
      %v3646 = vsel %vm3644, %v3645, %v3020
      %v3647 = vand.u32 %v3646, 65535
      %v3648 = vshrl.u32 %v3646, 16
      %v3650 = vmul.u32 %v3647, 14564
      %v3651 = vmul.u32 %v3647, 58254
      %v3652 = vmul.u32 %v3648, 14564
      %v3653 = vmul.u32 %v3648, 58254
      %v3654 = vshll.u32 %v3651, 16
      %v3655 = vshrl.u32 %v3651, 16
      %v3656 = vshll.u32 %v3652, 16
      %v3657 = vshrl.u32 %v3652, 16
      %vm3658 = vc.u32 %v3650, %v3654
      %v3659 = vsel %vm3658, 1, 0
      %v3660 = vadd.s32 %v3650, %v3654
      %v3661 = vadd.s32 %v3653, %v3659
      %vm3662 = vc.u32 %v3660, %v3656
      %v3663 = vsel %vm3662, 1, 0
      %v3664 = vadd.s32 %v3660, %v3656
      %v3665 = vadd.s32 %v3661, %v3663
      %v3666 = vadd.s32 %v3665, %v3655
      %v3667 = vadd.s32 %v3666, %v3657
      %v3668 = vshrl.u32 %v3667, 4
      %v3669 = vmul.u32 %v3668, 18
      %v3670 = vsub.s32 %v3646, %v3669
      %v3671 = vsub.s32 0, %v3670
      %v3672 = vsel %vm3644, %v3671, %v3670
      %vm3673 = vcmp.lt.s32.totalorder %v3021, 0
      %v3674 = vsub.s32 0, %v3021
      %v3675 = vsel %vm3673, %v3674, %v3021
      %v3676 = vand.u32 %v3675, 65535
      %v3677 = vshrl.u32 %v3675, 16
      %v3679 = vmul.u32 %v3676, 14564
      %v3680 = vmul.u32 %v3676, 58254
      %v3681 = vmul.u32 %v3677, 14564
      %v3682 = vmul.u32 %v3677, 58254
      %v3683 = vshll.u32 %v3680, 16
      %v3684 = vshrl.u32 %v3680, 16
      %v3685 = vshll.u32 %v3681, 16
      %v3686 = vshrl.u32 %v3681, 16
      %vm3687 = vc.u32 %v3679, %v3683
      %v3688 = vsel %vm3687, 1, 0
      %v3689 = vadd.s32 %v3679, %v3683
      %v3690 = vadd.s32 %v3682, %v3688
      %vm3691 = vc.u32 %v3689, %v3685
      %v3692 = vsel %vm3691, 1, 0
      %v3693 = vadd.s32 %v3689, %v3685
      %v3694 = vadd.s32 %v3690, %v3692
      %v3695 = vadd.s32 %v3694, %v3684
      %v3696 = vadd.s32 %v3695, %v3686
      %v3697 = vshrl.u32 %v3696, 4
      %v3698 = vmul.u32 %v3697, 18
      %v3699 = vsub.s32 %v3675, %v3698
      %v3700 = vsub.s32 0, %v3699
      %v3701 = vsel %vm3673, %v3700, %v3699
      %vm3702 = vcmp.lt.s32.totalorder %v3022, 0
      %v3703 = vsub.s32 0, %v3022
      %v3704 = vsel %vm3702, %v3703, %v3022
      %v3705 = vand.u32 %v3704, 65535
      %v3706 = vshrl.u32 %v3704, 16
      %v3708 = vmul.u32 %v3705, 14564
      %v3709 = vmul.u32 %v3705, 58254
      %v3710 = vmul.u32 %v3706, 14564
      %v3711 = vmul.u32 %v3706, 58254
      %v3712 = vshll.u32 %v3709, 16
      %v3713 = vshrl.u32 %v3709, 16
      %v3714 = vshll.u32 %v3710, 16
      %v3715 = vshrl.u32 %v3710, 16
      %vm3716 = vc.u32 %v3708, %v3712
      %v3717 = vsel %vm3716, 1, 0
      %v3718 = vadd.s32 %v3708, %v3712
      %v3719 = vadd.s32 %v3711, %v3717
      %vm3720 = vc.u32 %v3718, %v3714
      %v3721 = vsel %vm3720, 1, 0
      %v3722 = vadd.s32 %v3718, %v3714
      %v3723 = vadd.s32 %v3719, %v3721
      %v3724 = vadd.s32 %v3723, %v3713
      %v3725 = vadd.s32 %v3724, %v3715
      %v3726 = vshrl.u32 %v3725, 4
      %v3727 = vmul.u32 %v3726, 18
      %v3728 = vsub.s32 %v3704, %v3727
      %v3729 = vsub.s32 0, %v3728
      %v3730 = vsel %vm3702, %v3729, %v3728
      %vm3731 = vcmp.lt.s32.totalorder %v3023, 0
      %v3732 = vsub.s32 0, %v3023
      %v3733 = vsel %vm3731, %v3732, %v3023
      %v3734 = vand.u32 %v3733, 65535
      %v3735 = vshrl.u32 %v3733, 16
      %v3737 = vmul.u32 %v3734, 14564
      %v3738 = vmul.u32 %v3734, 58254
      %v3739 = vmul.u32 %v3735, 14564
      %v3740 = vmul.u32 %v3735, 58254
      %v3741 = vshll.u32 %v3738, 16
      %v3742 = vshrl.u32 %v3738, 16
      %v3743 = vshll.u32 %v3739, 16
      %v3744 = vshrl.u32 %v3739, 16
      %vm3745 = vc.u32 %v3737, %v3741
      %v3746 = vsel %vm3745, 1, 0
      %v3747 = vadd.s32 %v3737, %v3741
      %v3748 = vadd.s32 %v3740, %v3746
      %vm3749 = vc.u32 %v3747, %v3743
      %v3750 = vsel %vm3749, 1, 0
      %v3751 = vadd.s32 %v3747, %v3743
      %v3752 = vadd.s32 %v3748, %v3750
      %v3753 = vadd.s32 %v3752, %v3742
      %v3754 = vadd.s32 %v3753, %v3744
      %v3755 = vshrl.u32 %v3754, 4
      %v3756 = vmul.u32 %v3755, 18
      %v3757 = vsub.s32 %v3733, %v3756
      %v3758 = vsub.s32 0, %v3757
      %v3759 = vsel %vm3731, %v3758, %v3757
      %vm3760 = vcmp.lt.s32.totalorder %v3024, 0
      %v3761 = vsub.s32 0, %v3024
      %v3762 = vsel %vm3760, %v3761, %v3024
      %v3763 = vand.u32 %v3762, 65535
      %v3764 = vshrl.u32 %v3762, 16
      %v3766 = vmul.u32 %v3763, 14564
      %v3767 = vmul.u32 %v3763, 58254
      %v3768 = vmul.u32 %v3764, 14564
      %v3769 = vmul.u32 %v3764, 58254
      %v3770 = vshll.u32 %v3767, 16
      %v3771 = vshrl.u32 %v3767, 16
      %v3772 = vshll.u32 %v3768, 16
      %v3773 = vshrl.u32 %v3768, 16
      %vm3774 = vc.u32 %v3766, %v3770
      %v3775 = vsel %vm3774, 1, 0
      %v3776 = vadd.s32 %v3766, %v3770
      %v3777 = vadd.s32 %v3769, %v3775
      %vm3778 = vc.u32 %v3776, %v3772
      %v3779 = vsel %vm3778, 1, 0
      %v3780 = vadd.s32 %v3776, %v3772
      %v3781 = vadd.s32 %v3777, %v3779
      %v3782 = vadd.s32 %v3781, %v3771
      %v3783 = vadd.s32 %v3782, %v3773
      %v3784 = vshrl.u32 %v3783, 4
      %v3785 = vmul.u32 %v3784, 18
      %v3786 = vsub.s32 %v3762, %v3785
      %v3787 = vsub.s32 0, %v3786
      %v3788 = vsel %vm3760, %v3787, %v3786
      %vm3789 = vcmp.lt.s32.totalorder %v3025, 0
      %v3790 = vsub.s32 0, %v3025
      %v3791 = vsel %vm3789, %v3790, %v3025
      %v3792 = vand.u32 %v3791, 65535
      %v3793 = vshrl.u32 %v3791, 16
      %v3795 = vmul.u32 %v3792, 14564
      %v3796 = vmul.u32 %v3792, 58254
      %v3797 = vmul.u32 %v3793, 14564
      %v3798 = vmul.u32 %v3793, 58254
      %v3799 = vshll.u32 %v3796, 16
      %v3800 = vshrl.u32 %v3796, 16
      %v3801 = vshll.u32 %v3797, 16
      %v3802 = vshrl.u32 %v3797, 16
      %vm3803 = vc.u32 %v3795, %v3799
      %v3804 = vsel %vm3803, 1, 0
      %v3805 = vadd.s32 %v3795, %v3799
      %v3806 = vadd.s32 %v3798, %v3804
      %vm3807 = vc.u32 %v3805, %v3801
      %v3808 = vsel %vm3807, 1, 0
      %v3809 = vadd.s32 %v3805, %v3801
      %v3810 = vadd.s32 %v3806, %v3808
      %v3811 = vadd.s32 %v3810, %v3800
      %v3812 = vadd.s32 %v3811, %v3802
      %v3813 = vshrl.u32 %v3812, 4
      %v3814 = vmul.u32 %v3813, 18
      %v3815 = vsub.s32 %v3791, %v3814
      %v3816 = vsub.s32 0, %v3815
      %v3817 = vsel %vm3789, %v3816, %v3815
      %vm3818 = vcmp.lt.s32.totalorder %v3026, 0
      %v3819 = vsub.s32 0, %v3026
      %v3820 = vsel %vm3818, %v3819, %v3026
      %v3821 = vand.u32 %v3820, 65535
      %v3822 = vshrl.u32 %v3820, 16
      %v3824 = vmul.u32 %v3821, 14564
      %v3825 = vmul.u32 %v3821, 58254
      %v3826 = vmul.u32 %v3822, 14564
      %v3827 = vmul.u32 %v3822, 58254
      %v3828 = vshll.u32 %v3825, 16
      %v3829 = vshrl.u32 %v3825, 16
      %v3830 = vshll.u32 %v3826, 16
      %v3831 = vshrl.u32 %v3826, 16
      %vm3832 = vc.u32 %v3824, %v3828
      %v3833 = vsel %vm3832, 1, 0
      %v3834 = vadd.s32 %v3824, %v3828
      %v3835 = vadd.s32 %v3827, %v3833
      %vm3836 = vc.u32 %v3834, %v3830
      %v3837 = vsel %vm3836, 1, 0
      %v3838 = vadd.s32 %v3834, %v3830
      %v3839 = vadd.s32 %v3835, %v3837
      %v3840 = vadd.s32 %v3839, %v3829
      %v3841 = vadd.s32 %v3840, %v3831
      %v3842 = vshrl.u32 %v3841, 4
      %v3843 = vmul.u32 %v3842, 18
      %v3844 = vsub.s32 %v3820, %v3843
      %v3845 = vsub.s32 0, %v3844
      %v3846 = vsel %vm3818, %v3845, %v3844
      %vm3847 = vcmp.lt.s32.totalorder %v3027, 0
      %v3848 = vsub.s32 0, %v3027
      %v3849 = vsel %vm3847, %v3848, %v3027
      %v3850 = vand.u32 %v3849, 65535
      %v3851 = vshrl.u32 %v3849, 16
      %v3853 = vmul.u32 %v3850, 14564
      %v3854 = vmul.u32 %v3850, 58254
      %v3855 = vmul.u32 %v3851, 14564
      %v3856 = vmul.u32 %v3851, 58254
      %v3857 = vshll.u32 %v3854, 16
      %v3858 = vshrl.u32 %v3854, 16
      %v3859 = vshll.u32 %v3855, 16
      %v3860 = vshrl.u32 %v3855, 16
      %vm3861 = vc.u32 %v3853, %v3857
      %v3862 = vsel %vm3861, 1, 0
      %v3863 = vadd.s32 %v3853, %v3857
      %v3864 = vadd.s32 %v3856, %v3862
      %vm3865 = vc.u32 %v3863, %v3859
      %v3866 = vsel %vm3865, 1, 0
      %v3867 = vadd.s32 %v3863, %v3859
      %v3868 = vadd.s32 %v3864, %v3866
      %v3869 = vadd.s32 %v3868, %v3858
      %v3870 = vadd.s32 %v3869, %v3860
      %v3871 = vshrl.u32 %v3870, 4
      %v3872 = vmul.u32 %v3871, 18
      %v3873 = vsub.s32 %v3849, %v3872
      %v3874 = vsub.s32 0, %v3873
      %v3875 = vsel %vm3847, %v3874, %v3873
      %vm3876 = vcmp.lt.s32.totalorder %v3028, 0
      %v3877 = vsub.s32 0, %v3028
      %v3878 = vsel %vm3876, %v3877, %v3028
      %v3879 = vand.u32 %v3878, 65535
      %v3880 = vshrl.u32 %v3878, 16
      %v3882 = vmul.u32 %v3879, 14564
      %v3883 = vmul.u32 %v3879, 58254
      %v3884 = vmul.u32 %v3880, 14564
      %v3885 = vmul.u32 %v3880, 58254
      %v3886 = vshll.u32 %v3883, 16
      %v3887 = vshrl.u32 %v3883, 16
      %v3888 = vshll.u32 %v3884, 16
      %v3889 = vshrl.u32 %v3884, 16
      %vm3890 = vc.u32 %v3882, %v3886
      %v3891 = vsel %vm3890, 1, 0
      %v3892 = vadd.s32 %v3882, %v3886
      %v3893 = vadd.s32 %v3885, %v3891
      %vm3894 = vc.u32 %v3892, %v3888
      %v3895 = vsel %vm3894, 1, 0
      %v3896 = vadd.s32 %v3892, %v3888
      %v3897 = vadd.s32 %v3893, %v3895
      %v3898 = vadd.s32 %v3897, %v3887
      %v3899 = vadd.s32 %v3898, %v3889
      %v3900 = vshrl.u32 %v3899, 4
      %v3901 = vmul.u32 %v3900, 18
      %v3902 = vsub.s32 %v3878, %v3901
      %v3903 = vsub.s32 0, %v3902
      %v3904 = vsel %vm3876, %v3903, %v3902
      %vm3905 = vcmp.lt.s32.totalorder %v3029, 0
      %v3906 = vsub.s32 0, %v3029
      %v3907 = vsel %vm3905, %v3906, %v3029
      %v3908 = vand.u32 %v3907, 65535
      %v3909 = vshrl.u32 %v3907, 16
      %v3911 = vmul.u32 %v3908, 14564
      %v3912 = vmul.u32 %v3908, 58254
      %v3913 = vmul.u32 %v3909, 14564
      %v3914 = vmul.u32 %v3909, 58254
      %v3915 = vshll.u32 %v3912, 16
      %v3916 = vshrl.u32 %v3912, 16
      %v3917 = vshll.u32 %v3913, 16
      %v3918 = vshrl.u32 %v3913, 16
      %vm3919 = vc.u32 %v3911, %v3915
      %v3920 = vsel %vm3919, 1, 0
      %v3921 = vadd.s32 %v3911, %v3915
      %v3922 = vadd.s32 %v3914, %v3920
      %vm3923 = vc.u32 %v3921, %v3917
      %v3924 = vsel %vm3923, 1, 0
      %v3925 = vadd.s32 %v3921, %v3917
      %v3926 = vadd.s32 %v3922, %v3924
      %v3927 = vadd.s32 %v3926, %v3916
      %v3928 = vadd.s32 %v3927, %v3918
      %v3929 = vshrl.u32 %v3928, 4
      %v3930 = vmul.u32 %v3929, 18
      %v3931 = vsub.s32 %v3907, %v3930
      %v3932 = vsub.s32 0, %v3931
      %v3933 = vsel %vm3905, %v3932, %v3931
      %vm3934 = vcmp.lt.s32.totalorder %v3030, 0
      %v3935 = vsub.s32 0, %v3030
      %v3936 = vsel %vm3934, %v3935, %v3030
      %v3937 = vand.u32 %v3936, 65535
      %v3938 = vshrl.u32 %v3936, 16
      %v3940 = vmul.u32 %v3937, 14564
      %v3941 = vmul.u32 %v3937, 58254
      %v3942 = vmul.u32 %v3938, 14564
      %v3943 = vmul.u32 %v3938, 58254
      %v3944 = vshll.u32 %v3941, 16
      %v3945 = vshrl.u32 %v3941, 16
      %v3946 = vshll.u32 %v3942, 16
      %v3947 = vshrl.u32 %v3942, 16
      %vm3948 = vc.u32 %v3940, %v3944
      %v3949 = vsel %vm3948, 1, 0
      %v3950 = vadd.s32 %v3940, %v3944
      %v3951 = vadd.s32 %v3943, %v3949
      %vm3952 = vc.u32 %v3950, %v3946
      %v3953 = vsel %vm3952, 1, 0
      %v3954 = vadd.s32 %v3950, %v3946
      %v3955 = vadd.s32 %v3951, %v3953
      %v3956 = vadd.s32 %v3955, %v3945
      %v3957 = vadd.s32 %v3956, %v3947
      %v3958 = vshrl.u32 %v3957, 4
      %v3959 = vmul.u32 %v3958, 18
      %v3960 = vsub.s32 %v3936, %v3959
      %v3961 = vsub.s32 0, %v3960
      %v3962 = vsel %vm3934, %v3961, %v3960
      %vm3963 = vcmp.lt.s32.totalorder %v3031, 0
      %v3964 = vsub.s32 0, %v3031
      %v3965 = vsel %vm3963, %v3964, %v3031
      %v3966 = vand.u32 %v3965, 65535
      %v3967 = vshrl.u32 %v3965, 16
      %v3969 = vmul.u32 %v3966, 14564
      %v3970 = vmul.u32 %v3966, 58254
      %v3971 = vmul.u32 %v3967, 14564
      %v3972 = vmul.u32 %v3967, 58254
      %v3973 = vshll.u32 %v3970, 16
      %v3974 = vshrl.u32 %v3970, 16
      %v3975 = vshll.u32 %v3971, 16
      %v3976 = vshrl.u32 %v3971, 16
      %vm3977 = vc.u32 %v3969, %v3973
      %v3978 = vsel %vm3977, 1, 0
      %v3979 = vadd.s32 %v3969, %v3973
      %v3980 = vadd.s32 %v3972, %v3978
      %vm3981 = vc.u32 %v3979, %v3975
      %v3982 = vsel %vm3981, 1, 0
      %v3983 = vadd.s32 %v3979, %v3975
      %v3984 = vadd.s32 %v3980, %v3982
      %v3985 = vadd.s32 %v3984, %v3974
      %v3986 = vadd.s32 %v3985, %v3976
      %v3987 = vshrl.u32 %v3986, 4
      %v3988 = vmul.u32 %v3987, 18
      %v3989 = vsub.s32 %v3965, %v3988
      %v3990 = vsub.s32 0, %v3989
      %v3991 = vsel %vm3963, %v3990, %v3989
      %vm3992 = vcmp.lt.s32.totalorder %v3032, 0
      %v3993 = vsub.s32 0, %v3032
      %v3994 = vsel %vm3992, %v3993, %v3032
      %v3995 = vand.u32 %v3994, 65535
      %v3996 = vshrl.u32 %v3994, 16
      %v3998 = vmul.u32 %v3995, 14564
      %v3999 = vmul.u32 %v3995, 58254
      %v4000 = vmul.u32 %v3996, 14564
      %v4001 = vmul.u32 %v3996, 58254
      %v4002 = vshll.u32 %v3999, 16
      %v4003 = vshrl.u32 %v3999, 16
      %v4004 = vshll.u32 %v4000, 16
      %v4005 = vshrl.u32 %v4000, 16
      %vm4006 = vc.u32 %v3998, %v4002
      %v4007 = vsel %vm4006, 1, 0
      %v4008 = vadd.s32 %v3998, %v4002
      %v4009 = vadd.s32 %v4001, %v4007
      %vm4010 = vc.u32 %v4008, %v4004
      %v4011 = vsel %vm4010, 1, 0
      %v4012 = vadd.s32 %v4008, %v4004
      %v4013 = vadd.s32 %v4009, %v4011
      %v4014 = vadd.s32 %v4013, %v4003
      %v4015 = vadd.s32 %v4014, %v4005
      %v4016 = vshrl.u32 %v4015, 4
      %v4017 = vmul.u32 %v4016, 18
      %v4018 = vsub.s32 %v3994, %v4017
      %v4019 = vsub.s32 0, %v4018
      %v4020 = vsel %vm3992, %v4019, %v4018
      %vm4021 = vcmp.lt.s32.totalorder %v3033, 0
      %v4022 = vsub.s32 0, %v3033
      %v4023 = vsel %vm4021, %v4022, %v3033
      %v4024 = vand.u32 %v4023, 65535
      %v4025 = vshrl.u32 %v4023, 16
      %v4027 = vmul.u32 %v4024, 14564
      %v4028 = vmul.u32 %v4024, 58254
      %v4029 = vmul.u32 %v4025, 14564
      %v4030 = vmul.u32 %v4025, 58254
      %v4031 = vshll.u32 %v4028, 16
      %v4032 = vshrl.u32 %v4028, 16
      %v4033 = vshll.u32 %v4029, 16
      %v4034 = vshrl.u32 %v4029, 16
      %vm4035 = vc.u32 %v4027, %v4031
      %v4036 = vsel %vm4035, 1, 0
      %v4037 = vadd.s32 %v4027, %v4031
      %v4038 = vadd.s32 %v4030, %v4036
      %vm4039 = vc.u32 %v4037, %v4033
      %v4040 = vsel %vm4039, 1, 0
      %v4041 = vadd.s32 %v4037, %v4033
      %v4042 = vadd.s32 %v4038, %v4040
      %v4043 = vadd.s32 %v4042, %v4032
      %v4044 = vadd.s32 %v4043, %v4034
      %v4045 = vshrl.u32 %v4044, 4
      %v4046 = vmul.u32 %v4045, 18
      %v4047 = vsub.s32 %v4023, %v4046
      %v4048 = vsub.s32 0, %v4047
      %v4049 = vsel %vm4021, %v4048, %v4047
      %vm4050 = vcmp.lt.s32.totalorder %v3034, 0
      %v4051 = vsub.s32 0, %v3034
      %v4052 = vsel %vm4050, %v4051, %v3034
      %v4053 = vand.u32 %v4052, 65535
      %v4054 = vshrl.u32 %v4052, 16
      %v4056 = vmul.u32 %v4053, 14564
      %v4057 = vmul.u32 %v4053, 58254
      %v4058 = vmul.u32 %v4054, 14564
      %v4059 = vmul.u32 %v4054, 58254
      %v4060 = vshll.u32 %v4057, 16
      %v4061 = vshrl.u32 %v4057, 16
      %v4062 = vshll.u32 %v4058, 16
      %v4063 = vshrl.u32 %v4058, 16
      %vm4064 = vc.u32 %v4056, %v4060
      %v4065 = vsel %vm4064, 1, 0
      %v4066 = vadd.s32 %v4056, %v4060
      %v4067 = vadd.s32 %v4059, %v4065
      %vm4068 = vc.u32 %v4066, %v4062
      %v4069 = vsel %vm4068, 1, 0
      %v4070 = vadd.s32 %v4066, %v4062
      %v4071 = vadd.s32 %v4067, %v4069
      %v4072 = vadd.s32 %v4071, %v4061
      %v4073 = vadd.s32 %v4072, %v4063
      %v4074 = vshrl.u32 %v4073, 4
      %v4075 = vmul.u32 %v4074, 18
      %v4076 = vsub.s32 %v4052, %v4075
      %v4077 = vsub.s32 0, %v4076
      %v4078 = vsel %vm4050, %v4077, %v4076
      %vm4079 = vcmp.ne.s32.totalorder %v3063, 0
      %vm4080 = vcmp.ne.s32.totalorder %v3092, 0
      %vm4081 = vcmp.ne.s32.totalorder %v3121, 0
      %vm4082 = vcmp.ne.s32.totalorder %v3150, 0
      %vm4083 = vcmp.ne.s32.totalorder %v3179, 0
      %vm4084 = vcmp.ne.s32.totalorder %v3208, 0
      %vm4085 = vcmp.ne.s32.totalorder %v3237, 0
      %vm4086 = vcmp.ne.s32.totalorder %v3266, 0
      %vm4087 = vcmp.ne.s32.totalorder %v3295, 0
      %vm4088 = vcmp.ne.s32.totalorder %v3324, 0
      %vm4089 = vcmp.ne.s32.totalorder %v3353, 0
      %vm4090 = vcmp.ne.s32.totalorder %v3382, 0
      %vm4091 = vcmp.ne.s32.totalorder %v3411, 0
      %vm4092 = vcmp.ne.s32.totalorder %v3440, 0
      %vm4093 = vcmp.ne.s32.totalorder %v3469, 0
      %vm4094 = vcmp.ne.s32.totalorder %v3498, 0
      %vm4095 = vcmp.ne.s32.totalorder %v3527, 0
      %vm4096 = vcmp.ne.s32.totalorder %v3556, 0
      %vm4097 = vcmp.ne.s32.totalorder %v3585, 0
      %vm4098 = vcmp.ne.s32.totalorder %v3614, 0
      %vm4099 = vcmp.ne.s32.totalorder %v3643, 0
      %vm4100 = vcmp.ne.s32.totalorder %v3672, 0
      %vm4101 = vcmp.ne.s32.totalorder %v3701, 0
      %vm4102 = vcmp.ne.s32.totalorder %v3730, 0
      %vm4103 = vcmp.ne.s32.totalorder %v3759, 0
      %vm4104 = vcmp.ne.s32.totalorder %v3788, 0
      %vm4105 = vcmp.ne.s32.totalorder %v3817, 0
      %vm4106 = vcmp.ne.s32.totalorder %v3846, 0
      %vm4107 = vcmp.ne.s32.totalorder %v3875, 0
      %vm4108 = vcmp.ne.s32.totalorder %v3904, 0
      %vm4109 = vcmp.ne.s32.totalorder %v3933, 0
      %vm4110 = vcmp.ne.s32.totalorder %v3962, 0
      %vm4111 = vcmp.ne.s32.totalorder %v3991, 0
      %vm4112 = vcmp.ne.s32.totalorder %v4020, 0
      %vm4113 = vcmp.ne.s32.totalorder %v4049, 0
      %vm4114 = vcmp.ne.s32.totalorder %v4078, 0
      %vm4115 = vcmp.lt.s32.totalorder %v3063, 0
      %vm4116 = vcmp.lt.s32.totalorder %v3092, 0
      %vm4117 = vcmp.lt.s32.totalorder %v3121, 0
      %vm4118 = vcmp.lt.s32.totalorder %v3150, 0
      %vm4119 = vcmp.lt.s32.totalorder %v3179, 0
      %vm4120 = vcmp.lt.s32.totalorder %v3208, 0
      %vm4121 = vcmp.lt.s32.totalorder %v3237, 0
      %vm4122 = vcmp.lt.s32.totalorder %v3266, 0
      %vm4123 = vcmp.lt.s32.totalorder %v3295, 0
      %vm4124 = vcmp.lt.s32.totalorder %v3324, 0
      %vm4125 = vcmp.lt.s32.totalorder %v3353, 0
      %vm4126 = vcmp.lt.s32.totalorder %v3382, 0
      %vm4127 = vcmp.lt.s32.totalorder %v3411, 0
      %vm4128 = vcmp.lt.s32.totalorder %v3440, 0
      %vm4129 = vcmp.lt.s32.totalorder %v3469, 0
      %vm4130 = vcmp.lt.s32.totalorder %v3498, 0
      %vm4131 = vcmp.lt.s32.totalorder %v3527, 0
      %vm4132 = vcmp.lt.s32.totalorder %v3556, 0
      %vm4133 = vcmp.lt.s32.totalorder %v3585, 0
      %vm4134 = vcmp.lt.s32.totalorder %v3614, 0
      %vm4135 = vcmp.lt.s32.totalorder %v3643, 0
      %vm4136 = vcmp.lt.s32.totalorder %v3672, 0
      %vm4137 = vcmp.lt.s32.totalorder %v3701, 0
      %vm4138 = vcmp.lt.s32.totalorder %v3730, 0
      %vm4139 = vcmp.lt.s32.totalorder %v3759, 0
      %vm4140 = vcmp.lt.s32.totalorder %v3788, 0
      %vm4141 = vcmp.lt.s32.totalorder %v3817, 0
      %vm4142 = vcmp.lt.s32.totalorder %v3846, 0
      %vm4143 = vcmp.lt.s32.totalorder %v3875, 0
      %vm4144 = vcmp.lt.s32.totalorder %v3904, 0
      %vm4145 = vcmp.lt.s32.totalorder %v3933, 0
      %vm4146 = vcmp.lt.s32.totalorder %v3962, 0
      %vm4147 = vcmp.lt.s32.totalorder %v3991, 0
      %vm4148 = vcmp.lt.s32.totalorder %v4020, 0
      %vm4149 = vcmp.lt.s32.totalorder %v4049, 0
      %vm4150 = vcmp.lt.s32.totalorder %v4078, 0
      %vm4151 = vmand %vm4115, %vm4079
      %vm4152 = vmand %vm4116, %vm4080
      %vm4153 = vmand %vm4117, %vm4081
      %vm4154 = vmand %vm4118, %vm4082
      %vm4155 = vmand %vm4119, %vm4083
      %vm4156 = vmand %vm4120, %vm4084
      %vm4157 = vmand %vm4121, %vm4085
      %vm4158 = vmand %vm4122, %vm4086
      %vm4159 = vmand %vm4123, %vm4087
      %vm4160 = vmand %vm4124, %vm4088
      %vm4161 = vmand %vm4125, %vm4089
      %vm4162 = vmand %vm4126, %vm4090
      %vm4163 = vmand %vm4127, %vm4091
      %vm4164 = vmand %vm4128, %vm4092
      %vm4165 = vmand %vm4129, %vm4093
      %vm4166 = vmand %vm4130, %vm4094
      %vm4167 = vmand %vm4131, %vm4095
      %vm4168 = vmand %vm4132, %vm4096
      %vm4169 = vmand %vm4133, %vm4097
      %vm4170 = vmand %vm4134, %vm4098
      %vm4171 = vmand %vm4135, %vm4099
      %vm4172 = vmand %vm4136, %vm4100
      %vm4173 = vmand %vm4137, %vm4101
      %vm4174 = vmand %vm4138, %vm4102
      %vm4175 = vmand %vm4139, %vm4103
      %vm4176 = vmand %vm4140, %vm4104
      %vm4177 = vmand %vm4141, %vm4105
      %vm4178 = vmand %vm4142, %vm4106
      %vm4179 = vmand %vm4143, %vm4107
      %vm4180 = vmand %vm4144, %vm4108
      %vm4181 = vmand %vm4145, %vm4109
      %vm4182 = vmand %vm4146, %vm4110
      %vm4183 = vmand %vm4147, %vm4111
      %vm4184 = vmand %vm4148, %vm4112
      %vm4185 = vmand %vm4149, %vm4113
      %vm4186 = vmand %vm4150, %vm4114
      %v4187 = vadd.s32 %v3063, 18
      %v4188 = vadd.s32 %v3092, 18
      %v4189 = vadd.s32 %v3121, 18
      %v4190 = vadd.s32 %v3150, 18
      %v4191 = vadd.s32 %v3179, 18
      %v4192 = vadd.s32 %v3208, 18
      %v4193 = vadd.s32 %v3237, 18
      %v4194 = vadd.s32 %v3266, 18
      %v4195 = vadd.s32 %v3295, 18
      %v4196 = vadd.s32 %v3324, 18
      %v4197 = vadd.s32 %v3353, 18
      %v4198 = vadd.s32 %v3382, 18
      %v4199 = vadd.s32 %v3411, 18
      %v4200 = vadd.s32 %v3440, 18
      %v4201 = vadd.s32 %v3469, 18
      %v4202 = vadd.s32 %v3498, 18
      %v4203 = vadd.s32 %v3527, 18
      %v4204 = vadd.s32 %v3556, 18
      %v4205 = vadd.s32 %v3585, 18
      %v4206 = vadd.s32 %v3614, 18
      %v4207 = vadd.s32 %v3643, 18
      %v4208 = vadd.s32 %v3672, 18
      %v4209 = vadd.s32 %v3701, 18
      %v4210 = vadd.s32 %v3730, 18
      %v4211 = vadd.s32 %v3759, 18
      %v4212 = vadd.s32 %v3788, 18
      %v4213 = vadd.s32 %v3817, 18
      %v4214 = vadd.s32 %v3846, 18
      %v4215 = vadd.s32 %v3875, 18
      %v4216 = vadd.s32 %v3904, 18
      %v4217 = vadd.s32 %v3933, 18
      %v4218 = vadd.s32 %v3962, 18
      %v4219 = vadd.s32 %v3991, 18
      %v4220 = vadd.s32 %v4020, 18
      %v4221 = vadd.s32 %v4049, 18
      %v4222 = vadd.s32 %v4078, 18
      %v4223 = vsel %vm4151, %v4187, %v3063
      %v4224 = vsel %vm4152, %v4188, %v3092
      %v4225 = vsel %vm4153, %v4189, %v3121
      %v4226 = vsel %vm4154, %v4190, %v3150
      %v4227 = vsel %vm4155, %v4191, %v3179
      %v4228 = vsel %vm4156, %v4192, %v3208
      %v4229 = vsel %vm4157, %v4193, %v3237
      %v4230 = vsel %vm4158, %v4194, %v3266
      %v4231 = vsel %vm4159, %v4195, %v3295
      %v4232 = vsel %vm4160, %v4196, %v3324
      %v4233 = vsel %vm4161, %v4197, %v3353
      %v4234 = vsel %vm4162, %v4198, %v3382
      %v4235 = vsel %vm4163, %v4199, %v3411
      %v4236 = vsel %vm4164, %v4200, %v3440
      %v4237 = vsel %vm4165, %v4201, %v3469
      %v4238 = vsel %vm4166, %v4202, %v3498
      %v4239 = vsel %vm4167, %v4203, %v3527
      %v4240 = vsel %vm4168, %v4204, %v3556
      %v4241 = vsel %vm4169, %v4205, %v3585
      %v4242 = vsel %vm4170, %v4206, %v3614
      %v4243 = vsel %vm4171, %v4207, %v3643
      %v4244 = vsel %vm4172, %v4208, %v3672
      %v4245 = vsel %vm4173, %v4209, %v3701
      %v4246 = vsel %vm4174, %v4210, %v3730
      %v4247 = vsel %vm4175, %v4211, %v3759
      %v4248 = vsel %vm4176, %v4212, %v3788
      %v4249 = vsel %vm4177, %v4213, %v3817
      %v4250 = vsel %vm4178, %v4214, %v3846
      %v4251 = vsel %vm4179, %v4215, %v3875
      %v4252 = vsel %vm4180, %v4216, %v3904
      %v4253 = vsel %vm4181, %v4217, %v3933
      %v4254 = vsel %vm4182, %v4218, %v3962
      %v4255 = vsel %vm4183, %v4219, %v3991
      %v4256 = vsel %vm4184, %v4220, %v4020
      %v4257 = vsel %vm4185, %v4221, %v4049
      %v4258 = vsel %vm4186, %v4222, %v4078
      %vm4259 = vcmp.lt.s32.totalorder %v4223, 16
      %vm4260 = vcmp.lt.s32.totalorder %v4224, 16
      %vm4261 = vcmp.lt.s32.totalorder %v4225, 16
      %vm4262 = vcmp.lt.s32.totalorder %v4226, 16
      %vm4263 = vcmp.lt.s32.totalorder %v4227, 16
      %vm4264 = vcmp.lt.s32.totalorder %v4228, 16
      %vm4265 = vcmp.lt.s32.totalorder %v4229, 16
      %vm4266 = vcmp.lt.s32.totalorder %v4230, 16
      %vm4267 = vcmp.lt.s32.totalorder %v4231, 16
      %vm4268 = vcmp.lt.s32.totalorder %v4232, 16
      %vm4269 = vcmp.lt.s32.totalorder %v4233, 16
      %vm4270 = vcmp.lt.s32.totalorder %v4234, 16
      %vm4271 = vcmp.lt.s32.totalorder %v4235, 16
      %vm4272 = vcmp.lt.s32.totalorder %v4236, 16
      %vm4273 = vcmp.lt.s32.totalorder %v4237, 16
      %vm4274 = vcmp.lt.s32.totalorder %v4238, 16
      %vm4275 = vcmp.lt.s32.totalorder %v4239, 16
      %vm4276 = vcmp.lt.s32.totalorder %v4240, 16
      %vm4277 = vcmp.lt.s32.totalorder %v4241, 16
      %vm4278 = vcmp.lt.s32.totalorder %v4242, 16
      %vm4279 = vcmp.lt.s32.totalorder %v4243, 16
      %vm4280 = vcmp.lt.s32.totalorder %v4244, 16
      %vm4281 = vcmp.lt.s32.totalorder %v4245, 16
      %vm4282 = vcmp.lt.s32.totalorder %v4246, 16
      %vm4283 = vcmp.lt.s32.totalorder %v4247, 16
      %vm4284 = vcmp.lt.s32.totalorder %v4248, 16
      %vm4285 = vcmp.lt.s32.totalorder %v4249, 16
      %vm4286 = vcmp.lt.s32.totalorder %v4250, 16
      %vm4287 = vcmp.lt.s32.totalorder %v4251, 16
      %vm4288 = vcmp.lt.s32.totalorder %v4252, 16
      %vm4289 = vcmp.lt.s32.totalorder %v4253, 16
      %vm4290 = vcmp.lt.s32.totalorder %v4254, 16
      %vm4291 = vcmp.lt.s32.totalorder %v4255, 16
      %vm4292 = vcmp.lt.s32.totalorder %v4256, 16
      %vm4293 = vcmp.lt.s32.totalorder %v4257, 16
      %vm4294 = vcmp.lt.s32.totalorder %v4258, 16
      %v4295 = vsel %vm4259, 1, 0
      %v4296 = vsel %vm4260, 1, 0
      %v4297 = vsel %vm4261, 1, 0
      %v4298 = vsel %vm4262, 1, 0
      %v4299 = vsel %vm4263, 1, 0
      %v4300 = vsel %vm4264, 1, 0
      %v4301 = vsel %vm4265, 1, 0
      %v4302 = vsel %vm4266, 1, 0
      %v4303 = vsel %vm4267, 1, 0
      %v4304 = vsel %vm4268, 1, 0
      %v4305 = vsel %vm4269, 1, 0
      %v4306 = vsel %vm4270, 1, 0
      %v4307 = vsel %vm4271, 1, 0
      %v4308 = vsel %vm4272, 1, 0
      %v4309 = vsel %vm4273, 1, 0
      %v4310 = vsel %vm4274, 1, 0
      %v4311 = vsel %vm4275, 1, 0
      %v4312 = vsel %vm4276, 1, 0
      %v4313 = vsel %vm4277, 1, 0
      %v4314 = vsel %vm4278, 1, 0
      %v4315 = vsel %vm4279, 1, 0
      %v4316 = vsel %vm4280, 1, 0
      %v4317 = vsel %vm4281, 1, 0
      %v4318 = vsel %vm4282, 1, 0
      %v4319 = vsel %vm4283, 1, 0
      %v4320 = vsel %vm4284, 1, 0
      %v4321 = vsel %vm4285, 1, 0
      %v4322 = vsel %vm4286, 1, 0
      %v4323 = vsel %vm4287, 1, 0
      %v4324 = vsel %vm4288, 1, 0
      %v4325 = vsel %vm4289, 1, 0
      %v4326 = vsel %vm4290, 1, 0
      %v4327 = vsel %vm4291, 1, 0
      %v4328 = vsel %vm4292, 1, 0
      %v4329 = vsel %vm4293, 1, 0
      %v4330 = vsel %vm4294, 1, 0
      %vm4331 = vcmp.eq.s32.totalorder %v4295, 1
      %vm4332 = vcmp.eq.s32.totalorder %v4296, 1
      %vm4333 = vcmp.eq.s32.totalorder %v4297, 1
      %vm4334 = vcmp.eq.s32.totalorder %v4298, 1
      %vm4335 = vcmp.eq.s32.totalorder %v4299, 1
      %vm4336 = vcmp.eq.s32.totalorder %v4300, 1
      %vm4337 = vcmp.eq.s32.totalorder %v4301, 1
      %vm4338 = vcmp.eq.s32.totalorder %v4302, 1
      %vm4339 = vcmp.eq.s32.totalorder %v4303, 1
      %vm4340 = vcmp.eq.s32.totalorder %v4304, 1
      %vm4341 = vcmp.eq.s32.totalorder %v4305, 1
      %vm4342 = vcmp.eq.s32.totalorder %v4306, 1
      %vm4343 = vcmp.eq.s32.totalorder %v4307, 1
      %vm4344 = vcmp.eq.s32.totalorder %v4308, 1
      %vm4345 = vcmp.eq.s32.totalorder %v4309, 1
      %vm4346 = vcmp.eq.s32.totalorder %v4310, 1
      %vm4347 = vcmp.eq.s32.totalorder %v4311, 1
      %vm4348 = vcmp.eq.s32.totalorder %v4312, 1
      %vm4349 = vcmp.eq.s32.totalorder %v4313, 1
      %vm4350 = vcmp.eq.s32.totalorder %v4314, 1
      %vm4351 = vcmp.eq.s32.totalorder %v4315, 1
      %vm4352 = vcmp.eq.s32.totalorder %v4316, 1
      %vm4353 = vcmp.eq.s32.totalorder %v4317, 1
      %vm4354 = vcmp.eq.s32.totalorder %v4318, 1
      %vm4355 = vcmp.eq.s32.totalorder %v4319, 1
      %vm4356 = vcmp.eq.s32.totalorder %v4320, 1
      %vm4357 = vcmp.eq.s32.totalorder %v4321, 1
      %vm4358 = vcmp.eq.s32.totalorder %v4322, 1
      %vm4359 = vcmp.eq.s32.totalorder %v4323, 1
      %vm4360 = vcmp.eq.s32.totalorder %v4324, 1
      %vm4361 = vcmp.eq.s32.totalorder %v4325, 1
      %vm4362 = vcmp.eq.s32.totalorder %v4326, 1
      %vm4363 = vcmp.eq.s32.totalorder %v4327, 1
      %vm4364 = vcmp.eq.s32.totalorder %v4328, 1
      %vm4365 = vcmp.eq.s32.totalorder %v4329, 1
      %vm4366 = vcmp.eq.s32.totalorder %v4330, 1
      %v4367 = vsel %vm4331, %v2926, 0.0
      %v4368 = vsel %vm4332, %v2927, 0.0
      %v4369 = vsel %vm4333, %v2928, 0.0
      %v4370 = vsel %vm4334, %v2929, 0.0
      %v4371 = vsel %vm4335, %v2930, 0.0
      %v4372 = vsel %vm4336, %v2931, 0.0
      %v4373 = vsel %vm4337, %v2932, 0.0
      %v4374 = vsel %vm4338, %v2933, 0.0
      %v4375 = vsel %vm4339, %v2934, 0.0
      %v4376 = vsel %vm4340, %v2935, 0.0
      %v4377 = vsel %vm4341, %v2936, 0.0
      %v4378 = vsel %vm4342, %v2937, 0.0
      %v4379 = vsel %vm4343, %v2938, 0.0
      %v4380 = vsel %vm4344, %v2939, 0.0
      %v4381 = vsel %vm4345, %v2940, 0.0
      %v4382 = vsel %vm4346, %v2941, 0.0
      %v4383 = vsel %vm4347, %v2942, 0.0
      %v4384 = vsel %vm4348, %v2943, 0.0
      %v4385 = vsel %vm4349, %v2944, 0.0
      %v4386 = vsel %vm4350, %v2945, 0.0
      %v4387 = vsel %vm4351, %v2946, 0.0
      %v4388 = vsel %vm4352, %v2947, 0.0
      %v4389 = vsel %vm4353, %v2948, 0.0
      %v4390 = vsel %vm4354, %v2949, 0.0
      %v4391 = vsel %vm4355, %v2950, 0.0
      %v4392 = vsel %vm4356, %v2951, 0.0
      %v4393 = vsel %vm4357, %v2952, 0.0
      %v4394 = vsel %vm4358, %v2953, 0.0
      %v4395 = vsel %vm4359, %v2954, 0.0
      %v4396 = vsel %vm4360, %v2955, 0.0
      %v4397 = vsel %vm4361, %v2956, 0.0
      %v4398 = vsel %vm4362, %v2957, 0.0
      %v4399 = vsel %vm4363, %v2958, 0.0
      %v4400 = vsel %vm4364, %v2959, 0.0
      %v4401 = vsel %vm4365, %v2960, 0.0
      %v4402 = vsel %vm4366, %v2961, 0.0
      %v4403 = vadd.f32 %v4367, %v4368
      %v4404 = vadd.f32 %v4403, %v4369
      %v4405 = vadd.f32 %v4404, %v4370
      %v4406 = vadd.f32 %v4405, %v4371
      %v4407 = vadd.f32 %v4406, %v4372
      %v4408 = vadd.f32 %v4407, %v4373
      %v4409 = vadd.f32 %v4408, %v4374
      %v4410 = vadd.f32 %v4409, %v4375
      %v4411 = vadd.f32 %v4410, %v4376
      %v4412 = vadd.f32 %v4411, %v4377
      %v4413 = vadd.f32 %v4412, %v4378
      %v4414 = vadd.f32 %v4413, %v4379
      %v4415 = vadd.f32 %v4414, %v4380
      %v4416 = vadd.f32 %v4415, %v4381
      %v4417 = vadd.f32 %v4416, %v4382
      %v4418 = vadd.f32 %v4417, %v4383
      %v4419 = vadd.f32 %v4418, %v4384
      %v4420 = vadd.f32 %v4419, %v4385
      %v4421 = vadd.f32 %v4420, %v4386
      %v4422 = vadd.f32 %v4421, %v4387
      %v4423 = vadd.f32 %v4422, %v4388
      %v4424 = vadd.f32 %v4423, %v4389
      %v4425 = vadd.f32 %v4424, %v4390
      %v4426 = vadd.f32 %v4425, %v4391
      %v4427 = vadd.f32 %v4426, %v4392
      %v4428 = vadd.f32 %v4427, %v4393
      %v4429 = vadd.f32 %v4428, %v4394
      %v4430 = vadd.f32 %v4429, %v4395
      %v4431 = vadd.f32 %v4430, %v4396
      %v4432 = vadd.f32 %v4431, %v4397
      %v4433 = vadd.f32 %v4432, %v4398
      %v4434 = vadd.f32 %v4433, %v4399
      %v4435 = vadd.f32 %v4434, %v4400
      %v4436 = vadd.f32 %v4435, %v4401
      %v4437 = vadd.f32 %v4436, %v4402
      %v4438 = vrot.slane %v4437, 4
      %v4439 = vadd.f32 %v4437, %v4438
      %v4440 = vrot.slane %v4439, 2
      %v4441 = vadd.f32 %v4439, %v4440
      %v4442 = vrot.slane %v4441, 1
      %v4443 = vadd.f32 %v4441, %v4442
      %4444 = vst [vmem:[%s211] sm:$0x1] %v4443
      %v4445 = vmul.f32 %v4367, %v4367
      %v4446 = vmul.f32 %v4368, %v4368
      %v4447 = vmul.f32 %v4369, %v4369
      %v4448 = vmul.f32 %v4370, %v4370
      %v4449 = vmul.f32 %v4371, %v4371
      %v4450 = vmul.f32 %v4372, %v4372
      %v4451 = vmul.f32 %v4373, %v4373
      %v4452 = vmul.f32 %v4374, %v4374
      %v4453 = vmul.f32 %v4375, %v4375
      %v4454 = vmul.f32 %v4376, %v4376
      %v4455 = vmul.f32 %v4377, %v4377
      %v4456 = vmul.f32 %v4378, %v4378
      %v4457 = vmul.f32 %v4379, %v4379
      %v4458 = vmul.f32 %v4380, %v4380
      %v4459 = vmul.f32 %v4381, %v4381
      %v4460 = vmul.f32 %v4382, %v4382
      %v4461 = vmul.f32 %v4383, %v4383
      %v4462 = vmul.f32 %v4384, %v4384
      %v4463 = vmul.f32 %v4385, %v4385
      %v4464 = vmul.f32 %v4386, %v4386
      %v4465 = vmul.f32 %v4387, %v4387
      %v4466 = vmul.f32 %v4388, %v4388
      %v4467 = vmul.f32 %v4389, %v4389
      %v4468 = vmul.f32 %v4390, %v4390
      %v4469 = vmul.f32 %v4391, %v4391
      %v4470 = vmul.f32 %v4392, %v4392
      %v4471 = vmul.f32 %v4393, %v4393
      %v4472 = vmul.f32 %v4394, %v4394
      %v4473 = vmul.f32 %v4395, %v4395
      %v4474 = vmul.f32 %v4396, %v4396
      %v4475 = vmul.f32 %v4397, %v4397
      %v4476 = vmul.f32 %v4398, %v4398
      %v4477 = vmul.f32 %v4399, %v4399
      %v4478 = vmul.f32 %v4400, %v4400
      %v4479 = vmul.f32 %v4401, %v4401
      %v4480 = vmul.f32 %v4402, %v4402
      %v4481 = vadd.f32 %v4445, %v4446
      %v4482 = vadd.f32 %v4481, %v4447
      %v4483 = vadd.f32 %v4482, %v4448
      %v4484 = vadd.f32 %v4483, %v4449
      %v4485 = vadd.f32 %v4484, %v4450
      %v4486 = vadd.f32 %v4485, %v4451
      %v4487 = vadd.f32 %v4486, %v4452
      %v4488 = vadd.f32 %v4487, %v4453
      %v4489 = vadd.f32 %v4488, %v4454
      %v4490 = vadd.f32 %v4489, %v4455
      %v4491 = vadd.f32 %v4490, %v4456
      %v4492 = vadd.f32 %v4491, %v4457
      %v4493 = vadd.f32 %v4492, %v4458
      %v4494 = vadd.f32 %v4493, %v4459
      %v4495 = vadd.f32 %v4494, %v4460
      %v4496 = vadd.f32 %v4495, %v4461
      %v4497 = vadd.f32 %v4496, %v4462
      %v4498 = vadd.f32 %v4497, %v4463
      %v4499 = vadd.f32 %v4498, %v4464
      %v4500 = vadd.f32 %v4499, %v4465
      %v4501 = vadd.f32 %v4500, %v4466
      %v4502 = vadd.f32 %v4501, %v4467
      %v4503 = vadd.f32 %v4502, %v4468
      %v4504 = vadd.f32 %v4503, %v4469
      %v4505 = vadd.f32 %v4504, %v4470
      %v4506 = vadd.f32 %v4505, %v4471
      %v4507 = vadd.f32 %v4506, %v4472
      %v4508 = vadd.f32 %v4507, %v4473
      %v4509 = vadd.f32 %v4508, %v4474
      %v4510 = vadd.f32 %v4509, %v4475
      %v4511 = vadd.f32 %v4510, %v4476
      %v4512 = vadd.f32 %v4511, %v4477
      %v4513 = vadd.f32 %v4512, %v4478
      %v4514 = vadd.f32 %v4513, %v4479
      %v4515 = vadd.f32 %v4514, %v4480
      %v4516 = vrot.slane %v4515, 4
      %v4517 = vadd.f32 %v4515, %v4516
      %v4518 = vrot.slane %v4517, 2
      %v4519 = vadd.f32 %v4517, %v4518
      %v4520 = vrot.slane %v4519, 1
      %v4521 = vadd.f32 %v4519, %v4520
      %4522 = vst [vmem:[%s214] sm:$0x1] %v4521
      %p4523 = scmp.lt.s32.totalorder %s16, 1
      %s4524 = scalar_select %p4523, %s16, 1
      %s4525 = smul.addr %s4524, 36
      %s4526 = smul.addr %s4525, 8
      %s4527 = scalar_lea.vmem %s2, %s4526
      %p4528 = scmp.lt.s32.totalorder %s16, 1
      %s4529 = scalar_select %p4528, %s16, 1
      %s4530 = scalar_lea.vmem %s3, %s4529
      %p4531 = scmp.lt.s32.totalorder %s16, 1
      %s4532 = scalar_select %p4531, %s16, 1
      %s4533 = scalar_lea.vmem %s4, %s4532
      // Predicated region
      $region29: #{same_block_2d.2} parent=27 // pred_check
        %p4534 = pneg %p81
      $region30: #{same_block_2d.2} parent=27 // pred_check_branch
        %4536 = sbr.rel (%p4534) target = $region32
      $region31: #{same_block_2d.2} parent=27 // pred_region
        _
      $region32: #{same_block_2d.2} parent=27 // pred_fallthru
        _
      // Predicated region
      $region33: #{same_block_2d.2} parent=27 // pred_check
        %p4537 = pneg %p107
      $region34: #{same_block_2d.2} parent=27 // pred_check_branch
        %4539 = sbr.rel (%p4537) target = $region36
      $region35: #{same_block_2d.2} parent=27 // pred_region
        _
      $region36: #{same_block_2d.2} parent=27 // pred_fallthru
        _
      // Predicated region
      $region37: #{same_block_2d.2} parent=27 // pred_check
        %p4540 = pneg %p133
      $region38: #{same_block_2d.2} parent=27 // pred_check_branch
        %4542 = sbr.rel (%p4540) target = $region40
      $region39: #{same_block_2d.2} parent=27 // pred_region
        _
      $region40: #{same_block_2d.2} parent=27 // pred_fallthru
        _
    $region28: #{same_block_2d.2} parent=5 // pred_fallthru
      _
    %p4543 = scmp.le.s32.totalorder 2, %s11
    // Predicated region
    $region41: #{same_block_2d.2} parent=5 // pred_check
      %p4544 = pneg %p4543
    $region42: #{same_block_2d.2} parent=5 // pred_check_branch
      %4546 = sbr.rel (%p4544) target = $region44
    $region43: #{same_block_2d.2} parent=5 // pred_region
      %s4547 = ssub.s32 %s11, 2
      // Predicated region
      $region45: #{same_block_2d.2} parent=43 // pred_check
        %p4548 = pneg %p87
      $region46: #{same_block_2d.2} parent=43 // pred_check_branch
        %4550 = sbr.rel (%p4548) target = $region48
      $region47: #{same_block_2d.2} parent=43 // pred_region
        %p4551 = scmp.lt.s32.totalorder %s17, 1
        %s4552 = scalar_select %p4551, %s17, 1
        %s4553 = smul.addr %s4552, 36
        %s4554 = smul.addr %s4553, 8
        %s4555 = scalar_lea.vmem %s2, %s4554
      $region48: #{same_block_2d.2} parent=43 // pred_fallthru
        _
      // Predicated region
      $region49: #{same_block_2d.2} parent=43 // pred_check
        %p4556 = pneg %p113
      $region50: #{same_block_2d.2} parent=43 // pred_check_branch
        %4558 = sbr.rel (%p4556) target = $region52
      $region51: #{same_block_2d.2} parent=43 // pred_region
        %p4559 = scmp.lt.s32.totalorder %s17, 1
        %s4560 = scalar_select %p4559, %s17, 1
        %s4561 = scalar_lea.vmem %s3, %s4560
      $region52: #{same_block_2d.2} parent=43 // pred_fallthru
        _
      // Predicated region
      $region53: #{same_block_2d.2} parent=43 // pred_check
        %p4562 = pneg %p139
      $region54: #{same_block_2d.2} parent=43 // pred_check_branch
        %4564 = sbr.rel (%p4562) target = $region56
      $region55: #{same_block_2d.2} parent=43 // pred_region
        %p4565 = scmp.lt.s32.totalorder %s17, 1
        %s4566 = scalar_select %p4565, %s17, 1
        %s4567 = scalar_lea.vmem %s4, %s4566
      $region56: #{same_block_2d.2} parent=43 // pred_fallthru
        _
    $region44: #{same_block_2d.2} parent=5 // pred_fallthru
      _
  $region6: #{same_block_2d.2} parent=0 // loop_footer
    %s15 = sadd.s32 1, %s11
  $region7: #{same_block_2d.2} parent=0 // loop_footer_branch
    %10 = sbr.rel target = $region3
  $region8: #{same_block_2d.2} parent=0 // loop_exit
    _

</llo_original>
